<compile_context>
chip_gen: v6e
topology: v6e:2x2x1
jax: 0.10.0
libtpu: 0.0.40
codegen_flags: <defaults>
</compile_context>

<pallas_src>
import jax
import jax.numpy as jnp
from jax.experimental import pallas as pl
from jax.experimental.pallas import tpu as pltpu


def visual_conv1d_kernel(x_ref, dw_ref, pw_ref, s1_ref, sh1_ref, pwb_ref,
                         alpha_ref, o_ref):
    # x_ref view: (T, C) — one batch element, channels lane-dense.
    x = x_ref[...]
    T = x.shape[0]

    # ReLU + BatchNorm1d #1 (eval mode, pre-folded to per-channel scale/shift).
    y = jnp.maximum(x, 0.0) * s1_ref[...] + sh1_ref[...]

    # Depthwise Conv1d (k=3, pad=1, groups=C): three shifted taps along T.
    zero = jnp.zeros((1, y.shape[1]), y.dtype)
    y_pad = jnp.concatenate([zero, y, zero], axis=0)          # (T+2, C)
    z = (y_pad[0:T, :]     * dw_ref[0:1, :]
         + y_pad[1:T + 1, :] * dw_ref[1:2, :]
         + y_pad[2:T + 2, :] * dw_ref[2:3, :])

    # PReLU (single shared parameter).
    z = jnp.where(z > 0, z, alpha_ref[...] * z)

    # Pointwise Conv1d on the MXU. BatchNorm #2 is pre-folded into pw_ref /
    # pwb_ref. Contract z's channel axis with the weight's C_in axis
    # ("trans_b"), so the (C_out, C_in) PyTorch weight is used as-is.
    out = jax.lax.dot_general(
        z, pw_ref[...], (((1,), (1,)), ((), ())),
        preferred_element_type=jnp.float32,
        precision=jax.lax.Precision.HIGHEST,
    ) + pwb_ref[...]

    # Residual connection.
    o_ref[...] = (out + x).astype(o_ref.dtype)


def visual_conv1d_forward(x, dw_w, pw_w, gamma1, beta1, mean1, var1,
                          gamma2, beta2, mean2, var2, alpha, eps=1e-5):
    """x: (B, C, T); dw_w: (C, 1, 3); pw_w: (C, C, 1); BN params: (C,); alpha scalar."""
    B, C, T = x.shape

    # Fold BatchNorm1d #1 (eval mode) into a per-channel affine (applied after ReLU).
    s1 = gamma1 * jax.lax.rsqrt(var1 + eps)               # (C,)
    sh1 = beta1 - mean1 * s1                               # (C,)

    # Fold BatchNorm1d #2 into the pointwise conv:
    #   pw @ (s2*z + sh2) = (pw * s2[cols]) @ z + pw @ sh2
    s2 = gamma2 * jax.lax.rsqrt(var2 + eps)
    sh2 = beta2 - mean2 * s2
    pw = pw_w.reshape(C, C)                                # (C_out, C_in)
    pw_folded = pw * s2[None, :]
    pw_bias = pw @ sh2                                     # (C_out,)

    # Depthwise taps: (3, C) so each tap is a lane-dense (1, C) row.
    dw = jnp.transpose(dw_w.reshape(C, 3), (1, 0))

    # Lane-dense activation layout: channels (512) on the lane axis.
    x_tc = jnp.transpose(x, (0, 2, 1))                     # (B, T, C)

    out_tc = pl.pallas_call(
        visual_conv1d_kernel,
        out_shape=jax.ShapeDtypeStruct((B, T, C), x.dtype),
        grid_spec=pltpu.PrefetchScalarGridSpec(
            num_scalar_prefetch=0,
            grid=(B,),
            in_specs=[
                pl.BlockSpec((None, T, C), lambda b: (b, 0, 0)),   # x (one batch / step)
                pl.BlockSpec((3, C), lambda b: (0, 0)),            # depthwise taps
                pl.BlockSpec((C, C), lambda b: (0, 0)),            # pointwise weight (BN2 folded)
                pl.BlockSpec((1, C), lambda b: (0, 0)),            # BN1 scale
                pl.BlockSpec((1, C), lambda b: (0, 0)),            # BN1 shift
                pl.BlockSpec((1, C), lambda b: (0, 0)),            # pointwise bias (from BN2)
                pl.BlockSpec((1, 1), lambda b: (0, 0)),            # PReLU alpha
            ],
            out_specs=pl.BlockSpec((None, T, C), lambda b: (b, 0, 0)),
        ),
        compiler_params=pltpu.CompilerParams(
            dimension_semantics=("parallel",),    # B>=2 keeps both v7x TCs busy
        ),
    )(x_tc, dw, pw_folded,
      s1.reshape(1, C), sh1.reshape(1, C), pw_bias.reshape(1, C),
      jnp.asarray(alpha, jnp.float32).reshape(1, 1))

    return jnp.transpose(out_tc, (0, 2, 1))                # back to (B, C, T)


def visual_conv1d_reference(x, dw_w, pw_w, gamma1, beta1, mean1, var1,
                            gamma2, beta2, mean2, var2, alpha, eps=1e-5):
    """Pure-JAX reference mirroring the PyTorch forward (eval-mode BatchNorm)."""
    C = x.shape[1]
    y = jax.nn.relu(x)
    y = ((y - mean1[None, :, None]) * jax.lax.rsqrt(var1[None, :, None] + eps)
         * gamma1[None, :, None] + beta1[None, :, None])
    y = jax.lax.conv_general_dilated(
        y, dw_w, window_strides=(1,), padding=[(1, 1)],
        dimension_numbers=('NCH', 'OIH', 'NCH'),
        feature_group_count=C, precision=jax.lax.Precision.HIGHEST)
    y = jnp.where(y > 0, y, alpha * y)
    y = ((y - mean2[None, :, None]) * jax.lax.rsqrt(var2[None, :, None] + eps)
         * gamma2[None, :, None] + beta2[None, :, None])
    y = jax.lax.conv_general_dilated(
        y, pw_w, window_strides=(1,), padding=[(0, 0)],
        dimension_numbers=('NCH', 'OIH', 'NCH'),
        precision=jax.lax.Precision.HIGHEST)
    return y + x


if __name__ == "__main__":
    key = jax.random.PRNGKey(0)
    B, C, T = 2, 512, 16                 # C is fixed at 512 by the module definition
    ks = jax.random.split(key, 11)

    x = jax.random.normal(ks[0], (B, C, T), dtype=jnp.float32)

    # Conv weights with PyTorch-style uniform init bounds.
    bound_dw = 1.0 / (1 * 3) ** 0.5
    bound_pw = 1.0 / (C * 1) ** 0.5
    dw_w = jax.random.uniform(ks[1], (C, 1, 3), jnp.float32, -bound_dw, bound_dw)
    pw_w = jax.random.uniform(ks[2], (C, C, 1), jnp.float32, -bound_pw, bound_pw)

    # BatchNorm (eval-mode) affine parameters and running statistics.
    gamma1 = jax.random.uniform(ks[3], (C,), jnp.float32, 0.5, 1.5)
    beta1 = 0.1 * jax.random.normal(ks[4], (C,), jnp.float32)
    mean1 = 0.1 * jax.random.normal(ks[5], (C,), jnp.float32)
    var1 = jax.random.uniform(ks[6], (C,), jnp.float32, 0.5, 1.5)
    gamma2 = jax.random.uniform(ks[7], (C,), jnp.float32, 0.5, 1.5)
    beta2 = 0.1 * jax.random.normal(ks[8], (C,), jnp.float32)
    mean2 = 0.1 * jax.random.normal(ks[9], (C,), jnp.float32)
    var2 = jax.random.uniform(ks[10], (C,), jnp.float32, 0.5, 1.5)

    alpha = jnp.float32(0.25)            # nn.PReLU() default single parameter

    out = visual_conv1d_forward(x, dw_w, pw_w, gamma1, beta1, mean1, var1,
                                gamma2, beta2, mean2, var2, alpha)
    out = jax.block_until_ready(out)

    ref = visual_conv1d_reference(x, dw_w, pw_w, gamma1, beta1, mean1, var1,
                                  gamma2, beta2, mean2, var2, alpha)
    assert out.shape == (B, C, T)
    assert jnp.allclose(out, ref, atol=2e-3, rtol=2e-3), \
        float(jnp.max(jnp.abs(out - ref)))

    print("KERNEL_OK")
</pallas_src>

<mosaic_0001>
module attributes {stable_mosaic.version = 11 : i64} {
  func.func @visual_conv1d_kernel(%arg0: i32, %arg1: memref<1x16x512xf32, #tpu.memory_space<vmem>>, %arg2: memref<3x512xf32, #tpu.memory_space<vmem>>, %arg3: memref<512x512xf32, #tpu.memory_space<vmem>>, %arg4: memref<1x512xf32, #tpu.memory_space<vmem>>, %arg5: memref<1x512xf32, #tpu.memory_space<vmem>>, %arg6: memref<1x512xf32, #tpu.memory_space<vmem>>, %arg7: memref<1x1xf32, #tpu.memory_space<vmem>>, %arg8: memref<1x16x512xf32, #tpu.memory_space<vmem>>) attributes {dimension_semantics = [#tpu.dimension_semantics<parallel>], iteration_bounds = array<i64: 2>, scalar_prefetch = 0 : i64, scratch_operands = 0 : i64, tpu.core_type = #tpu.core_type<tc>, window_params = [{transform_indices = @transform_0, window_bounds = array<i64: 1, 16, 512>}, {pipeline_mode = #tpu.pipeline_mode<synchronous>, transform_indices = @transform_1, window_bounds = array<i64: 3, 512>}, {pipeline_mode = #tpu.pipeline_mode<synchronous>, transform_indices = @transform_2, window_bounds = array<i64: 512, 512>}, {pipeline_mode = #tpu.pipeline_mode<synchronous>, transform_indices = @transform_3, window_bounds = array<i64: 1, 512>}, {pipeline_mode = #tpu.pipeline_mode<synchronous>, transform_indices = @transform_4, window_bounds = array<i64: 1, 512>}, {pipeline_mode = #tpu.pipeline_mode<synchronous>, transform_indices = @transform_5, window_bounds = array<i64: 1, 512>}, {pipeline_mode = #tpu.pipeline_mode<synchronous>, transform_indices = @transform_6, window_bounds = array<i64: 1, 1>}, {transform_indices = @transform_7, window_bounds = array<i64: 1, 16, 512>}]} {
    %c0 = arith.constant 0 : index
    %c0_0 = arith.constant 0 : index
    %c0_1 = arith.constant 0 : index
    %0 = vector.load %arg1[%c0, %c0_0, %c0_1] : memref<1x16x512xf32, #tpu.memory_space<vmem>>, vector<1x16x512xf32>
    %1 = vector.shape_cast %0 : vector<1x16x512xf32> to vector<16x512xf32>
    %cst = arith.constant 0.000000e+00 : f32
    %2 = vector.broadcast %cst : f32 to vector<16x512xf32>
    %3 = arith.maximumf %1, %2 : vector<16x512xf32>
    %c0_2 = arith.constant 0 : index
    %c0_3 = arith.constant 0 : index
    %4 = vector.load %arg4[%c0_2, %c0_3] : memref<1x512xf32, #tpu.memory_space<vmem>>, vector<1x512xf32>
    %5 = vector.broadcast %4 : vector<1x512xf32> to vector<16x512xf32>
    %6 = arith.mulf %3, %5 : vector<16x512xf32>
    %c0_4 = arith.constant 0 : index
    %c0_5 = arith.constant 0 : index
    %7 = vector.load %arg5[%c0_4, %c0_5] : memref<1x512xf32, #tpu.memory_space<vmem>>, vector<1x512xf32>
    %8 = vector.broadcast %7 : vector<1x512xf32> to vector<16x512xf32>
    %9 = arith.addf %6, %8 : vector<16x512xf32>
    %cst_6 = arith.constant 0.000000e+00 : f32
    %10 = vector.broadcast %cst_6 : f32 to vector<1x512xf32>
    %11 = tpu.concatenate %10, %9, %10 in 0 : vector<1x512xf32>, vector<16x512xf32>, vector<1x512xf32> -> vector<18x512xf32>
    %12 = vector.extract_strided_slice %11 {offsets = [0, 0], sizes = [16, 512], strides = [1, 1]} : vector<18x512xf32> to vector<16x512xf32>
    %c0_7 = arith.constant 0 : index
    %c0_8 = arith.constant 0 : index
    %13 = vector.load %arg2[%c0_7, %c0_8] : memref<3x512xf32, #tpu.memory_space<vmem>>, vector<1x512xf32>
    %14 = vector.broadcast %13 : vector<1x512xf32> to vector<16x512xf32>
    %15 = arith.mulf %12, %14 : vector<16x512xf32>
    %16 = vector.extract_strided_slice %11 {offsets = [1, 0], sizes = [16, 512], strides = [1, 1]} : vector<18x512xf32> to vector<16x512xf32>
    %c1 = arith.constant 1 : index
    %c0_9 = arith.constant 0 : index
    %17 = vector.load %arg2[%c1, %c0_9] : memref<3x512xf32, #tpu.memory_space<vmem>>, vector<1x512xf32>
    %18 = vector.broadcast %17 : vector<1x512xf32> to vector<16x512xf32>
    %19 = arith.mulf %16, %18 : vector<16x512xf32>
    %20 = arith.addf %15, %19 : vector<16x512xf32>
    %21 = vector.extract_strided_slice %11 {offsets = [2, 0], sizes = [16, 512], strides = [1, 1]} : vector<18x512xf32> to vector<16x512xf32>
    %c2 = arith.constant 2 : index
    %c0_10 = arith.constant 0 : index
    %22 = vector.load %arg2[%c2, %c0_10] : memref<3x512xf32, #tpu.memory_space<vmem>>, vector<1x512xf32>
    %23 = vector.broadcast %22 : vector<1x512xf32> to vector<16x512xf32>
    %24 = arith.mulf %21, %23 : vector<16x512xf32>
    %25 = arith.addf %20, %24 : vector<16x512xf32>
    %cst_11 = arith.constant 0.000000e+00 : f32
    %26 = vector.broadcast %cst_11 : f32 to vector<16x512xf32>
    %27 = arith.cmpf ogt, %25, %26 : vector<16x512xf32>
    %c0_12 = arith.constant 0 : index
    %c0_13 = arith.constant 0 : index
    %28 = vector.load %arg7[%c0_12, %c0_13] : memref<1x1xf32, #tpu.memory_space<vmem>>, vector<1x1xf32>
    %29 = vector.broadcast %28 : vector<1x1xf32> to vector<16x512xf32>
    %30 = arith.mulf %29, %25 : vector<16x512xf32>
    %31 = arith.select %27, %25, %30 : vector<16x512xi1>, vector<16x512xf32>
    %c0_14 = arith.constant 0 : index
    %c0_15 = arith.constant 0 : index
    %32 = vector.load %arg3[%c0_14, %c0_15] : memref<512x512xf32, #tpu.memory_space<vmem>>, vector<512x512xf32>
    %cst_16 = arith.constant dense<0.000000e+00> : vector<16x512xf32>
    %33 = tpu.matmul %31, %32, %cst_16 {dimension_numbers = #tpu.dot_dimension_numbers<[1], [1], [0], [0], [0, 0, 1, 0], [], []>, precision = #tpu.contract_precision<fp32>} : vector<16x512xf32>, vector<512x512xf32>, vector<16x512xf32> -> vector<16x512xf32>
    %c0_17 = arith.constant 0 : index
    %c0_18 = arith.constant 0 : index
    %34 = vector.load %arg6[%c0_17, %c0_18] : memref<1x512xf32, #tpu.memory_space<vmem>>, vector<1x512xf32>
    %35 = vector.broadcast %34 : vector<1x512xf32> to vector<16x512xf32>
    %36 = arith.addf %33, %35 : vector<16x512xf32>
    %37 = arith.addf %36, %1 : vector<16x512xf32>
    %c0_19 = arith.constant 0 : index
    %c0_20 = arith.constant 0 : index
    %c0_21 = arith.constant 0 : index
    %38 = vector.load %arg8[%c0_19, %c0_20, %c0_21] : memref<1x16x512xf32, #tpu.memory_space<vmem>>, vector<1x16x512xf32>
    %39 = vector.shape_cast %38 : vector<1x16x512xf32> to vector<16x512xf32>
    %40 = vector.shape_cast %37 : vector<16x512xf32> to vector<1x16x512xf32>
    tpu.vector_store %arg8[%c0_19, %c0_20, %c0_21], %40 {strides = array<i32>} : memref<1x16x512xf32, #tpu.memory_space<vmem>>, vector<1x16x512xf32>,
    return
  }
  func.func @transform_0(%arg0: i32) -> (i32, i32, i32) {
    %c0_i32 = arith.constant 0 : i32
    %c0_i32_0 = arith.constant 0 : i32
    %c0_i32_1 = arith.constant 0 : i32
    return %arg0, %c0_i32, %c0_i32_0 : i32, i32, i32
  }
  func.func @transform_1(%arg0: i32) -> (i32, i32) {
    %c0_i32 = arith.constant 0 : i32
    %c0_i32_0 = arith.constant 0 : i32
    %c0_i32_1 = arith.constant 0 : i32
    return %c0_i32, %c0_i32_0 : i32, i32
  }
  func.func @transform_2(%arg0: i32) -> (i32, i32) {
    %c0_i32 = arith.constant 0 : i32
    %c0_i32_0 = arith.constant 0 : i32
    %c0_i32_1 = arith.constant 0 : i32
    return %c0_i32, %c0_i32_0 : i32, i32
  }
  func.func @transform_3(%arg0: i32) -> (i32, i32) {
    %c0_i32 = arith.constant 0 : i32
    %c0_i32_0 = arith.constant 0 : i32
    %c0_i32_1 = arith.constant 0 : i32
    return %c0_i32, %c0_i32_0 : i32, i32
  }
  func.func @transform_4(%arg0: i32) -> (i32, i32) {
    %c0_i32 = arith.constant 0 : i32
    %c0_i32_0 = arith.constant 0 : i32
    %c0_i32_1 = arith.constant 0 : i32
    return %c0_i32, %c0_i32_0 : i32, i32
  }
  func.func @transform_5(%arg0: i32) -> (i32, i32) {
    %c0_i32 = arith.constant 0 : i32
    %c0_i32_0 = arith.constant 0 : i32
    %c0_i32_1 = arith.constant 0 : i32
    return %c0_i32, %c0_i32_0 : i32, i32
  }
  func.func @transform_6(%arg0: i32) -> (i32, i32) {
    %c0_i32 = arith.constant 0 : i32
    %c0_i32_0 = arith.constant 0 : i32
    %c0_i32_1 = arith.constant 0 : i32
    return %c0_i32, %c0_i32_0 : i32, i32
  }
  func.func @transform_7(%arg0: i32) -> (i32, i32, i32) {
    %c0_i32 = arith.constant 0 : i32
    %c0_i32_0 = arith.constant 0 : i32
    %c0_i32_1 = arith.constant 0 : i32
    return %arg0, %c0_i32, %c0_i32_0 : i32, i32, i32
  }
}

</mosaic_0001>

<llo_original>
// kernel: tpu_custom_call.1
$region0: #{tpu_custom_call.1}
  #allocation0 [shape = 'u32[]', space=smem, size = 0x4, offset = 0x4, fixed_abs, tag = 'smem constant byte address 0x4 - core index']
  #allocation1 [shape = 'u32[144,128]{1,0:T(1,128)}', space=vmem, size = 0x12000, scoped, tag = 'internal scratch']
  #allocation2 [shape = 'f32[1,1]{1,0:T(1,128)S(1)}', space=vmem, size = 0x200, scoped, tag = 'scoped memory for tpu_custom_call.1']
  %s0 = inlined_call_operand.hbm [shape: f32[2,16,512], index: 0, kind: input, shape index: {}]
  %s1 = inlined_call_operand.hbm [shape: f32[3,512], index: 1, kind: input, shape index: {}]
  %s2 = inlined_call_operand.hbm [shape: f32[512,512], index: 2, kind: input, shape index: {}]
  %s3 = inlined_call_operand.vmem [shape: f32[1,512], index: 3, kind: input, shape index: {}]
  %s4 = inlined_call_operand.vmem [shape: f32[1,512], index: 4, kind: input, shape index: {}]
  %s5 = inlined_call_operand.hbm [shape: f32[1,512], index: 5, kind: input, shape index: {}]
  %s6 = inlined_call_operand.<no memory space> [shape: f32[1,1], index: 6, kind: input, shape index: {}]
  %s7 = inlined_call_operand.hbm [shape: f32[2,16,512], index: 7, kind: output, shape index: {}]
  %s8 = sld [smem:[#allocation0]]
  $region77: #{tpu_custom_call.1} parent=0
    _
  %s10 = ssub.s32 1, %s8
  %s11 = scalar_select 0, %s10, %s8
  %v12 = vstv %s6
  %13 = vst [vmem:[#allocation2] sm:$0x1] %v12
  $region1: #{tpu_custom_call.1} parent=0
    #allocation3 [shape = 'u8[65536]{0}', space=vmem, size = 0x10000, scoped, tag = 'input window, operand 0']
    #allocation4 [shape = 's32[2]{0}', space=sflag, size = 0x8, scoped, tag = 'scoped memory for tpu_custom_call.1']
    #allocation5 [shape = 's32[2]{0}', space=sflag, size = 0x8, scoped, tag = 'scoped memory for tpu_custom_call.1']
    #allocation6 [shape = 'u8[8192]{0}', space=vmem, size = 0x2000, scoped, tag = 'input window, operand 1, single buffered']
    #allocation7 [shape = 's32[1]{0}', space=sflag, size = 0x4, scoped, tag = 'scoped memory for tpu_custom_call.1']
    #allocation8 [shape = 'u8[1048576]{0}', space=vmem, size = 0x100000, scoped, tag = 'input window, operand 2, single buffered']
    #allocation9 [shape = 'u8[2048]{0}', space=vmem, size = 0x800, scoped, tag = 'input window, operand 5, single buffered']
    #allocation10 [shape = 's32[1]{0}', space=sflag, size = 0x4, scoped, tag = 'scoped memory for tpu_custom_call.1']
    #allocation11 [shape = 'u8[65536]{0}', space=vmem, size = 0x10000, scoped, tag = 'output window, operand 0']
    %14 = vsyncpa [#allocation4], 0
    %s15 = scalar_lea.sflag [#allocation4], 1
    %16 = vsyncpa %s15, 0
    %17 = vsyncpa [#allocation7], 0
    %18 = vsyncpa [#allocation10], 0
    %19 = vsyncpa [#allocation5], 0
    %s20 = scalar_lea.sflag [#allocation5], 1
    %21 = vsyncpa %s20, 0
    loop: start=0, step=1, limit=4
    $region2: #{tpu_custom_call.1} parent=1 // loop_pre_header
      _
    $region3: #{tpu_custom_call.1} parent=1 // loop_header
      %s23 = sphi 0, %s27
      %p24 = scmp.ge.s32.totalorder %s23, 4
      %s33 = sphi 0, %s35
      %s36 = sphi 0, %s33
      %s37 = sphi 0, %s36
      %s53 = sphi 0, %s37
      %s57 = sphi 0, %s57
      %s59 = sphi 0, %s57
      %s60 = sphi 0, %s59
      %s74 = sphi 0, %s60
      %s78 = sphi 0, %s78
      %s80 = sphi 0, %s78
      %s81 = sphi 0, %s80
      %s95 = sphi 0, %s81
      %s99 = sphi 0, %s99
      %s101 = sphi 0, %s99
      %s102 = sphi 0, %s101
      %s116 = sphi 0, %s102
      %s120 = sphi 0, %s120
      %s122 = sphi 0, %s120
      %s123 = sphi 0, %s122
      %s137 = sphi 0, %s123
      %s141 = sphi 0, %s141
      %s143 = sphi 0, %s141
      %s144 = sphi 0, %s143
      %s158 = sphi 0, %s144
      %s162 = sphi 0, %s162
      %s164 = sphi 0, %s162
      %s165 = sphi 0, %s164
      %s179 = sphi 0, %s165
      %s185 = sphi 0, %s187
      %s188 = sphi 0, %s185
      %s189 = sphi 0, %s188
      %s205 = sphi 0, %s189
    $region4: #{tpu_custom_call.1} parent=1 // loop_header_branch
      %26 = sbr.rel (%p24) target = $region8
    $region5: #{tpu_custom_call.1} parent=1 // loop_body
      %s28 = ssub.s32 %s23, 1
      %s29 = ssub.s32 %s23, 2
      %s30 = sadd.s32 %s23, 1
      %s31 = ssub.s32 %s23, %s30
      %p32 = scmp.eq.s32.totalorder %s31, 0
      %s34 = sadd.s32 %s33, 1
      %s35 = scalar_select %p32, %s33, %s34
      %p38 = pneg %p32
      %p39 = scmp.eq.s32.totalorder %s23, 1
      %p40 = por %p38, %p39
      %p41 = scmp.ne.s32.totalorder %s33, %s36
      %p42 = scmp.eq.s32.totalorder %s23, 0
      %p43 = por %p41, %p42
      %p44 = scmp.ne.s32.totalorder %s33, %s36
      %p45 = scmp.eq.s32.totalorder %s28, 1
      %p46 = por %p44, %p45
      %p47 = scmp.ne.s32.totalorder %s36, %s37
      %p48 = scmp.eq.s32.totalorder %s28, 0
      %p49 = por %p47, %p48
      %p50 = scmp.ne.s32.totalorder %s36, %s37
      %p51 = scmp.eq.s32.totalorder %s29, 1
      %p52 = por %p50, %p51
      %p54 = scmp.ne.s32.totalorder %s37, %s53
      %p55 = scmp.eq.s32.totalorder %s29, 0
      %p56 = por %p54, %p55
      %s58 = sadd.s32 %s57, 1
      %p61 = scmp.eq.s32.totalorder %s23, 1
      %p62 = scmp.ne.s32.totalorder %s57, %s59
      %p63 = scmp.eq.s32.totalorder %s23, 0
      %p64 = por %p62, %p63
      %p65 = scmp.ne.s32.totalorder %s57, %s59
      %p66 = scmp.eq.s32.totalorder %s28, 1
      %p67 = por %p65, %p66
      %p68 = scmp.ne.s32.totalorder %s59, %s60
      %p69 = scmp.eq.s32.totalorder %s28, 0
      %p70 = por %p68, %p69
      %p71 = scmp.ne.s32.totalorder %s59, %s60
      %p72 = scmp.eq.s32.totalorder %s29, 1
      %p73 = por %p71, %p72
      %p75 = scmp.ne.s32.totalorder %s60, %s74
      %p76 = scmp.eq.s32.totalorder %s29, 0
      %p77 = por %p75, %p76
      %s79 = sadd.s32 %s78, 1
      %p82 = scmp.eq.s32.totalorder %s23, 1
      %p83 = scmp.ne.s32.totalorder %s78, %s80
      %p84 = scmp.eq.s32.totalorder %s23, 0
      %p85 = por %p83, %p84
      %p86 = scmp.ne.s32.totalorder %s78, %s80
      %p87 = scmp.eq.s32.totalorder %s28, 1
      %p88 = por %p86, %p87
      %p89 = scmp.ne.s32.totalorder %s80, %s81
      %p90 = scmp.eq.s32.totalorder %s28, 0
      %p91 = por %p89, %p90
      %p92 = scmp.ne.s32.totalorder %s80, %s81
      %p93 = scmp.eq.s32.totalorder %s29, 1
      %p94 = por %p92, %p93
      %p96 = scmp.ne.s32.totalorder %s81, %s95
      %p97 = scmp.eq.s32.totalorder %s29, 0
      %p98 = por %p96, %p97
      %s100 = sadd.s32 %s99, 1
      %p103 = scmp.eq.s32.totalorder %s23, 1
      %p104 = scmp.ne.s32.totalorder %s99, %s101
      %p105 = scmp.eq.s32.totalorder %s23, 0
      %p106 = por %p104, %p105
      %p107 = scmp.ne.s32.totalorder %s99, %s101
      %p108 = scmp.eq.s32.totalorder %s28, 1
      %p109 = por %p107, %p108
      %p110 = scmp.ne.s32.totalorder %s101, %s102
      %p111 = scmp.eq.s32.totalorder %s28, 0
      %p112 = por %p110, %p111
      %p113 = scmp.ne.s32.totalorder %s101, %s102
      %p114 = scmp.eq.s32.totalorder %s29, 1
      %p115 = por %p113, %p114
      %p117 = scmp.ne.s32.totalorder %s102, %s116
      %p118 = scmp.eq.s32.totalorder %s29, 0
      %p119 = por %p117, %p118
      %s121 = sadd.s32 %s120, 1
      %p124 = scmp.eq.s32.totalorder %s23, 1
      %p125 = scmp.ne.s32.totalorder %s120, %s122
      %p126 = scmp.eq.s32.totalorder %s23, 0
      %p127 = por %p125, %p126
      %p128 = scmp.ne.s32.totalorder %s120, %s122
      %p129 = scmp.eq.s32.totalorder %s28, 1
      %p130 = por %p128, %p129
      %p131 = scmp.ne.s32.totalorder %s122, %s123
      %p132 = scmp.eq.s32.totalorder %s28, 0
      %p133 = por %p131, %p132
      %p134 = scmp.ne.s32.totalorder %s122, %s123
      %p135 = scmp.eq.s32.totalorder %s29, 1
      %p136 = por %p134, %p135
      %p138 = scmp.ne.s32.totalorder %s123, %s137
      %p139 = scmp.eq.s32.totalorder %s29, 0
      %p140 = por %p138, %p139
      %s142 = sadd.s32 %s141, 1
      %p145 = scmp.eq.s32.totalorder %s23, 1
      %p146 = scmp.ne.s32.totalorder %s141, %s143
      %p147 = scmp.eq.s32.totalorder %s23, 0
      %p148 = por %p146, %p147
      %p149 = scmp.ne.s32.totalorder %s141, %s143
      %p150 = scmp.eq.s32.totalorder %s28, 1
      %p151 = por %p149, %p150
      %p152 = scmp.ne.s32.totalorder %s143, %s144
      %p153 = scmp.eq.s32.totalorder %s28, 0
      %p154 = por %p152, %p153
      %p155 = scmp.ne.s32.totalorder %s143, %s144
      %p156 = scmp.eq.s32.totalorder %s29, 1
      %p157 = por %p155, %p156
      %p159 = scmp.ne.s32.totalorder %s144, %s158
      %p160 = scmp.eq.s32.totalorder %s29, 0
      %p161 = por %p159, %p160
      %s163 = sadd.s32 %s162, 1
      %p166 = scmp.eq.s32.totalorder %s23, 1
      %p167 = scmp.ne.s32.totalorder %s162, %s164
      %p168 = scmp.eq.s32.totalorder %s23, 0
      %p169 = por %p167, %p168
      %p170 = scmp.ne.s32.totalorder %s162, %s164
      %p171 = scmp.eq.s32.totalorder %s28, 1
      %p172 = por %p170, %p171
      %p173 = scmp.ne.s32.totalorder %s164, %s165
      %p174 = scmp.eq.s32.totalorder %s28, 0
      %p175 = por %p173, %p174
      %p176 = scmp.ne.s32.totalorder %s164, %s165
      %p177 = scmp.eq.s32.totalorder %s29, 1
      %p178 = por %p176, %p177
      %p180 = scmp.ne.s32.totalorder %s165, %s179
      %p181 = scmp.eq.s32.totalorder %s29, 0
      %p182 = por %p180, %p181
      %s183 = ssub.s32 %s23, %s30
      %p184 = scmp.eq.s32.totalorder %s183, 0
      %s186 = sadd.s32 %s185, 1
      %s187 = scalar_select %p184, %s185, %s186
      %p190 = pneg %p184
      %p191 = scmp.eq.s32.totalorder %s23, 1
      %p192 = por %p190, %p191
      %p193 = scmp.ne.s32.totalorder %s185, %s188
      %p194 = scmp.eq.s32.totalorder %s23, 0
      %p195 = por %p193, %p194
      %p196 = scmp.ne.s32.totalorder %s185, %s188
      %p197 = scmp.eq.s32.totalorder %s28, 1
      %p198 = por %p196, %p197
      %p199 = scmp.ne.s32.totalorder %s188, %s189
      %p200 = scmp.eq.s32.totalorder %s28, 0
      %p201 = por %p199, %p200
      %p202 = scmp.ne.s32.totalorder %s188, %s189
      %p203 = scmp.eq.s32.totalorder %s29, 1
      %p204 = por %p202, %p203
      %p206 = scmp.ne.s32.totalorder %s189, %s205
      %p207 = scmp.eq.s32.totalorder %s29, 0
      %p208 = por %p206, %p207
      %p209 = scmp.le.s32.totalorder 1, %s23
      %p210 = scmp.lt.s32.totalorder %s23, 3
      %p211 = pnand %p209, %p210
      %p212 = pneg %p211
      // Predicated region
      $region9: #{tpu_custom_call.1} parent=5 // pred_check
        _
      $region10: #{tpu_custom_call.1} parent=5 // pred_check_branch
        %214 = sbr.rel (%p211) target = $region12
      $region11: #{tpu_custom_call.1} parent=5 // pred_region
        %s215 = ssub.s32 %s23, 1
        // Predicated region
        $region13: #{tpu_custom_call.1} parent=11 // pred_check
          %p216 = pneg %p70
        $region14: #{tpu_custom_call.1} parent=11 // pred_check_branch
          %218 = sbr.rel (%p216) target = $region16
        $region15: #{tpu_custom_call.1} parent=11 // pred_region
          %s220 = ssub.s32 256, 256
          %221 = vsyncadd [#allocation7], %s220
          %s223 = sshll.u32 [#allocation6], 4
          %s224 = int_to_ptr.vmem [resolvable:$true] %s223
          %226 = dma.hbm_to_vmem [thread:$0]  %s1, 256, %s224, [#allocation7]
        $region16: #{tpu_custom_call.1} parent=11 // pred_fallthru
          _
        // Predicated region
        $region17: #{tpu_custom_call.1} parent=11 // pred_check
          %p227 = pneg %p91
        $region18: #{tpu_custom_call.1} parent=11 // pred_check_branch
          %229 = sbr.rel (%p227) target = $region20
        $region19: #{tpu_custom_call.1} parent=11 // pred_region
          %s231 = ssub.s32 32768, 32768
          %232 = vsyncadd [#allocation7], %s231
          %s233 = sshll.u32 [#allocation8], 4
          %s234 = int_to_ptr.vmem [resolvable:$true] %s233
          %239 = dma.hbm_to_vmem [thread:$0]  %s2, 32768, %s234, [#allocation7], 512, 512, 32
        $region20: #{tpu_custom_call.1} parent=11 // pred_fallthru
          _
        // Predicated region
        $region21: #{tpu_custom_call.1} parent=11 // pred_check
          %p240 = pneg %p112
        $region22: #{tpu_custom_call.1} parent=11 // pred_check_branch
          %242 = sbr.rel (%p240) target = $region24
        $region23: #{tpu_custom_call.1} parent=11 // pred_region
          _
        $region24: #{tpu_custom_call.1} parent=11 // pred_fallthru
          _
        // Predicated region
        $region25: #{tpu_custom_call.1} parent=11 // pred_check
          %p243 = pneg %p133
        $region26: #{tpu_custom_call.1} parent=11 // pred_check_branch
          %245 = sbr.rel (%p243) target = $region28
        $region27: #{tpu_custom_call.1} parent=11 // pred_region
          _
        $region28: #{tpu_custom_call.1} parent=11 // pred_fallthru
          _
        // Predicated region
        $region29: #{tpu_custom_call.1} parent=11 // pred_check
          %p246 = pneg %p154
        $region30: #{tpu_custom_call.1} parent=11 // pred_check_branch
          %248 = sbr.rel (%p246) target = $region32
        $region31: #{tpu_custom_call.1} parent=11 // pred_region
          %s250 = ssub.s32 64, 64
          %251 = vsyncadd [#allocation10], %s250
          %s253 = sshll.u32 [#allocation9], 4
          %s254 = int_to_ptr.vmem [resolvable:$true] %s253
          %256 = dma.hbm_to_vmem [thread:$0]  %s5, 64, %s254, [#allocation10]
        $region32: #{tpu_custom_call.1} parent=11 // pred_fallthru
          _
        // Predicated region
        $region33: #{tpu_custom_call.1} parent=11 // pred_check
          %p257 = pneg %p175
        $region34: #{tpu_custom_call.1} parent=11 // pred_check_branch
          %259 = sbr.rel (%p257) target = $region36
        $region35: #{tpu_custom_call.1} parent=11 // pred_region
          _
        $region36: #{tpu_custom_call.1} parent=11 // pred_fallthru
          _
      $region12: #{tpu_custom_call.1} parent=5 // pred_fallthru
        _
      %p260 = scmp.lt.s32.totalorder %s23, 2
      // Predicated region
      $region37: #{tpu_custom_call.1} parent=5 // pred_check
        %p261 = pneg %p260
      $region38: #{tpu_custom_call.1} parent=5 // pred_check_branch
        %263 = sbr.rel (%p261) target = $region40
      $region39: #{tpu_custom_call.1} parent=5 // pred_region
        // Predicated region
        $region41: #{tpu_custom_call.1} parent=39 // pred_check
          %p264 = pneg %p43
        $region42: #{tpu_custom_call.1} parent=39 // pred_check_branch
          %266 = sbr.rel (%p264) target = $region44
        $region43: #{tpu_custom_call.1} parent=39 // pred_region
          %s267 = sand.u32 %s33, 1
          %s268 = scalar_lea.sflag [#allocation4], %s267
          %s269 = sand.u32 %s33, 1
          %s270 = smul.addr %s269, 64
          %s271 = scalar_lea.vmem [#allocation3], %s270
          %s273 = ssub.s32 1024, 1024
          %274 = vsyncadd %s268, %s273
          %s275 = smul.addr %s23, 8
          %s276 = smul.addr %s275, 128
          %s277 = scalar_lea.hbm %s0, %s276
          %s278 = sshll.u32 %s271, 4
          %s279 = int_to_ptr.vmem [resolvable:$true] %s278
          %284 = dma.hbm_to_vmem [thread:$0]  %s277, 1024, %s279, %s268, 512, 512, 32
        $region44: #{tpu_custom_call.1} parent=39 // pred_fallthru
          _
      $region40: #{tpu_custom_call.1} parent=5 // pred_fallthru
        _
      %p285 = scmp.le.s32.totalorder 1, %s23
      %p286 = scmp.lt.s32.totalorder %s23, 3
      %p287 = pnand %p285, %p286
      %p288 = pneg %p287
      // Predicated region
      $region45: #{tpu_custom_call.1} parent=5 // pred_check
        _
      $region46: #{tpu_custom_call.1} parent=5 // pred_check_branch
        %290 = sbr.rel (%p287) target = $region48
      $region47: #{tpu_custom_call.1} parent=5 // pred_region
        %s291 = ssub.s32 %s23, 1
        %s292 = sand.u32 %s36, 1
        %s293 = scalar_lea.sflag [#allocation4], %s292
        %s294 = sand.u32 %s36, 1
        %s295 = smul.addr %s294, 64
        %s296 = scalar_lea.vmem [#allocation3], %s295
        // Predicated region
        $region49: #{tpu_custom_call.1} parent=47 // pred_check
          %p297 = pneg %p49
        $region50: #{tpu_custom_call.1} parent=47 // pred_check_branch
          %299 = sbr.rel (%p297) target = $region52
        $region51: #{tpu_custom_call.1} parent=47 // pred_region
          %300 = dma.done %s293, 1024
        $region52: #{tpu_custom_call.1} parent=47 // pred_fallthru
          _
        // Predicated region
        $region53: #{tpu_custom_call.1} parent=47 // pred_check
          %p301 = pneg %p70
        $region54: #{tpu_custom_call.1} parent=47 // pred_check_branch
          %303 = sbr.rel (%p301) target = $region56
        $region55: #{tpu_custom_call.1} parent=47 // pred_region
          %304 = dma.done [#allocation7], 256
        $region56: #{tpu_custom_call.1} parent=47 // pred_fallthru
          _
        // Predicated region
        $region57: #{tpu_custom_call.1} parent=47 // pred_check
          %p305 = pneg %p91
        $region58: #{tpu_custom_call.1} parent=47 // pred_check_branch
          %307 = sbr.rel (%p305) target = $region60
        $region59: #{tpu_custom_call.1} parent=47 // pred_region
          %308 = dma.done [#allocation7], 32768
        $region60: #{tpu_custom_call.1} parent=47 // pred_fallthru
          _
        // Predicated region
        $region61: #{tpu_custom_call.1} parent=47 // pred_check
          %p309 = pneg %p154
        $region62: #{tpu_custom_call.1} parent=47 // pred_check_branch
          %311 = sbr.rel (%p309) target = $region64
        $region63: #{tpu_custom_call.1} parent=47 // pred_region
          %312 = dma.done [#allocation10], 64
        $region64: #{tpu_custom_call.1} parent=47 // pred_fallthru
          _
        %s313 = sand.u32 %s36, 1
        %s314 = scalar_lea.sflag [#allocation4], %s313
        %s315 = sand.u32 %s36, 1
        %s316 = smul.addr %s315, 64
        %s317 = scalar_lea.vmem [#allocation3], %s316
        %p318 = pneg %p49
        %p319 = pneg %p46
        %p320 = pneg %p70
        %p321 = pneg %p67
        %p322 = pneg %p91
        %p323 = pneg %p88
        %p324 = pneg %p112
        %p325 = pneg %p109
        %p326 = pneg %p133
        %p327 = pneg %p130
        %p328 = pneg %p154
        %p329 = pneg %p151
        %p330 = pneg %p175
        %p331 = pneg %p172
        %p332 = pneg %p201
        %p333 = pneg %p198
        %s334 = sand.u32 %s188, 1
        %s335 = scalar_lea.sflag [#allocation5], %s334
        %s336 = sand.u32 %s188, 1
        %s337 = smul.addr %s336, 64
        %s338 = scalar_lea.vmem [#allocation11], %s337
        %v339 = vld [vmem:[%s296] sm:$0xff]
        %v340 = vld [vmem:[%s296 + $0x8] sm:$0xff]
        %v341 = vld [vmem:[%s296 + $0x10] sm:$0xff]
        %v342 = vld [vmem:[%s296 + $0x18] sm:$0xff]
        %v343 = vld [vmem:[%s296 + $0x20] sm:$0xff]
        %v344 = vld [vmem:[%s296 + $0x28] sm:$0xff]
        %v345 = vld [vmem:[%s296 + $0x30] sm:$0xff]
        %v346 = vld [vmem:[%s296 + $0x38] sm:$0xff]
        %v347 = vmax.f32 %v339, 0.0
        %v348 = vmax.f32 %v340, 0.0
        %v349 = vmax.f32 %v341, 0.0
        %v350 = vmax.f32 %v342, 0.0
        %v351 = vmax.f32 %v343, 0.0
        %v352 = vmax.f32 %v344, 0.0
        %v353 = vmax.f32 %v345, 0.0
        %v354 = vmax.f32 %v346, 0.0
        %v355 = vld [vmem:[%s3] sm:$0xf]
        %v357 = vlaneseq
        %v358 = vshrl.u32 %v357, 7
        %v359 = vsub.s32 0, %v358
        %v360 = vrot.slane %v355, %v359
        %v361 = vlaneseq
        %v362 = vshrl.u32 %v361, 7
        %v363 = vsub.s32 1, %v362
        %v364 = vrot.slane %v355, %v363
        %v365 = vlaneseq
        %v366 = vshrl.u32 %v365, 7
        %v367 = vsub.s32 2, %v366
        %v368 = vrot.slane %v355, %v367
        %v369 = vlaneseq
        %v370 = vshrl.u32 %v369, 7
        %v371 = vsub.s32 3, %v370
        %v372 = vrot.slane %v355, %v371
        %v377 = vmul.f32 %v347, %v360
        %v378 = vmul.f32 %v348, %v364
        %v379 = vmul.f32 %v349, %v368
        %v380 = vmul.f32 %v350, %v372
        %v381 = vmul.f32 %v351, %v360
        %v382 = vmul.f32 %v352, %v364
        %v383 = vmul.f32 %v353, %v368
        %v384 = vmul.f32 %v354, %v372
        %v385 = vld [vmem:[%s4] sm:$0xf]
        %v387 = vlaneseq
        %v388 = vshrl.u32 %v387, 7
        %v389 = vsub.s32 0, %v388
        %v390 = vrot.slane %v385, %v389
        %v391 = vlaneseq
        %v392 = vshrl.u32 %v391, 7
        %v393 = vsub.s32 1, %v392
        %v394 = vrot.slane %v385, %v393
        %v395 = vlaneseq
        %v396 = vshrl.u32 %v395, 7
        %v397 = vsub.s32 2, %v396
        %v398 = vrot.slane %v385, %v397
        %v399 = vlaneseq
        %v400 = vshrl.u32 %v399, 7
        %v401 = vsub.s32 3, %v400
        %v402 = vrot.slane %v385, %v401
        %v407 = vadd.f32 %v377, %v390
        %v408 = vadd.f32 %v378, %v394
        %v409 = vadd.f32 %v379, %v398
        %v410 = vadd.f32 %v380, %v402
        %v411 = vadd.f32 %v381, %v390
        %v412 = vadd.f32 %v382, %v394
        %v413 = vadd.f32 %v383, %v398
        %v414 = vadd.f32 %v384, %v402
        %vm423 = vcmask 1040384
        %v424 = vrot.slane %v407, 7
        %v425 = vrot.slane %v408, 7
        %v426 = vrot.slane %v409, 7
        %v427 = vrot.slane %v410, 7
        %v428 = vrot.slane %v411, 7
        %v429 = vsel %vm423, %v424, %v428
        %v430 = vrot.slane %v412, 7
        %v431 = vsel %vm423, %v425, %v430
        %v432 = vrot.slane %v413, 7
        %v433 = vsel %vm423, %v426, %v432
        %v434 = vrot.slane %v414, 7
        %v435 = vsel %vm423, %v427, %v434
        %v448 = vsel %vm423, 0.0, %v424
        %v449 = vsel %vm423, 0.0, %v425
        %v450 = vsel %vm423, 0.0, %v426
        %v451 = vsel %vm423, 0.0, %v427
        %v452 = vsel %vm423, %v428, 0.0
        %v453 = vsel %vm423, %v430, 0.0
        %v454 = vsel %vm423, %v432, 0.0
        %v455 = vsel %vm423, %v434, 0.0
        %v456 = vld [vmem:[#allocation6] ss:$4 sm:$0xf]
        %v458 = vlaneseq
        %v459 = vshrl.u32 %v458, 7
        %v460 = vsub.s32 0, %v459
        %v461 = vrot.slane %v456, %v460
        %v462 = vlaneseq
        %v463 = vshrl.u32 %v462, 7
        %v464 = vsub.s32 1, %v463
        %v465 = vrot.slane %v456, %v464
        %v466 = vlaneseq
        %v467 = vshrl.u32 %v466, 7
        %v468 = vsub.s32 2, %v467
        %v469 = vrot.slane %v456, %v468
        %v470 = vlaneseq
        %v471 = vshrl.u32 %v470, 7
        %v472 = vsub.s32 3, %v471
        %v473 = vrot.slane %v456, %v472
        %v478 = vmul.f32 %v448, %v461
        %v479 = vmul.f32 %v449, %v465
        %v480 = vmul.f32 %v450, %v469
        %v481 = vmul.f32 %v451, %v473
        %v482 = vmul.f32 %v429, %v461
        %v483 = vmul.f32 %v431, %v465
        %v484 = vmul.f32 %v433, %v469
        %v485 = vmul.f32 %v435, %v473
        %s486 = scalar_lea.vmem [#allocation6], 1
        %v487 = vld [vmem:[%s486] ss:$4 sm:$0xf]
        %v489 = vlaneseq
        %v490 = vshrl.u32 %v489, 7
        %v491 = vsub.s32 0, %v490
        %v492 = vrot.slane %v487, %v491
        %v493 = vlaneseq
        %v494 = vshrl.u32 %v493, 7
        %v495 = vsub.s32 1, %v494
        %v496 = vrot.slane %v487, %v495
        %v497 = vlaneseq
        %v498 = vshrl.u32 %v497, 7
        %v499 = vsub.s32 2, %v498
        %v500 = vrot.slane %v487, %v499
        %v501 = vlaneseq
        %v502 = vshrl.u32 %v501, 7
        %v503 = vsub.s32 3, %v502
        %v504 = vrot.slane %v487, %v503
        %v509 = vmul.f32 %v448, %v492
        %v510 = vmul.f32 %v449, %v496
        %v511 = vmul.f32 %v450, %v500
        %v512 = vmul.f32 %v451, %v504
        %v513 = vmul.f32 %v429, %v492
        %v514 = vmul.f32 %v431, %v496
        %v515 = vmul.f32 %v433, %v500
        %v516 = vmul.f32 %v435, %v504
        %v517 = vmul.f32 %v452, %v492
        %v518 = vmul.f32 %v453, %v496
        %v519 = vmul.f32 %v454, %v500
        %v520 = vmul.f32 %v455, %v504
        %vm533 = vcmask 1046528
        %v534 = vrot.slane %v509, 1
        %v535 = vrot.slane %v513, 1
        %v536 = vsel %vm533, %v534, %v535
        %v537 = vrot.slane %v510, 1
        %v538 = vrot.slane %v514, 1
        %v539 = vsel %vm533, %v537, %v538
        %v540 = vrot.slane %v511, 1
        %v541 = vrot.slane %v515, 1
        %v542 = vsel %vm533, %v540, %v541
        %v543 = vrot.slane %v512, 1
        %v544 = vrot.slane %v516, 1
        %v545 = vsel %vm533, %v543, %v544
        %v546 = vrot.slane %v517, 1
        %v547 = vsel %vm533, %v535, %v546
        %v548 = vrot.slane %v518, 1
        %v549 = vsel %vm533, %v538, %v548
        %v550 = vrot.slane %v519, 1
        %v551 = vsel %vm533, %v541, %v550
        %v552 = vrot.slane %v520, 1
        %v553 = vsel %vm533, %v544, %v552
        %v562 = vadd.f32 %v478, %v536
        %v563 = vadd.f32 %v479, %v539
        %v564 = vadd.f32 %v480, %v542
        %v565 = vadd.f32 %v481, %v545
        %v566 = vadd.f32 %v482, %v547
        %v567 = vadd.f32 %v483, %v549
        %v568 = vadd.f32 %v484, %v551
        %v569 = vadd.f32 %v485, %v553
        %s570 = scalar_lea.vmem [#allocation6], 2
        %v571 = vld [vmem:[%s570] ss:$4 sm:$0xf]
        %v573 = vlaneseq
        %v574 = vshrl.u32 %v573, 7
        %v575 = vsub.s32 0, %v574
        %v576 = vrot.slane %v571, %v575
        %v577 = vlaneseq
        %v578 = vshrl.u32 %v577, 7
        %v579 = vsub.s32 1, %v578
        %v580 = vrot.slane %v571, %v579
        %v581 = vlaneseq
        %v582 = vshrl.u32 %v581, 7
        %v583 = vsub.s32 2, %v582
        %v584 = vrot.slane %v571, %v583
        %v585 = vlaneseq
        %v586 = vshrl.u32 %v585, 7
        %v587 = vsub.s32 3, %v586
        %v588 = vrot.slane %v571, %v587
        %v593 = vmul.f32 %v448, %v576
        %v594 = vmul.f32 %v449, %v580
        %v595 = vmul.f32 %v450, %v584
        %v596 = vmul.f32 %v451, %v588
        %v597 = vmul.f32 %v429, %v576
        %v598 = vmul.f32 %v431, %v580
        %v599 = vmul.f32 %v433, %v584
        %v600 = vmul.f32 %v435, %v588
        %v601 = vmul.f32 %v452, %v576
        %v602 = vmul.f32 %v453, %v580
        %v603 = vmul.f32 %v454, %v584
        %v604 = vmul.f32 %v455, %v588
        %vm617 = vcmask 1045504
        %v618 = vrot.slane %v593, 2
        %v619 = vrot.slane %v597, 2
        %v620 = vsel %vm617, %v618, %v619
        %v621 = vrot.slane %v594, 2
        %v622 = vrot.slane %v598, 2
        %v623 = vsel %vm617, %v621, %v622
        %v624 = vrot.slane %v595, 2
        %v625 = vrot.slane %v599, 2
        %v626 = vsel %vm617, %v624, %v625
        %v627 = vrot.slane %v596, 2
        %v628 = vrot.slane %v600, 2
        %v629 = vsel %vm617, %v627, %v628
        %v630 = vrot.slane %v601, 2
        %v631 = vsel %vm617, %v619, %v630
        %v632 = vrot.slane %v602, 2
        %v633 = vsel %vm617, %v622, %v632
        %v634 = vrot.slane %v603, 2
        %v635 = vsel %vm617, %v625, %v634
        %v636 = vrot.slane %v604, 2
        %v637 = vsel %vm617, %v628, %v636
        %v646 = vadd.f32 %v562, %v620
        %v647 = vadd.f32 %v563, %v623
        %v648 = vadd.f32 %v564, %v626
        %v649 = vadd.f32 %v565, %v629
        %v650 = vadd.f32 %v566, %v631
        %v651 = vadd.f32 %v567, %v633
        %v652 = vadd.f32 %v568, %v635
        %v653 = vadd.f32 %v569, %v637
        %vm654 = vcmp.gt.f32.partialorder %v646, 0.0
        %vm655 = vcmp.gt.f32.partialorder %v647, 0.0
        %vm656 = vcmp.gt.f32.partialorder %v648, 0.0
        %vm657 = vcmp.gt.f32.partialorder %v649, 0.0
        %vm658 = vcmp.gt.f32.partialorder %v650, 0.0
        %vm659 = vcmp.gt.f32.partialorder %v651, 0.0
        %vm660 = vcmp.gt.f32.partialorder %v652, 0.0
        %vm661 = vcmp.gt.f32.partialorder %v653, 0.0
        %v662 = vld [vmem:[#allocation2] sm:$0x1]
        %v664 = vlaneseq
        %v665 = vshrl.u32 %v664, 7
        %v666 = vsub.s32 0, %v665
        %v667 = vrot.slane %v662, %v666
        %668 = vset.pattern.permute.xlu0 0
        %669 = vperm.xlu0 %668, %v667
        %v670 = vpop.permute.xlu0 %669
        %v672 = vmul.f32 %v670, %v646
        %v673 = vmul.f32 %v670, %v647
        %v674 = vmul.f32 %v670, %v648
        %v675 = vmul.f32 %v670, %v649
        %v676 = vmul.f32 %v670, %v650
        %v677 = vmul.f32 %v670, %v651
        %v678 = vmul.f32 %v670, %v652
        %v679 = vmul.f32 %v670, %v653
        %v680 = vsel %vm654, %v646, %v672
        %v681 = vsel %vm655, %v647, %v673
        %v682 = vsel %vm656, %v648, %v674
        %v683 = vsel %vm657, %v649, %v675
        %v684 = vsel %vm658, %v650, %v676
        %v685 = vsel %vm659, %v651, %v677
        %v686 = vsel %vm660, %v652, %v678
        %v687 = vsel %vm661, %v653, %v679
        %v688 = vld [vmem:[#allocation8] sm:$0xff]
        %v689 = vld [vmem:[#allocation8 + $0x8] sm:$0xff]
        %v690 = vld [vmem:[#allocation8 + $0x10] sm:$0xff]
        %v691 = vld [vmem:[#allocation8 + $0x18] sm:$0xff]
        %v692 = vld [vmem:[#allocation8 + $0x20] sm:$0xff]
        %v693 = vld [vmem:[#allocation8 + $0x28] sm:$0xff]
        %v694 = vld [vmem:[#allocation8 + $0x30] sm:$0xff]
        %v695 = vld [vmem:[#allocation8 + $0x38] sm:$0xff]
        %v696 = vld [vmem:[#allocation8 + $0x40] sm:$0xff]
        %v697 = vld [vmem:[#allocation8 + $0x48] sm:$0xff]
        %v698 = vld [vmem:[#allocation8 + $0x50] sm:$0xff]
        %v699 = vld [vmem:[#allocation8 + $0x58] sm:$0xff]
        %v700 = vld [vmem:[#allocation8 + $0x60] sm:$0xff]
        %v701 = vld [vmem:[#allocation8 + $0x68] sm:$0xff]
        %v702 = vld [vmem:[#allocation8 + $0x70] sm:$0xff]
        %v703 = vld [vmem:[#allocation8 + $0x78] sm:$0xff]
        %v704 = vld [vmem:[#allocation8 + $0x80] sm:$0xff]
        %v705 = vld [vmem:[#allocation8 + $0x88] sm:$0xff]
        %v706 = vld [vmem:[#allocation8 + $0x90] sm:$0xff]
        %v707 = vld [vmem:[#allocation8 + $0x98] sm:$0xff]
        %v708 = vld [vmem:[#allocation8 + $0xa0] sm:$0xff]
        %v709 = vld [vmem:[#allocation8 + $0xa8] sm:$0xff]
        %v710 = vld [vmem:[#allocation8 + $0xb0] sm:$0xff]
        %v711 = vld [vmem:[#allocation8 + $0xb8] sm:$0xff]
        %v712 = vld [vmem:[#allocation8 + $0xc0] sm:$0xff]
        %v713 = vld [vmem:[#allocation8 + $0xc8] sm:$0xff]
        %v714 = vld [vmem:[#allocation8 + $0xd0] sm:$0xff]
        %v715 = vld [vmem:[#allocation8 + $0xd8] sm:$0xff]
        %v716 = vld [vmem:[#allocation8 + $0xe0] sm:$0xff]
        %v717 = vld [vmem:[#allocation8 + $0xe8] sm:$0xff]
        %v718 = vld [vmem:[#allocation8 + $0xf0] sm:$0xff]
        %v719 = vld [vmem:[#allocation8 + $0xf8] sm:$0xff]
        %v720 = vld [vmem:[#allocation8 + $0x100] sm:$0xff]
        %v721 = vld [vmem:[#allocation8 + $0x108] sm:$0xff]
        %v722 = vld [vmem:[#allocation8 + $0x110] sm:$0xff]
        %v723 = vld [vmem:[#allocation8 + $0x118] sm:$0xff]
        %v724 = vld [vmem:[#allocation8 + $0x120] sm:$0xff]
        %v725 = vld [vmem:[#allocation8 + $0x128] sm:$0xff]
        %v726 = vld [vmem:[#allocation8 + $0x130] sm:$0xff]
        %v727 = vld [vmem:[#allocation8 + $0x138] sm:$0xff]
        %v728 = vld [vmem:[#allocation8 + $0x140] sm:$0xff]
        %v729 = vld [vmem:[#allocation8 + $0x148] sm:$0xff]
        %v730 = vld [vmem:[#allocation8 + $0x150] sm:$0xff]
        %v731 = vld [vmem:[#allocation8 + $0x158] sm:$0xff]
        %v732 = vld [vmem:[#allocation8 + $0x160] sm:$0xff]
        %v733 = vld [vmem:[#allocation8 + $0x168] sm:$0xff]
        %v734 = vld [vmem:[#allocation8 + $0x170] sm:$0xff]
        %v735 = vld [vmem:[#allocation8 + $0x178] sm:$0xff]
        %v736 = vld [vmem:[#allocation8 + $0x180] sm:$0xff]
        %v737 = vld [vmem:[#allocation8 + $0x188] sm:$0xff]
        %v738 = vld [vmem:[#allocation8 + $0x190] sm:$0xff]
        %v739 = vld [vmem:[#allocation8 + $0x198] sm:$0xff]
        %v740 = vld [vmem:[#allocation8 + $0x1a0] sm:$0xff]
        %v741 = vld [vmem:[#allocation8 + $0x1a8] sm:$0xff]
        %v742 = vld [vmem:[#allocation8 + $0x1b0] sm:$0xff]
        %v743 = vld [vmem:[#allocation8 + $0x1b8] sm:$0xff]
        %v744 = vld [vmem:[#allocation8 + $0x1c0] sm:$0xff]
        %v745 = vld [vmem:[#allocation8 + $0x1c8] sm:$0xff]
        %v746 = vld [vmem:[#allocation8 + $0x1d0] sm:$0xff]
        %v747 = vld [vmem:[#allocation8 + $0x1d8] sm:$0xff]
        %v748 = vld [vmem:[#allocation8 + $0x1e0] sm:$0xff]
        %v749 = vld [vmem:[#allocation8 + $0x1e8] sm:$0xff]
        %v750 = vld [vmem:[#allocation8 + $0x1f0] sm:$0xff]
        %v751 = vld [vmem:[#allocation8 + $0x1f8] sm:$0xff]
        %v752 = vld [vmem:[#allocation8 + $0x200] sm:$0xff]
        %v753 = vld [vmem:[#allocation8 + $0x208] sm:$0xff]
        %v754 = vld [vmem:[#allocation8 + $0x210] sm:$0xff]
        %v755 = vld [vmem:[#allocation8 + $0x218] sm:$0xff]
        %v756 = vld [vmem:[#allocation8 + $0x220] sm:$0xff]
        %v757 = vld [vmem:[#allocation8 + $0x228] sm:$0xff]
        %v758 = vld [vmem:[#allocation8 + $0x230] sm:$0xff]
        %v759 = vld [vmem:[#allocation8 + $0x238] sm:$0xff]
        %v760 = vld [vmem:[#allocation8 + $0x240] sm:$0xff]
        %v761 = vld [vmem:[#allocation8 + $0x248] sm:$0xff]
        %v762 = vld [vmem:[#allocation8 + $0x250] sm:$0xff]
        %v763 = vld [vmem:[#allocation8 + $0x258] sm:$0xff]
        %v764 = vld [vmem:[#allocation8 + $0x260] sm:$0xff]
        %v765 = vld [vmem:[#allocation8 + $0x268] sm:$0xff]
        %v766 = vld [vmem:[#allocation8 + $0x270] sm:$0xff]
        %v767 = vld [vmem:[#allocation8 + $0x278] sm:$0xff]
        %v768 = vld [vmem:[#allocation8 + $0x280] sm:$0xff]
        %v769 = vld [vmem:[#allocation8 + $0x288] sm:$0xff]
        %v770 = vld [vmem:[#allocation8 + $0x290] sm:$0xff]
        %v771 = vld [vmem:[#allocation8 + $0x298] sm:$0xff]
        %v772 = vld [vmem:[#allocation8 + $0x2a0] sm:$0xff]
        %v773 = vld [vmem:[#allocation8 + $0x2a8] sm:$0xff]
        %v774 = vld [vmem:[#allocation8 + $0x2b0] sm:$0xff]
        %v775 = vld [vmem:[#allocation8 + $0x2b8] sm:$0xff]
        %v776 = vld [vmem:[#allocation8 + $0x2c0] sm:$0xff]
        %v777 = vld [vmem:[#allocation8 + $0x2c8] sm:$0xff]
        %v778 = vld [vmem:[#allocation8 + $0x2d0] sm:$0xff]
        %v779 = vld [vmem:[#allocation8 + $0x2d8] sm:$0xff]
        %v780 = vld [vmem:[#allocation8 + $0x2e0] sm:$0xff]
        %v781 = vld [vmem:[#allocation8 + $0x2e8] sm:$0xff]
        %v782 = vld [vmem:[#allocation8 + $0x2f0] sm:$0xff]
        %v783 = vld [vmem:[#allocation8 + $0x2f8] sm:$0xff]
        %v784 = vld [vmem:[#allocation8 + $0x300] sm:$0xff]
        %v785 = vld [vmem:[#allocation8 + $0x308] sm:$0xff]
        %v786 = vld [vmem:[#allocation8 + $0x310] sm:$0xff]
        %v787 = vld [vmem:[#allocation8 + $0x318] sm:$0xff]
        %v788 = vld [vmem:[#allocation8 + $0x320] sm:$0xff]
        %v789 = vld [vmem:[#allocation8 + $0x328] sm:$0xff]
        %v790 = vld [vmem:[#allocation8 + $0x330] sm:$0xff]
        %v791 = vld [vmem:[#allocation8 + $0x338] sm:$0xff]
        %v792 = vld [vmem:[#allocation8 + $0x340] sm:$0xff]
        %v793 = vld [vmem:[#allocation8 + $0x348] sm:$0xff]
        %v794 = vld [vmem:[#allocation8 + $0x350] sm:$0xff]
        %v795 = vld [vmem:[#allocation8 + $0x358] sm:$0xff]
        %v796 = vld [vmem:[#allocation8 + $0x360] sm:$0xff]
        %v797 = vld [vmem:[#allocation8 + $0x368] sm:$0xff]
        %v798 = vld [vmem:[#allocation8 + $0x370] sm:$0xff]
        %v799 = vld [vmem:[#allocation8 + $0x378] sm:$0xff]
        %v800 = vld [vmem:[#allocation8 + $0x380] sm:$0xff]
        %v801 = vld [vmem:[#allocation8 + $0x388] sm:$0xff]
        %v802 = vld [vmem:[#allocation8 + $0x390] sm:$0xff]
        %v803 = vld [vmem:[#allocation8 + $0x398] sm:$0xff]
        %v804 = vld [vmem:[#allocation8 + $0x3a0] sm:$0xff]
        %v805 = vld [vmem:[#allocation8 + $0x3a8] sm:$0xff]
        %v806 = vld [vmem:[#allocation8 + $0x3b0] sm:$0xff]
        %v807 = vld [vmem:[#allocation8 + $0x3b8] sm:$0xff]
        %v808 = vld [vmem:[#allocation8 + $0x3c0] sm:$0xff]
        %v809 = vld [vmem:[#allocation8 + $0x3c8] sm:$0xff]
        %v810 = vld [vmem:[#allocation8 + $0x3d0] sm:$0xff]
        %v811 = vld [vmem:[#allocation8 + $0x3d8] sm:$0xff]
        %v812 = vld [vmem:[#allocation8 + $0x3e0] sm:$0xff]
        %v813 = vld [vmem:[#allocation8 + $0x3e8] sm:$0xff]
        %v814 = vld [vmem:[#allocation8 + $0x3f0] sm:$0xff]
        %v815 = vld [vmem:[#allocation8 + $0x3f8] sm:$0xff]
        %v816 = vld [vmem:[#allocation8 + $0x400] sm:$0xff]
        %v817 = vld [vmem:[#allocation8 + $0x408] sm:$0xff]
        %v818 = vld [vmem:[#allocation8 + $0x410] sm:$0xff]
        %v819 = vld [vmem:[#allocation8 + $0x418] sm:$0xff]
        %v820 = vld [vmem:[#allocation8 + $0x420] sm:$0xff]
        %v821 = vld [vmem:[#allocation8 + $0x428] sm:$0xff]
        %v822 = vld [vmem:[#allocation8 + $0x430] sm:$0xff]
        %v823 = vld [vmem:[#allocation8 + $0x438] sm:$0xff]
        %v824 = vld [vmem:[#allocation8 + $0x440] sm:$0xff]
        %v825 = vld [vmem:[#allocation8 + $0x448] sm:$0xff]
        %v826 = vld [vmem:[#allocation8 + $0x450] sm:$0xff]
        %v827 = vld [vmem:[#allocation8 + $0x458] sm:$0xff]
        %v828 = vld [vmem:[#allocation8 + $0x460] sm:$0xff]
        %v829 = vld [vmem:[#allocation8 + $0x468] sm:$0xff]
        %v830 = vld [vmem:[#allocation8 + $0x470] sm:$0xff]
        %v831 = vld [vmem:[#allocation8 + $0x478] sm:$0xff]
        %v832 = vld [vmem:[#allocation8 + $0x480] sm:$0xff]
        %v833 = vld [vmem:[#allocation8 + $0x488] sm:$0xff]
        %v834 = vld [vmem:[#allocation8 + $0x490] sm:$0xff]
        %v835 = vld [vmem:[#allocation8 + $0x498] sm:$0xff]
        %v836 = vld [vmem:[#allocation8 + $0x4a0] sm:$0xff]
        %v837 = vld [vmem:[#allocation8 + $0x4a8] sm:$0xff]
        %v838 = vld [vmem:[#allocation8 + $0x4b0] sm:$0xff]
        %v839 = vld [vmem:[#allocation8 + $0x4b8] sm:$0xff]
        %v840 = vld [vmem:[#allocation8 + $0x4c0] sm:$0xff]
        %v841 = vld [vmem:[#allocation8 + $0x4c8] sm:$0xff]
        %v842 = vld [vmem:[#allocation8 + $0x4d0] sm:$0xff]
        %v843 = vld [vmem:[#allocation8 + $0x4d8] sm:$0xff]
        %v844 = vld [vmem:[#allocation8 + $0x4e0] sm:$0xff]
        %v845 = vld [vmem:[#allocation8 + $0x4e8] sm:$0xff]
        %v846 = vld [vmem:[#allocation8 + $0x4f0] sm:$0xff]
        %v847 = vld [vmem:[#allocation8 + $0x4f8] sm:$0xff]
        %v848 = vld [vmem:[#allocation8 + $0x500] sm:$0xff]
        %v849 = vld [vmem:[#allocation8 + $0x508] sm:$0xff]
        %v850 = vld [vmem:[#allocation8 + $0x510] sm:$0xff]
        %v851 = vld [vmem:[#allocation8 + $0x518] sm:$0xff]
        %v852 = vld [vmem:[#allocation8 + $0x520] sm:$0xff]
        %v853 = vld [vmem:[#allocation8 + $0x528] sm:$0xff]
        %v854 = vld [vmem:[#allocation8 + $0x530] sm:$0xff]
        %v855 = vld [vmem:[#allocation8 + $0x538] sm:$0xff]
        %v856 = vld [vmem:[#allocation8 + $0x540] sm:$0xff]
        %v857 = vld [vmem:[#allocation8 + $0x548] sm:$0xff]
        %v858 = vld [vmem:[#allocation8 + $0x550] sm:$0xff]
        %v859 = vld [vmem:[#allocation8 + $0x558] sm:$0xff]
        %v860 = vld [vmem:[#allocation8 + $0x560] sm:$0xff]
        %v861 = vld [vmem:[#allocation8 + $0x568] sm:$0xff]
        %v862 = vld [vmem:[#allocation8 + $0x570] sm:$0xff]
        %v863 = vld [vmem:[#allocation8 + $0x578] sm:$0xff]
        %v864 = vld [vmem:[#allocation8 + $0x580] sm:$0xff]
        %v865 = vld [vmem:[#allocation8 + $0x588] sm:$0xff]
        %v866 = vld [vmem:[#allocation8 + $0x590] sm:$0xff]
        %v867 = vld [vmem:[#allocation8 + $0x598] sm:$0xff]
        %v868 = vld [vmem:[#allocation8 + $0x5a0] sm:$0xff]
        %v869 = vld [vmem:[#allocation8 + $0x5a8] sm:$0xff]
        %v870 = vld [vmem:[#allocation8 + $0x5b0] sm:$0xff]
        %v871 = vld [vmem:[#allocation8 + $0x5b8] sm:$0xff]
        %v872 = vld [vmem:[#allocation8 + $0x5c0] sm:$0xff]
        %v873 = vld [vmem:[#allocation8 + $0x5c8] sm:$0xff]
        %v874 = vld [vmem:[#allocation8 + $0x5d0] sm:$0xff]
        %v875 = vld [vmem:[#allocation8 + $0x5d8] sm:$0xff]
        %v876 = vld [vmem:[#allocation8 + $0x5e0] sm:$0xff]
        %v877 = vld [vmem:[#allocation8 + $0x5e8] sm:$0xff]
        %v878 = vld [vmem:[#allocation8 + $0x5f0] sm:$0xff]
        %v879 = vld [vmem:[#allocation8 + $0x5f8] sm:$0xff]
        %v880 = vld [vmem:[#allocation8 + $0x600] sm:$0xff]
        %v881 = vld [vmem:[#allocation8 + $0x608] sm:$0xff]
        %v882 = vld [vmem:[#allocation8 + $0x610] sm:$0xff]
        %v883 = vld [vmem:[#allocation8 + $0x618] sm:$0xff]
        %v884 = vld [vmem:[#allocation8 + $0x620] sm:$0xff]
        %v885 = vld [vmem:[#allocation8 + $0x628] sm:$0xff]
        %v886 = vld [vmem:[#allocation8 + $0x630] sm:$0xff]
        %v887 = vld [vmem:[#allocation8 + $0x638] sm:$0xff]
        %v888 = vld [vmem:[#allocation8 + $0x640] sm:$0xff]
        %v889 = vld [vmem:[#allocation8 + $0x648] sm:$0xff]
        %v890 = vld [vmem:[#allocation8 + $0x650] sm:$0xff]
        %v891 = vld [vmem:[#allocation8 + $0x658] sm:$0xff]
        %v892 = vld [vmem:[#allocation8 + $0x660] sm:$0xff]
        %v893 = vld [vmem:[#allocation8 + $0x668] sm:$0xff]
        %v894 = vld [vmem:[#allocation8 + $0x670] sm:$0xff]
        %v895 = vld [vmem:[#allocation8 + $0x678] sm:$0xff]
        %v896 = vld [vmem:[#allocation8 + $0x680] sm:$0xff]
        %v897 = vld [vmem:[#allocation8 + $0x688] sm:$0xff]
        %v898 = vld [vmem:[#allocation8 + $0x690] sm:$0xff]
        %v899 = vld [vmem:[#allocation8 + $0x698] sm:$0xff]
        %v900 = vld [vmem:[#allocation8 + $0x6a0] sm:$0xff]
        %v901 = vld [vmem:[#allocation8 + $0x6a8] sm:$0xff]
        %v902 = vld [vmem:[#allocation8 + $0x6b0] sm:$0xff]
        %v903 = vld [vmem:[#allocation8 + $0x6b8] sm:$0xff]
        %v904 = vld [vmem:[#allocation8 + $0x6c0] sm:$0xff]
        %v905 = vld [vmem:[#allocation8 + $0x6c8] sm:$0xff]
        %v906 = vld [vmem:[#allocation8 + $0x6d0] sm:$0xff]
        %v907 = vld [vmem:[#allocation8 + $0x6d8] sm:$0xff]
        %v908 = vld [vmem:[#allocation8 + $0x6e0] sm:$0xff]
        %v909 = vld [vmem:[#allocation8 + $0x6e8] sm:$0xff]
        %v910 = vld [vmem:[#allocation8 + $0x6f0] sm:$0xff]
        %v911 = vld [vmem:[#allocation8 + $0x6f8] sm:$0xff]
        %v912 = vld [vmem:[#allocation8 + $0x700] sm:$0xff]
        %v913 = vld [vmem:[#allocation8 + $0x708] sm:$0xff]
        %v914 = vld [vmem:[#allocation8 + $0x710] sm:$0xff]
        %v915 = vld [vmem:[#allocation8 + $0x718] sm:$0xff]
        %v916 = vld [vmem:[#allocation8 + $0x720] sm:$0xff]
        %v917 = vld [vmem:[#allocation8 + $0x728] sm:$0xff]
        %v918 = vld [vmem:[#allocation8 + $0x730] sm:$0xff]
        %v919 = vld [vmem:[#allocation8 + $0x738] sm:$0xff]
        %v920 = vld [vmem:[#allocation8 + $0x740] sm:$0xff]
        %v921 = vld [vmem:[#allocation8 + $0x748] sm:$0xff]
        %v922 = vld [vmem:[#allocation8 + $0x750] sm:$0xff]
        %v923 = vld [vmem:[#allocation8 + $0x758] sm:$0xff]
        %v924 = vld [vmem:[#allocation8 + $0x760] sm:$0xff]
        %v925 = vld [vmem:[#allocation8 + $0x768] sm:$0xff]
        %v926 = vld [vmem:[#allocation8 + $0x770] sm:$0xff]
        %v927 = vld [vmem:[#allocation8 + $0x778] sm:$0xff]
        %v928 = vld [vmem:[#allocation8 + $0x780] sm:$0xff]
        %v929 = vld [vmem:[#allocation8 + $0x788] sm:$0xff]
        %v930 = vld [vmem:[#allocation8 + $0x790] sm:$0xff]
        %v931 = vld [vmem:[#allocation8 + $0x798] sm:$0xff]
        %v932 = vld [vmem:[#allocation8 + $0x7a0] sm:$0xff]
        %v933 = vld [vmem:[#allocation8 + $0x7a8] sm:$0xff]
        %v934 = vld [vmem:[#allocation8 + $0x7b0] sm:$0xff]
        %v935 = vld [vmem:[#allocation8 + $0x7b8] sm:$0xff]
        %v936 = vld [vmem:[#allocation8 + $0x7c0] sm:$0xff]
        %v937 = vld [vmem:[#allocation8 + $0x7c8] sm:$0xff]
        %v938 = vld [vmem:[#allocation8 + $0x7d0] sm:$0xff]
        %v939 = vld [vmem:[#allocation8 + $0x7d8] sm:$0xff]
        %v940 = vld [vmem:[#allocation8 + $0x7e0] sm:$0xff]
        %v941 = vld [vmem:[#allocation8 + $0x7e8] sm:$0xff]
        %v942 = vld [vmem:[#allocation8 + $0x7f0] sm:$0xff]
        %v943 = vld [vmem:[#allocation8 + $0x7f8] sm:$0xff]
        %v944 = vld [vmem:[#allocation9] sm:$0xf]
        %v946 = vlaneseq
        %v947 = vshrl.u32 %v946, 7
        %v948 = vsub.s32 0, %v947
        %v949 = vrot.slane %v944, %v948
        %v950 = vlaneseq
        %v951 = vshrl.u32 %v950, 7
        %v952 = vsub.s32 1, %v951
        %v953 = vrot.slane %v944, %v952
        %v954 = vlaneseq
        %v955 = vshrl.u32 %v954, 7
        %v956 = vsub.s32 2, %v955
        %v957 = vrot.slane %v944, %v956
        %v958 = vlaneseq
        %v959 = vshrl.u32 %v958, 7
        %v960 = vsub.s32 3, %v959
        %v961 = vrot.slane %v944, %v960
        %v966 = vand.u32 %v749, 4294901760
        %967 = vmatprep.subr.mxu0 %v966
        %v968 = vand.u32 %v748, 4294901760
        %969 = vmatpush1.xpose.msra.mxu0 %v968
        %v970 = vand.u32 %v745, 4294901760
        %971 = vmatprep.subr.mxu0 %v970
        %v972 = vand.u32 %v744, 4294901760
        %973 = vmatpush1.xpose.msra.mxu0 %v972
        %v974 = vand.u32 %v741, 4294901760
        %975 = vmatprep.subr.mxu0 %v974
        %v976 = vand.u32 %v740, 4294901760
        %977 = vmatpush1.xpose.msra.mxu0 %v976
        %v978 = vand.u32 %v737, 4294901760
        %979 = vmatprep.subr.mxu0 %v978
        %v980 = vand.u32 %v736, 4294901760
        %981 = vmatpush1.xpose.msra.mxu0 %v980
        %v982 = vand.u32 %v733, 4294901760
        %983 = vmatprep.subr.mxu0 %v982
        %v984 = vand.u32 %v732, 4294901760
        %985 = vmatpush1.xpose.msra.mxu0 %v984
        %v986 = vand.u32 %v729, 4294901760
        %987 = vmatprep.subr.mxu0 %v986
        %v988 = vand.u32 %v728, 4294901760
        %989 = vmatpush1.xpose.msra.mxu0 %v988
        %v990 = vand.u32 %v725, 4294901760
        %991 = vmatprep.subr.mxu0 %v990
        %v992 = vand.u32 %v724, 4294901760
        %993 = vmatpush1.xpose.msra.mxu0 %v992
        %v994 = vand.u32 %v721, 4294901760
        %995 = vmatprep.subr.mxu0 %v994
        %v996 = vand.u32 %v720, 4294901760
        %997 = vmatpush1.xpose.msra.mxu0 %v996
        %v998 = vand.u32 %v717, 4294901760
        %999 = vmatprep.subr.mxu0 %v998
        %v1000 = vand.u32 %v716, 4294901760
        %1001 = vmatpush1.xpose.msra.mxu0 %v1000
        %v1002 = vand.u32 %v713, 4294901760
        %1003 = vmatprep.subr.mxu0 %v1002
        %v1004 = vand.u32 %v712, 4294901760
        %1005 = vmatpush1.xpose.msra.mxu0 %v1004
        %v1006 = vand.u32 %v709, 4294901760
        %1007 = vmatprep.subr.mxu0 %v1006
        %v1008 = vand.u32 %v708, 4294901760
        %1009 = vmatpush1.xpose.msra.mxu0 %v1008
        %v1010 = vand.u32 %v705, 4294901760
        %1011 = vmatprep.subr.mxu0 %v1010
        %v1012 = vand.u32 %v704, 4294901760
        %1013 = vmatpush1.xpose.msra.mxu0 %v1012
        %v1014 = vand.u32 %v701, 4294901760
        %1015 = vmatprep.subr.mxu0 %v1014
        %v1016 = vand.u32 %v700, 4294901760
        %1017 = vmatpush1.xpose.msra.mxu0 %v1016
        %v1018 = vand.u32 %v697, 4294901760
        %1019 = vmatprep.subr.mxu0 %v1018
        %v1020 = vand.u32 %v696, 4294901760
        %1021 = vmatpush1.xpose.msra.mxu0 %v1020
        %v1022 = vand.u32 %v693, 4294901760
        %1023 = vmatprep.subr.mxu0 %v1022
        %v1024 = vand.u32 %v692, 4294901760
        %1025 = vmatpush1.xpose.msra.mxu0 %v1024
        %v1026 = vand.u32 %v689, 4294901760
        %1027 = vmatprep.subr.mxu0 %v1026
        %v1028 = vand.u32 %v688, 4294901760
        %1029 = vmatpush1.xpose.msra.mxu0 %v1028
        %v1030 = vand.u32 %v813, 4294901760
        %1031 = vmatprep.subr.mxu0 %v1030
        %v1032 = vand.u32 %v812, 4294901760
        %1033 = vmatpush2.xpose.msra.mxu0 %v1032
        %v1034 = vand.u32 %v809, 4294901760
        %1035 = vmatprep.subr.mxu0 %v1034
        %v1036 = vand.u32 %v808, 4294901760
        %1037 = vmatpush2.xpose.msra.mxu0 %v1036
        %v1038 = vand.u32 %v805, 4294901760
        %1039 = vmatprep.subr.mxu0 %v1038
        %v1040 = vand.u32 %v804, 4294901760
        %1041 = vmatpush2.xpose.msra.mxu0 %v1040
        %v1042 = vand.u32 %v801, 4294901760
        %1043 = vmatprep.subr.mxu0 %v1042
        %v1044 = vand.u32 %v800, 4294901760
        %1045 = vmatpush2.xpose.msra.mxu0 %v1044
        %v1046 = vand.u32 %v797, 4294901760
        %1047 = vmatprep.subr.mxu0 %v1046
        %v1048 = vand.u32 %v796, 4294901760
        %1049 = vmatpush2.xpose.msra.mxu0 %v1048
        %v1050 = vand.u32 %v793, 4294901760
        %1051 = vmatprep.subr.mxu0 %v1050
        %v1052 = vand.u32 %v792, 4294901760
        %1053 = vmatpush2.xpose.msra.mxu0 %v1052
        %v1054 = vand.u32 %v789, 4294901760
        %1055 = vmatprep.subr.mxu0 %v1054
        %v1056 = vand.u32 %v788, 4294901760
        %1057 = vmatpush2.xpose.msra.mxu0 %v1056
        %v1058 = vand.u32 %v785, 4294901760
        %1059 = vmatprep.subr.mxu0 %v1058
        %v1060 = vand.u32 %v784, 4294901760
        %1061 = vmatpush2.xpose.msra.mxu0 %v1060
        %v1062 = vand.u32 %v781, 4294901760
        %1063 = vmatprep.subr.mxu0 %v1062
        %v1064 = vand.u32 %v780, 4294901760
        %1065 = vmatpush2.xpose.msra.mxu0 %v1064
        %v1066 = vand.u32 %v777, 4294901760
        %1067 = vmatprep.subr.mxu0 %v1066
        %v1068 = vand.u32 %v776, 4294901760
        %1069 = vmatpush2.xpose.msra.mxu0 %v1068
        %v1070 = vand.u32 %v773, 4294901760
        %1071 = vmatprep.subr.mxu0 %v1070
        %v1072 = vand.u32 %v772, 4294901760
        %1073 = vmatpush2.xpose.msra.mxu0 %v1072
        %v1074 = vand.u32 %v769, 4294901760
        %1075 = vmatprep.subr.mxu0 %v1074
        %v1076 = vand.u32 %v768, 4294901760
        %1077 = vmatpush2.xpose.msra.mxu0 %v1076
        %v1078 = vand.u32 %v765, 4294901760
        %1079 = vmatprep.subr.mxu0 %v1078
        %v1080 = vand.u32 %v764, 4294901760
        %1081 = vmatpush2.xpose.msra.mxu0 %v1080
        %v1082 = vand.u32 %v761, 4294901760
        %1083 = vmatprep.subr.mxu0 %v1082
        %v1084 = vand.u32 %v760, 4294901760
        %1085 = vmatpush2.xpose.msra.mxu0 %v1084
        %v1086 = vand.u32 %v757, 4294901760
        %1087 = vmatprep.subr.mxu0 %v1086
        %v1088 = vand.u32 %v756, 4294901760
        %1089 = vmatpush2.xpose.msra.mxu0 %v1088
        %v1090 = vand.u32 %v753, 4294901760
        %1091 = vmatprep.subr.mxu0 %v1090
        %v1092 = vand.u32 %v752, 4294901760
        %1093 = vmatpush2.xpose.msra.mxu0 %v1092
        %v1094 = vand.u32 %v681, 4294901760
        %v1095 = vsub.f32 %v681, %v1094
        %v1096 = vand.u32 %v1095, 4294901760
        %v1097 = vsub.f32 %v1095, %v1096
        %v1098 = vand.u32 %v1097, 4294901760
        %1099 = vmatprep.mubr.f32.mxu0 %v1098
        %v1100 = vand.u32 %v680, 4294901760
        %v1101 = vsub.f32 %v680, %v1100
        %v1102 = vand.u32 %v1101, 4294901760
        %v1103 = vsub.f32 %v1101, %v1102
        %v1104 = vand.u32 %v1103, 4294901760
        %1105 = vmatmul.mubr.f32.gmra.mxu0 %v1104
        %v1106 = vpop.f32.mrf.mxu0
        %v1107 = vadd.f32 %v949, %v1106
        %v1108 = vpop.f32.mrf.mxu0
        %v1109 = vadd.f32 %v953, %v1108
        %v1110 = vand.u32 %v685, 4294901760
        %v1111 = vsub.f32 %v685, %v1110
        %v1112 = vand.u32 %v1111, 4294901760
        %v1113 = vsub.f32 %v1111, %v1112
        %v1114 = vand.u32 %v1113, 4294901760
        %1115 = vmatprep.mubr.f32.mxu0 %v1114
        %v1116 = vand.u32 %v684, 4294901760
        %v1117 = vsub.f32 %v684, %v1116
        %v1118 = vand.u32 %v1117, 4294901760
        %v1119 = vsub.f32 %v1117, %v1118
        %v1120 = vand.u32 %v1119, 4294901760
        %1121 = vmatmul.mubr.f32.gmra.mxu0 %v1120
        %v1122 = vpop.f32.mrf.mxu0
        %v1123 = vadd.f32 %v949, %v1122
        %v1124 = vpop.f32.mrf.mxu0
        %v1125 = vadd.f32 %v953, %v1124
        %1126 = vdwg.mxu0
        %v1127 = vand.u32 %v749, 4294901760
        %v1128 = vsub.f32 %v749, %v1127
        %v1129 = vand.u32 %v1128, 4294901760
        %v1130 = vsub.f32 %v1128, %v1129
        %v1131 = vand.u32 %v1130, 4294901760
        %1132 = vmatprep.subr.mxu0 %v1131
        %v1133 = vand.u32 %v748, 4294901760
        %v1134 = vsub.f32 %v748, %v1133
        %v1135 = vand.u32 %v1134, 4294901760
        %v1136 = vsub.f32 %v1134, %v1135
        %v1137 = vand.u32 %v1136, 4294901760
        %1138 = vmatpush1.xpose.msra.mxu0 %v1137
        %v1139 = vand.u32 %v745, 4294901760
        %v1140 = vsub.f32 %v745, %v1139
        %v1141 = vand.u32 %v1140, 4294901760
        %v1142 = vsub.f32 %v1140, %v1141
        %v1143 = vand.u32 %v1142, 4294901760
        %1144 = vmatprep.subr.mxu0 %v1143
        %v1145 = vand.u32 %v744, 4294901760
        %v1146 = vsub.f32 %v744, %v1145
        %v1147 = vand.u32 %v1146, 4294901760
        %v1148 = vsub.f32 %v1146, %v1147
        %v1149 = vand.u32 %v1148, 4294901760
        %1150 = vmatpush1.xpose.msra.mxu0 %v1149
        %v1151 = vand.u32 %v741, 4294901760
        %v1152 = vsub.f32 %v741, %v1151
        %v1153 = vand.u32 %v1152, 4294901760
        %v1154 = vsub.f32 %v1152, %v1153
        %v1155 = vand.u32 %v1154, 4294901760
        %1156 = vmatprep.subr.mxu0 %v1155
        %v1157 = vand.u32 %v740, 4294901760
        %v1158 = vsub.f32 %v740, %v1157
        %v1159 = vand.u32 %v1158, 4294901760
        %v1160 = vsub.f32 %v1158, %v1159
        %v1161 = vand.u32 %v1160, 4294901760
        %1162 = vmatpush1.xpose.msra.mxu0 %v1161
        %v1163 = vand.u32 %v737, 4294901760
        %v1164 = vsub.f32 %v737, %v1163
        %v1165 = vand.u32 %v1164, 4294901760
        %v1166 = vsub.f32 %v1164, %v1165
        %v1167 = vand.u32 %v1166, 4294901760
        %1168 = vmatprep.subr.mxu0 %v1167
        %v1169 = vand.u32 %v736, 4294901760
        %v1170 = vsub.f32 %v736, %v1169
        %v1171 = vand.u32 %v1170, 4294901760
        %v1172 = vsub.f32 %v1170, %v1171
        %v1173 = vand.u32 %v1172, 4294901760
        %1174 = vmatpush1.xpose.msra.mxu0 %v1173
        %v1175 = vand.u32 %v733, 4294901760
        %v1176 = vsub.f32 %v733, %v1175
        %v1177 = vand.u32 %v1176, 4294901760
        %v1178 = vsub.f32 %v1176, %v1177
        %v1179 = vand.u32 %v1178, 4294901760
        %1180 = vmatprep.subr.mxu0 %v1179
        %v1181 = vand.u32 %v732, 4294901760
        %v1182 = vsub.f32 %v732, %v1181
        %v1183 = vand.u32 %v1182, 4294901760
        %v1184 = vsub.f32 %v1182, %v1183
        %v1185 = vand.u32 %v1184, 4294901760
        %1186 = vmatpush1.xpose.msra.mxu0 %v1185
        %v1187 = vand.u32 %v729, 4294901760
        %v1188 = vsub.f32 %v729, %v1187
        %v1189 = vand.u32 %v1188, 4294901760
        %v1190 = vsub.f32 %v1188, %v1189
        %v1191 = vand.u32 %v1190, 4294901760
        %1192 = vmatprep.subr.mxu0 %v1191
        %v1193 = vand.u32 %v728, 4294901760
        %v1194 = vsub.f32 %v728, %v1193
        %v1195 = vand.u32 %v1194, 4294901760
        %v1196 = vsub.f32 %v1194, %v1195
        %v1197 = vand.u32 %v1196, 4294901760
        %1198 = vmatpush1.xpose.msra.mxu0 %v1197
        %v1199 = vand.u32 %v725, 4294901760
        %v1200 = vsub.f32 %v725, %v1199
        %v1201 = vand.u32 %v1200, 4294901760
        %v1202 = vsub.f32 %v1200, %v1201
        %v1203 = vand.u32 %v1202, 4294901760
        %1204 = vmatprep.subr.mxu0 %v1203
        %v1205 = vand.u32 %v724, 4294901760
        %v1206 = vsub.f32 %v724, %v1205
        %v1207 = vand.u32 %v1206, 4294901760
        %v1208 = vsub.f32 %v1206, %v1207
        %v1209 = vand.u32 %v1208, 4294901760
        %1210 = vmatpush1.xpose.msra.mxu0 %v1209
        %v1211 = vand.u32 %v721, 4294901760
        %v1212 = vsub.f32 %v721, %v1211
        %v1213 = vand.u32 %v1212, 4294901760
        %v1214 = vsub.f32 %v1212, %v1213
        %v1215 = vand.u32 %v1214, 4294901760
        %1216 = vmatprep.subr.mxu0 %v1215
        %v1217 = vand.u32 %v720, 4294901760
        %v1218 = vsub.f32 %v720, %v1217
        %v1219 = vand.u32 %v1218, 4294901760
        %v1220 = vsub.f32 %v1218, %v1219
        %v1221 = vand.u32 %v1220, 4294901760
        %1222 = vmatpush1.xpose.msra.mxu0 %v1221
        %v1223 = vand.u32 %v717, 4294901760
        %v1224 = vsub.f32 %v717, %v1223
        %v1225 = vand.u32 %v1224, 4294901760
        %v1226 = vsub.f32 %v1224, %v1225
        %v1227 = vand.u32 %v1226, 4294901760
        %1228 = vmatprep.subr.mxu0 %v1227
        %v1229 = vand.u32 %v716, 4294901760
        %v1230 = vsub.f32 %v716, %v1229
        %v1231 = vand.u32 %v1230, 4294901760
        %v1232 = vsub.f32 %v1230, %v1231
        %v1233 = vand.u32 %v1232, 4294901760
        %1234 = vmatpush1.xpose.msra.mxu0 %v1233
        %v1235 = vand.u32 %v713, 4294901760
        %v1236 = vsub.f32 %v713, %v1235
        %v1237 = vand.u32 %v1236, 4294901760
        %v1238 = vsub.f32 %v1236, %v1237
        %v1239 = vand.u32 %v1238, 4294901760
        %1240 = vmatprep.subr.mxu0 %v1239
        %v1241 = vand.u32 %v712, 4294901760
        %v1242 = vsub.f32 %v712, %v1241
        %v1243 = vand.u32 %v1242, 4294901760
        %v1244 = vsub.f32 %v1242, %v1243
        %v1245 = vand.u32 %v1244, 4294901760
        %1246 = vmatpush1.xpose.msra.mxu0 %v1245
        %v1247 = vand.u32 %v709, 4294901760
        %v1248 = vsub.f32 %v709, %v1247
        %v1249 = vand.u32 %v1248, 4294901760
        %v1250 = vsub.f32 %v1248, %v1249
        %v1251 = vand.u32 %v1250, 4294901760
        %1252 = vmatprep.subr.mxu0 %v1251
        %v1253 = vand.u32 %v708, 4294901760
        %v1254 = vsub.f32 %v708, %v1253
        %v1255 = vand.u32 %v1254, 4294901760
        %v1256 = vsub.f32 %v1254, %v1255
        %v1257 = vand.u32 %v1256, 4294901760
        %1258 = vmatpush1.xpose.msra.mxu0 %v1257
        %v1259 = vand.u32 %v705, 4294901760
        %v1260 = vsub.f32 %v705, %v1259
        %v1261 = vand.u32 %v1260, 4294901760
        %v1262 = vsub.f32 %v1260, %v1261
        %v1263 = vand.u32 %v1262, 4294901760
        %1264 = vmatprep.subr.mxu0 %v1263
        %v1265 = vand.u32 %v704, 4294901760
        %v1266 = vsub.f32 %v704, %v1265
        %v1267 = vand.u32 %v1266, 4294901760
        %v1268 = vsub.f32 %v1266, %v1267
        %v1269 = vand.u32 %v1268, 4294901760
        %1270 = vmatpush1.xpose.msra.mxu0 %v1269
        %v1271 = vand.u32 %v701, 4294901760
        %v1272 = vsub.f32 %v701, %v1271
        %v1273 = vand.u32 %v1272, 4294901760
        %v1274 = vsub.f32 %v1272, %v1273
        %v1275 = vand.u32 %v1274, 4294901760
        %1276 = vmatprep.subr.mxu0 %v1275
        %v1277 = vand.u32 %v700, 4294901760
        %v1278 = vsub.f32 %v700, %v1277
        %v1279 = vand.u32 %v1278, 4294901760
        %v1280 = vsub.f32 %v1278, %v1279
        %v1281 = vand.u32 %v1280, 4294901760
        %1282 = vmatpush1.xpose.msra.mxu0 %v1281
        %v1283 = vand.u32 %v697, 4294901760
        %v1284 = vsub.f32 %v697, %v1283
        %v1285 = vand.u32 %v1284, 4294901760
        %v1286 = vsub.f32 %v1284, %v1285
        %v1287 = vand.u32 %v1286, 4294901760
        %1288 = vmatprep.subr.mxu0 %v1287
        %v1289 = vand.u32 %v696, 4294901760
        %v1290 = vsub.f32 %v696, %v1289
        %v1291 = vand.u32 %v1290, 4294901760
        %v1292 = vsub.f32 %v1290, %v1291
        %v1293 = vand.u32 %v1292, 4294901760
        %1294 = vmatpush1.xpose.msra.mxu0 %v1293
        %v1295 = vand.u32 %v693, 4294901760
        %v1296 = vsub.f32 %v693, %v1295
        %v1297 = vand.u32 %v1296, 4294901760
        %v1298 = vsub.f32 %v1296, %v1297
        %v1299 = vand.u32 %v1298, 4294901760
        %1300 = vmatprep.subr.mxu0 %v1299
        %v1301 = vand.u32 %v692, 4294901760
        %v1302 = vsub.f32 %v692, %v1301
        %v1303 = vand.u32 %v1302, 4294901760
        %v1304 = vsub.f32 %v1302, %v1303
        %v1305 = vand.u32 %v1304, 4294901760
        %1306 = vmatpush1.xpose.msra.mxu0 %v1305
        %v1307 = vand.u32 %v689, 4294901760
        %v1308 = vsub.f32 %v689, %v1307
        %v1309 = vand.u32 %v1308, 4294901760
        %v1310 = vsub.f32 %v1308, %v1309
        %v1311 = vand.u32 %v1310, 4294901760
        %1312 = vmatprep.subr.mxu0 %v1311
        %v1313 = vand.u32 %v688, 4294901760
        %v1314 = vsub.f32 %v688, %v1313
        %v1315 = vand.u32 %v1314, 4294901760
        %v1316 = vsub.f32 %v1314, %v1315
        %v1317 = vand.u32 %v1316, 4294901760
        %1318 = vmatpush1.xpose.msra.mxu0 %v1317
        %v1319 = vand.u32 %v813, 4294901760
        %v1320 = vsub.f32 %v813, %v1319
        %v1321 = vand.u32 %v1320, 4294901760
        %v1322 = vsub.f32 %v1320, %v1321
        %v1323 = vand.u32 %v1322, 4294901760
        %1324 = vmatprep.subr.mxu0 %v1323
        %v1325 = vand.u32 %v812, 4294901760
        %v1326 = vsub.f32 %v812, %v1325
        %v1327 = vand.u32 %v1326, 4294901760
        %v1328 = vsub.f32 %v1326, %v1327
        %v1329 = vand.u32 %v1328, 4294901760
        %1330 = vmatpush2.xpose.msra.mxu0 %v1329
        %v1331 = vand.u32 %v809, 4294901760
        %v1332 = vsub.f32 %v809, %v1331
        %v1333 = vand.u32 %v1332, 4294901760
        %v1334 = vsub.f32 %v1332, %v1333
        %v1335 = vand.u32 %v1334, 4294901760
        %1336 = vmatprep.subr.mxu0 %v1335
        %v1337 = vand.u32 %v808, 4294901760
        %v1338 = vsub.f32 %v808, %v1337
        %v1339 = vand.u32 %v1338, 4294901760
        %v1340 = vsub.f32 %v1338, %v1339
        %v1341 = vand.u32 %v1340, 4294901760
        %1342 = vmatpush2.xpose.msra.mxu0 %v1341
        %v1343 = vand.u32 %v805, 4294901760
        %v1344 = vsub.f32 %v805, %v1343
        %v1345 = vand.u32 %v1344, 4294901760
        %v1346 = vsub.f32 %v1344, %v1345
        %v1347 = vand.u32 %v1346, 4294901760
        %1348 = vmatprep.subr.mxu0 %v1347
        %v1349 = vand.u32 %v804, 4294901760
        %v1350 = vsub.f32 %v804, %v1349
        %v1351 = vand.u32 %v1350, 4294901760
        %v1352 = vsub.f32 %v1350, %v1351
        %v1353 = vand.u32 %v1352, 4294901760
        %1354 = vmatpush2.xpose.msra.mxu0 %v1353
        %v1355 = vand.u32 %v801, 4294901760
        %v1356 = vsub.f32 %v801, %v1355
        %v1357 = vand.u32 %v1356, 4294901760
        %v1358 = vsub.f32 %v1356, %v1357
        %v1359 = vand.u32 %v1358, 4294901760
        %1360 = vmatprep.subr.mxu0 %v1359
        %v1361 = vand.u32 %v800, 4294901760
        %v1362 = vsub.f32 %v800, %v1361
        %v1363 = vand.u32 %v1362, 4294901760
        %v1364 = vsub.f32 %v1362, %v1363
        %v1365 = vand.u32 %v1364, 4294901760
        %1366 = vmatpush2.xpose.msra.mxu0 %v1365
        %v1367 = vand.u32 %v797, 4294901760
        %v1368 = vsub.f32 %v797, %v1367
        %v1369 = vand.u32 %v1368, 4294901760
        %v1370 = vsub.f32 %v1368, %v1369
        %v1371 = vand.u32 %v1370, 4294901760
        %1372 = vmatprep.subr.mxu0 %v1371
        %v1373 = vand.u32 %v796, 4294901760
        %v1374 = vsub.f32 %v796, %v1373
        %v1375 = vand.u32 %v1374, 4294901760
        %v1376 = vsub.f32 %v1374, %v1375
        %v1377 = vand.u32 %v1376, 4294901760
        %1378 = vmatpush2.xpose.msra.mxu0 %v1377
        %v1379 = vand.u32 %v793, 4294901760
        %v1380 = vsub.f32 %v793, %v1379
        %v1381 = vand.u32 %v1380, 4294901760
        %v1382 = vsub.f32 %v1380, %v1381
        %v1383 = vand.u32 %v1382, 4294901760
        %1384 = vmatprep.subr.mxu0 %v1383
        %v1385 = vand.u32 %v792, 4294901760
        %v1386 = vsub.f32 %v792, %v1385
        %v1387 = vand.u32 %v1386, 4294901760
        %v1388 = vsub.f32 %v1386, %v1387
        %v1389 = vand.u32 %v1388, 4294901760
        %1390 = vmatpush2.xpose.msra.mxu0 %v1389
        %v1391 = vand.u32 %v789, 4294901760
        %v1392 = vsub.f32 %v789, %v1391
        %v1393 = vand.u32 %v1392, 4294901760
        %v1394 = vsub.f32 %v1392, %v1393
        %v1395 = vand.u32 %v1394, 4294901760
        %1396 = vmatprep.subr.mxu0 %v1395
        %v1397 = vand.u32 %v788, 4294901760
        %v1398 = vsub.f32 %v788, %v1397
        %v1399 = vand.u32 %v1398, 4294901760
        %v1400 = vsub.f32 %v1398, %v1399
        %v1401 = vand.u32 %v1400, 4294901760
        %1402 = vmatpush2.xpose.msra.mxu0 %v1401
        %v1403 = vand.u32 %v785, 4294901760
        %v1404 = vsub.f32 %v785, %v1403
        %v1405 = vand.u32 %v1404, 4294901760
        %v1406 = vsub.f32 %v1404, %v1405
        %v1407 = vand.u32 %v1406, 4294901760
        %1408 = vmatprep.subr.mxu0 %v1407
        %v1409 = vand.u32 %v784, 4294901760
        %v1410 = vsub.f32 %v784, %v1409
        %v1411 = vand.u32 %v1410, 4294901760
        %v1412 = vsub.f32 %v1410, %v1411
        %v1413 = vand.u32 %v1412, 4294901760
        %1414 = vmatpush2.xpose.msra.mxu0 %v1413
        %v1415 = vand.u32 %v781, 4294901760
        %v1416 = vsub.f32 %v781, %v1415
        %v1417 = vand.u32 %v1416, 4294901760
        %v1418 = vsub.f32 %v1416, %v1417
        %v1419 = vand.u32 %v1418, 4294901760
        %1420 = vmatprep.subr.mxu0 %v1419
        %v1421 = vand.u32 %v780, 4294901760
        %v1422 = vsub.f32 %v780, %v1421
        %v1423 = vand.u32 %v1422, 4294901760
        %v1424 = vsub.f32 %v1422, %v1423
        %v1425 = vand.u32 %v1424, 4294901760
        %1426 = vmatpush2.xpose.msra.mxu0 %v1425
        %v1427 = vand.u32 %v777, 4294901760
        %v1428 = vsub.f32 %v777, %v1427
        %v1429 = vand.u32 %v1428, 4294901760
        %v1430 = vsub.f32 %v1428, %v1429
        %v1431 = vand.u32 %v1430, 4294901760
        %1432 = vmatprep.subr.mxu0 %v1431
        %v1433 = vand.u32 %v776, 4294901760
        %v1434 = vsub.f32 %v776, %v1433
        %v1435 = vand.u32 %v1434, 4294901760
        %v1436 = vsub.f32 %v1434, %v1435
        %v1437 = vand.u32 %v1436, 4294901760
        %1438 = vmatpush2.xpose.msra.mxu0 %v1437
        %v1439 = vand.u32 %v773, 4294901760
        %v1440 = vsub.f32 %v773, %v1439
        %v1441 = vand.u32 %v1440, 4294901760
        %v1442 = vsub.f32 %v1440, %v1441
        %v1443 = vand.u32 %v1442, 4294901760
        %1444 = vmatprep.subr.mxu0 %v1443
        %v1445 = vand.u32 %v772, 4294901760
        %v1446 = vsub.f32 %v772, %v1445
        %v1447 = vand.u32 %v1446, 4294901760
        %v1448 = vsub.f32 %v1446, %v1447
        %v1449 = vand.u32 %v1448, 4294901760
        %1450 = vmatpush2.xpose.msra.mxu0 %v1449
        %v1451 = vand.u32 %v769, 4294901760
        %v1452 = vsub.f32 %v769, %v1451
        %v1453 = vand.u32 %v1452, 4294901760
        %v1454 = vsub.f32 %v1452, %v1453
        %v1455 = vand.u32 %v1454, 4294901760
        %1456 = vmatprep.subr.mxu0 %v1455
        %v1457 = vand.u32 %v768, 4294901760
        %v1458 = vsub.f32 %v768, %v1457
        %v1459 = vand.u32 %v1458, 4294901760
        %v1460 = vsub.f32 %v1458, %v1459
        %v1461 = vand.u32 %v1460, 4294901760
        %1462 = vmatpush2.xpose.msra.mxu0 %v1461
        %v1463 = vand.u32 %v765, 4294901760
        %v1464 = vsub.f32 %v765, %v1463
        %v1465 = vand.u32 %v1464, 4294901760
        %v1466 = vsub.f32 %v1464, %v1465
        %v1467 = vand.u32 %v1466, 4294901760
        %1468 = vmatprep.subr.mxu0 %v1467
        %v1469 = vand.u32 %v764, 4294901760
        %v1470 = vsub.f32 %v764, %v1469
        %v1471 = vand.u32 %v1470, 4294901760
        %v1472 = vsub.f32 %v1470, %v1471
        %v1473 = vand.u32 %v1472, 4294901760
        %1474 = vmatpush2.xpose.msra.mxu0 %v1473
        %v1475 = vand.u32 %v761, 4294901760
        %v1476 = vsub.f32 %v761, %v1475
        %v1477 = vand.u32 %v1476, 4294901760
        %v1478 = vsub.f32 %v1476, %v1477
        %v1479 = vand.u32 %v1478, 4294901760
        %1480 = vmatprep.subr.mxu0 %v1479
        %v1481 = vand.u32 %v760, 4294901760
        %v1482 = vsub.f32 %v760, %v1481
        %v1483 = vand.u32 %v1482, 4294901760
        %v1484 = vsub.f32 %v1482, %v1483
        %v1485 = vand.u32 %v1484, 4294901760
        %1486 = vmatpush2.xpose.msra.mxu0 %v1485
        %v1487 = vand.u32 %v757, 4294901760
        %v1488 = vsub.f32 %v757, %v1487
        %v1489 = vand.u32 %v1488, 4294901760
        %v1490 = vsub.f32 %v1488, %v1489
        %v1491 = vand.u32 %v1490, 4294901760
        %1492 = vmatprep.subr.mxu0 %v1491
        %v1493 = vand.u32 %v756, 4294901760
        %v1494 = vsub.f32 %v756, %v1493
        %v1495 = vand.u32 %v1494, 4294901760
        %v1496 = vsub.f32 %v1494, %v1495
        %v1497 = vand.u32 %v1496, 4294901760
        %1498 = vmatpush2.xpose.msra.mxu0 %v1497
        %v1499 = vand.u32 %v753, 4294901760
        %v1500 = vsub.f32 %v753, %v1499
        %v1501 = vand.u32 %v1500, 4294901760
        %v1502 = vsub.f32 %v1500, %v1501
        %v1503 = vand.u32 %v1502, 4294901760
        %1504 = vmatprep.subr.mxu0 %v1503
        %v1505 = vand.u32 %v752, 4294901760
        %v1506 = vsub.f32 %v752, %v1505
        %v1507 = vand.u32 %v1506, 4294901760
        %v1508 = vsub.f32 %v1506, %v1507
        %v1509 = vand.u32 %v1508, 4294901760
        %1510 = vmatpush2.xpose.msra.mxu0 %v1509
        %v1511 = vand.u32 %v681, 4294901760
        %1512 = vmatprep.mubr.f32.mxu0 %v1511
        %v1513 = vand.u32 %v680, 4294901760
        %1514 = vmatmul.mubr.f32.gmra.mxu0 %v1513
        %v1515 = vpop.f32.mrf.mxu0
        %v1516 = vadd.f32 %v1107, %v1515
        %v1517 = vpop.f32.mrf.mxu0
        %v1518 = vadd.f32 %v1109, %v1517
        %v1519 = vand.u32 %v685, 4294901760
        %1520 = vmatprep.mubr.f32.mxu0 %v1519
        %v1521 = vand.u32 %v684, 4294901760
        %1522 = vmatmul.mubr.f32.gmra.mxu0 %v1521
        %v1523 = vpop.f32.mrf.mxu0
        %v1524 = vadd.f32 %v1123, %v1523
        %v1525 = vpop.f32.mrf.mxu0
        %v1526 = vadd.f32 %v1125, %v1525
        %1527 = vdwg.mxu0
        %v1528 = vand.u32 %v749, 4294901760
        %v1529 = vsub.f32 %v749, %v1528
        %1530 = vmatprep.subr.mxu0 %v1529
        %v1531 = vand.u32 %v748, 4294901760
        %v1532 = vsub.f32 %v748, %v1531
        %1533 = vmatpush1.xpose.msra.mxu0 %v1532
        %v1534 = vand.u32 %v745, 4294901760
        %v1535 = vsub.f32 %v745, %v1534
        %1536 = vmatprep.subr.mxu0 %v1535
        %v1537 = vand.u32 %v744, 4294901760
        %v1538 = vsub.f32 %v744, %v1537
        %1539 = vmatpush1.xpose.msra.mxu0 %v1538
        %v1540 = vand.u32 %v741, 4294901760
        %v1541 = vsub.f32 %v741, %v1540
        %1542 = vmatprep.subr.mxu0 %v1541
        %v1543 = vand.u32 %v740, 4294901760
        %v1544 = vsub.f32 %v740, %v1543
        %1545 = vmatpush1.xpose.msra.mxu0 %v1544
        %v1546 = vand.u32 %v737, 4294901760
        %v1547 = vsub.f32 %v737, %v1546
        %1548 = vmatprep.subr.mxu0 %v1547
        %v1549 = vand.u32 %v736, 4294901760
        %v1550 = vsub.f32 %v736, %v1549
        %1551 = vmatpush1.xpose.msra.mxu0 %v1550
        %v1552 = vand.u32 %v733, 4294901760
        %v1553 = vsub.f32 %v733, %v1552
        %1554 = vmatprep.subr.mxu0 %v1553
        %v1555 = vand.u32 %v732, 4294901760
        %v1556 = vsub.f32 %v732, %v1555
        %1557 = vmatpush1.xpose.msra.mxu0 %v1556
        %v1558 = vand.u32 %v729, 4294901760
        %v1559 = vsub.f32 %v729, %v1558
        %1560 = vmatprep.subr.mxu0 %v1559
        %v1561 = vand.u32 %v728, 4294901760
        %v1562 = vsub.f32 %v728, %v1561
        %1563 = vmatpush1.xpose.msra.mxu0 %v1562
        %v1564 = vand.u32 %v725, 4294901760
        %v1565 = vsub.f32 %v725, %v1564
        %1566 = vmatprep.subr.mxu0 %v1565
        %v1567 = vand.u32 %v724, 4294901760
        %v1568 = vsub.f32 %v724, %v1567
        %1569 = vmatpush1.xpose.msra.mxu0 %v1568
        %v1570 = vand.u32 %v721, 4294901760
        %v1571 = vsub.f32 %v721, %v1570
        %1572 = vmatprep.subr.mxu0 %v1571
        %v1573 = vand.u32 %v720, 4294901760
        %v1574 = vsub.f32 %v720, %v1573
        %1575 = vmatpush1.xpose.msra.mxu0 %v1574
        %v1576 = vand.u32 %v717, 4294901760
        %v1577 = vsub.f32 %v717, %v1576
        %1578 = vmatprep.subr.mxu0 %v1577
        %v1579 = vand.u32 %v716, 4294901760
        %v1580 = vsub.f32 %v716, %v1579
        %1581 = vmatpush1.xpose.msra.mxu0 %v1580
        %v1582 = vand.u32 %v713, 4294901760
        %v1583 = vsub.f32 %v713, %v1582
        %1584 = vmatprep.subr.mxu0 %v1583
        %v1585 = vand.u32 %v712, 4294901760
        %v1586 = vsub.f32 %v712, %v1585
        %1587 = vmatpush1.xpose.msra.mxu0 %v1586
        %v1588 = vand.u32 %v709, 4294901760
        %v1589 = vsub.f32 %v709, %v1588
        %1590 = vmatprep.subr.mxu0 %v1589
        %v1591 = vand.u32 %v708, 4294901760
        %v1592 = vsub.f32 %v708, %v1591
        %1593 = vmatpush1.xpose.msra.mxu0 %v1592
        %v1594 = vand.u32 %v705, 4294901760
        %v1595 = vsub.f32 %v705, %v1594
        %1596 = vmatprep.subr.mxu0 %v1595
        %v1597 = vand.u32 %v704, 4294901760
        %v1598 = vsub.f32 %v704, %v1597
        %1599 = vmatpush1.xpose.msra.mxu0 %v1598
        %v1600 = vand.u32 %v701, 4294901760
        %v1601 = vsub.f32 %v701, %v1600
        %1602 = vmatprep.subr.mxu0 %v1601
        %v1603 = vand.u32 %v700, 4294901760
        %v1604 = vsub.f32 %v700, %v1603
        %1605 = vmatpush1.xpose.msra.mxu0 %v1604
        %v1606 = vand.u32 %v697, 4294901760
        %v1607 = vsub.f32 %v697, %v1606
        %1608 = vmatprep.subr.mxu0 %v1607
        %v1609 = vand.u32 %v696, 4294901760
        %v1610 = vsub.f32 %v696, %v1609
        %1611 = vmatpush1.xpose.msra.mxu0 %v1610
        %v1612 = vand.u32 %v693, 4294901760
        %v1613 = vsub.f32 %v693, %v1612
        %1614 = vmatprep.subr.mxu0 %v1613
        %v1615 = vand.u32 %v692, 4294901760
        %v1616 = vsub.f32 %v692, %v1615
        %1617 = vmatpush1.xpose.msra.mxu0 %v1616
        %v1618 = vand.u32 %v689, 4294901760
        %v1619 = vsub.f32 %v689, %v1618
        %1620 = vmatprep.subr.mxu0 %v1619
        %v1621 = vand.u32 %v688, 4294901760
        %v1622 = vsub.f32 %v688, %v1621
        %1623 = vmatpush1.xpose.msra.mxu0 %v1622
        %v1624 = vand.u32 %v813, 4294901760
        %v1625 = vsub.f32 %v813, %v1624
        %1626 = vmatprep.subr.mxu0 %v1625
        %v1627 = vand.u32 %v812, 4294901760
        %v1628 = vsub.f32 %v812, %v1627
        %1629 = vmatpush2.xpose.msra.mxu0 %v1628
        %v1630 = vand.u32 %v809, 4294901760
        %v1631 = vsub.f32 %v809, %v1630
        %1632 = vmatprep.subr.mxu0 %v1631
        %v1633 = vand.u32 %v808, 4294901760
        %v1634 = vsub.f32 %v808, %v1633
        %1635 = vmatpush2.xpose.msra.mxu0 %v1634
        %v1636 = vand.u32 %v805, 4294901760
        %v1637 = vsub.f32 %v805, %v1636
        %1638 = vmatprep.subr.mxu0 %v1637
        %v1639 = vand.u32 %v804, 4294901760
        %v1640 = vsub.f32 %v804, %v1639
        %1641 = vmatpush2.xpose.msra.mxu0 %v1640
        %v1642 = vand.u32 %v801, 4294901760
        %v1643 = vsub.f32 %v801, %v1642
        %1644 = vmatprep.subr.mxu0 %v1643
        %v1645 = vand.u32 %v800, 4294901760
        %v1646 = vsub.f32 %v800, %v1645
        %1647 = vmatpush2.xpose.msra.mxu0 %v1646
        %v1648 = vand.u32 %v797, 4294901760
        %v1649 = vsub.f32 %v797, %v1648
        %1650 = vmatprep.subr.mxu0 %v1649
        %v1651 = vand.u32 %v796, 4294901760
        %v1652 = vsub.f32 %v796, %v1651
        %1653 = vmatpush2.xpose.msra.mxu0 %v1652
        %v1654 = vand.u32 %v793, 4294901760
        %v1655 = vsub.f32 %v793, %v1654
        %1656 = vmatprep.subr.mxu0 %v1655
        %v1657 = vand.u32 %v792, 4294901760
        %v1658 = vsub.f32 %v792, %v1657
        %1659 = vmatpush2.xpose.msra.mxu0 %v1658
        %v1660 = vand.u32 %v789, 4294901760
        %v1661 = vsub.f32 %v789, %v1660
        %1662 = vmatprep.subr.mxu0 %v1661
        %v1663 = vand.u32 %v788, 4294901760
        %v1664 = vsub.f32 %v788, %v1663
        %1665 = vmatpush2.xpose.msra.mxu0 %v1664
        %v1666 = vand.u32 %v785, 4294901760
        %v1667 = vsub.f32 %v785, %v1666
        %1668 = vmatprep.subr.mxu0 %v1667
        %v1669 = vand.u32 %v784, 4294901760
        %v1670 = vsub.f32 %v784, %v1669
        %1671 = vmatpush2.xpose.msra.mxu0 %v1670
        %v1672 = vand.u32 %v781, 4294901760
        %v1673 = vsub.f32 %v781, %v1672
        %1674 = vmatprep.subr.mxu0 %v1673
        %v1675 = vand.u32 %v780, 4294901760
        %v1676 = vsub.f32 %v780, %v1675
        %1677 = vmatpush2.xpose.msra.mxu0 %v1676
        %v1678 = vand.u32 %v777, 4294901760
        %v1679 = vsub.f32 %v777, %v1678
        %1680 = vmatprep.subr.mxu0 %v1679
        %v1681 = vand.u32 %v776, 4294901760
        %v1682 = vsub.f32 %v776, %v1681
        %1683 = vmatpush2.xpose.msra.mxu0 %v1682
        %v1684 = vand.u32 %v773, 4294901760
        %v1685 = vsub.f32 %v773, %v1684
        %1686 = vmatprep.subr.mxu0 %v1685
        %v1687 = vand.u32 %v772, 4294901760
        %v1688 = vsub.f32 %v772, %v1687
        %1689 = vmatpush2.xpose.msra.mxu0 %v1688
        %v1690 = vand.u32 %v769, 4294901760
        %v1691 = vsub.f32 %v769, %v1690
        %1692 = vmatprep.subr.mxu0 %v1691
        %v1693 = vand.u32 %v768, 4294901760
        %v1694 = vsub.f32 %v768, %v1693
        %1695 = vmatpush2.xpose.msra.mxu0 %v1694
        %v1696 = vand.u32 %v765, 4294901760
        %v1697 = vsub.f32 %v765, %v1696
        %1698 = vmatprep.subr.mxu0 %v1697
        %v1699 = vand.u32 %v764, 4294901760
        %v1700 = vsub.f32 %v764, %v1699
        %1701 = vmatpush2.xpose.msra.mxu0 %v1700
        %v1702 = vand.u32 %v761, 4294901760
        %v1703 = vsub.f32 %v761, %v1702
        %1704 = vmatprep.subr.mxu0 %v1703
        %v1705 = vand.u32 %v760, 4294901760
        %v1706 = vsub.f32 %v760, %v1705
        %1707 = vmatpush2.xpose.msra.mxu0 %v1706
        %v1708 = vand.u32 %v757, 4294901760
        %v1709 = vsub.f32 %v757, %v1708
        %1710 = vmatprep.subr.mxu0 %v1709
        %v1711 = vand.u32 %v756, 4294901760
        %v1712 = vsub.f32 %v756, %v1711
        %1713 = vmatpush2.xpose.msra.mxu0 %v1712
        %v1714 = vand.u32 %v753, 4294901760
        %v1715 = vsub.f32 %v753, %v1714
        %1716 = vmatprep.subr.mxu0 %v1715
        %v1717 = vand.u32 %v752, 4294901760
        %v1718 = vsub.f32 %v752, %v1717
        %1719 = vmatpush2.xpose.msra.mxu0 %v1718
        %v1720 = vand.u32 %v681, 4294901760
        %v1721 = vsub.f32 %v681, %v1720
        %1722 = vmatprep.mubr.f32.mxu0 %v1721
        %v1723 = vand.u32 %v680, 4294901760
        %v1724 = vsub.f32 %v680, %v1723
        %1725 = vmatmul.mubr.f32.gmra.mxu0 %v1724
        %v1726 = vpop.f32.mrf.mxu0
        %v1727 = vadd.f32 %v1516, %v1726
        %v1728 = vpop.f32.mrf.mxu0
        %v1729 = vadd.f32 %v1518, %v1728
        %v1730 = vand.u32 %v685, 4294901760
        %v1731 = vsub.f32 %v685, %v1730
        %1732 = vmatprep.mubr.f32.mxu0 %v1731
        %v1733 = vand.u32 %v684, 4294901760
        %v1734 = vsub.f32 %v684, %v1733
        %1735 = vmatmul.mubr.f32.gmra.mxu0 %v1734
        %v1736 = vpop.f32.mrf.mxu0
        %v1737 = vadd.f32 %v1524, %v1736
        %v1738 = vpop.f32.mrf.mxu0
        %v1739 = vadd.f32 %v1526, %v1738
        %1740 = vdwg.mxu0
        %v1741 = vand.u32 %v749, 4294901760
        %1742 = vmatprep.subr.mxu0 %v1741
        %v1743 = vand.u32 %v748, 4294901760
        %1744 = vmatpush1.xpose.msra.mxu0 %v1743
        %v1745 = vand.u32 %v745, 4294901760
        %1746 = vmatprep.subr.mxu0 %v1745
        %v1747 = vand.u32 %v744, 4294901760
        %1748 = vmatpush1.xpose.msra.mxu0 %v1747
        %v1749 = vand.u32 %v741, 4294901760
        %1750 = vmatprep.subr.mxu0 %v1749
        %v1751 = vand.u32 %v740, 4294901760
        %1752 = vmatpush1.xpose.msra.mxu0 %v1751
        %v1753 = vand.u32 %v737, 4294901760
        %1754 = vmatprep.subr.mxu0 %v1753
        %v1755 = vand.u32 %v736, 4294901760
        %1756 = vmatpush1.xpose.msra.mxu0 %v1755
        %v1757 = vand.u32 %v733, 4294901760
        %1758 = vmatprep.subr.mxu0 %v1757
        %v1759 = vand.u32 %v732, 4294901760
        %1760 = vmatpush1.xpose.msra.mxu0 %v1759
        %v1761 = vand.u32 %v729, 4294901760
        %1762 = vmatprep.subr.mxu0 %v1761
        %v1763 = vand.u32 %v728, 4294901760
        %1764 = vmatpush1.xpose.msra.mxu0 %v1763
        %v1765 = vand.u32 %v725, 4294901760
        %1766 = vmatprep.subr.mxu0 %v1765
        %v1767 = vand.u32 %v724, 4294901760
        %1768 = vmatpush1.xpose.msra.mxu0 %v1767
        %v1769 = vand.u32 %v721, 4294901760
        %1770 = vmatprep.subr.mxu0 %v1769
        %v1771 = vand.u32 %v720, 4294901760
        %1772 = vmatpush1.xpose.msra.mxu0 %v1771
        %v1773 = vand.u32 %v717, 4294901760
        %1774 = vmatprep.subr.mxu0 %v1773
        %v1775 = vand.u32 %v716, 4294901760
        %1776 = vmatpush1.xpose.msra.mxu0 %v1775
        %v1777 = vand.u32 %v713, 4294901760
        %1778 = vmatprep.subr.mxu0 %v1777
        %v1779 = vand.u32 %v712, 4294901760
        %1780 = vmatpush1.xpose.msra.mxu0 %v1779
        %v1781 = vand.u32 %v709, 4294901760
        %1782 = vmatprep.subr.mxu0 %v1781
        %v1783 = vand.u32 %v708, 4294901760
        %1784 = vmatpush1.xpose.msra.mxu0 %v1783
        %v1785 = vand.u32 %v705, 4294901760
        %1786 = vmatprep.subr.mxu0 %v1785
        %v1787 = vand.u32 %v704, 4294901760
        %1788 = vmatpush1.xpose.msra.mxu0 %v1787
        %v1789 = vand.u32 %v701, 4294901760
        %1790 = vmatprep.subr.mxu0 %v1789
        %v1791 = vand.u32 %v700, 4294901760
        %1792 = vmatpush1.xpose.msra.mxu0 %v1791
        %v1793 = vand.u32 %v697, 4294901760
        %1794 = vmatprep.subr.mxu0 %v1793
        %v1795 = vand.u32 %v696, 4294901760
        %1796 = vmatpush1.xpose.msra.mxu0 %v1795
        %v1797 = vand.u32 %v693, 4294901760
        %1798 = vmatprep.subr.mxu0 %v1797
        %v1799 = vand.u32 %v692, 4294901760
        %1800 = vmatpush1.xpose.msra.mxu0 %v1799
        %v1801 = vand.u32 %v689, 4294901760
        %1802 = vmatprep.subr.mxu0 %v1801
        %v1803 = vand.u32 %v688, 4294901760
        %1804 = vmatpush1.xpose.msra.mxu0 %v1803
        %v1805 = vand.u32 %v813, 4294901760
        %1806 = vmatprep.subr.mxu0 %v1805
        %v1807 = vand.u32 %v812, 4294901760
        %1808 = vmatpush2.xpose.msra.mxu0 %v1807
        %v1809 = vand.u32 %v809, 4294901760
        %1810 = vmatprep.subr.mxu0 %v1809
        %v1811 = vand.u32 %v808, 4294901760
        %1812 = vmatpush2.xpose.msra.mxu0 %v1811
        %v1813 = vand.u32 %v805, 4294901760
        %1814 = vmatprep.subr.mxu0 %v1813
        %v1815 = vand.u32 %v804, 4294901760
        %1816 = vmatpush2.xpose.msra.mxu0 %v1815
        %v1817 = vand.u32 %v801, 4294901760
        %1818 = vmatprep.subr.mxu0 %v1817
        %v1819 = vand.u32 %v800, 4294901760
        %1820 = vmatpush2.xpose.msra.mxu0 %v1819
        %v1821 = vand.u32 %v797, 4294901760
        %1822 = vmatprep.subr.mxu0 %v1821
        %v1823 = vand.u32 %v796, 4294901760
        %1824 = vmatpush2.xpose.msra.mxu0 %v1823
        %v1825 = vand.u32 %v793, 4294901760
        %1826 = vmatprep.subr.mxu0 %v1825
        %v1827 = vand.u32 %v792, 4294901760
        %1828 = vmatpush2.xpose.msra.mxu0 %v1827
        %v1829 = vand.u32 %v789, 4294901760
        %1830 = vmatprep.subr.mxu0 %v1829
        %v1831 = vand.u32 %v788, 4294901760
        %1832 = vmatpush2.xpose.msra.mxu0 %v1831
        %v1833 = vand.u32 %v785, 4294901760
        %1834 = vmatprep.subr.mxu0 %v1833
        %v1835 = vand.u32 %v784, 4294901760
        %1836 = vmatpush2.xpose.msra.mxu0 %v1835
        %v1837 = vand.u32 %v781, 4294901760
        %1838 = vmatprep.subr.mxu0 %v1837
        %v1839 = vand.u32 %v780, 4294901760
        %1840 = vmatpush2.xpose.msra.mxu0 %v1839
        %v1841 = vand.u32 %v777, 4294901760
        %1842 = vmatprep.subr.mxu0 %v1841
        %v1843 = vand.u32 %v776, 4294901760
        %1844 = vmatpush2.xpose.msra.mxu0 %v1843
        %v1845 = vand.u32 %v773, 4294901760
        %1846 = vmatprep.subr.mxu0 %v1845
        %v1847 = vand.u32 %v772, 4294901760
        %1848 = vmatpush2.xpose.msra.mxu0 %v1847
        %v1849 = vand.u32 %v769, 4294901760
        %1850 = vmatprep.subr.mxu0 %v1849
        %v1851 = vand.u32 %v768, 4294901760
        %1852 = vmatpush2.xpose.msra.mxu0 %v1851
        %v1853 = vand.u32 %v765, 4294901760
        %1854 = vmatprep.subr.mxu0 %v1853
        %v1855 = vand.u32 %v764, 4294901760
        %1856 = vmatpush2.xpose.msra.mxu0 %v1855
        %v1857 = vand.u32 %v761, 4294901760
        %1858 = vmatprep.subr.mxu0 %v1857
        %v1859 = vand.u32 %v760, 4294901760
        %1860 = vmatpush2.xpose.msra.mxu0 %v1859
        %v1861 = vand.u32 %v757, 4294901760
        %1862 = vmatprep.subr.mxu0 %v1861
        %v1863 = vand.u32 %v756, 4294901760
        %1864 = vmatpush2.xpose.msra.mxu0 %v1863
        %v1865 = vand.u32 %v753, 4294901760
        %1866 = vmatprep.subr.mxu0 %v1865
        %v1867 = vand.u32 %v752, 4294901760
        %1868 = vmatpush2.xpose.msra.mxu0 %v1867
        %v1869 = vand.u32 %v681, 4294901760
        %v1870 = vsub.f32 %v681, %v1869
        %v1871 = vand.u32 %v1870, 4294901760
        %1872 = vmatprep.mubr.f32.mxu0 %v1871
        %v1873 = vand.u32 %v680, 4294901760
        %v1874 = vsub.f32 %v680, %v1873
        %v1875 = vand.u32 %v1874, 4294901760
        %1876 = vmatmul.mubr.f32.gmra.mxu0 %v1875
        %v1877 = vpop.f32.mrf.mxu0
        %v1878 = vadd.f32 %v1727, %v1877
        %v1879 = vpop.f32.mrf.mxu0
        %v1880 = vadd.f32 %v1729, %v1879
        %v1881 = vand.u32 %v685, 4294901760
        %v1882 = vsub.f32 %v685, %v1881
        %v1883 = vand.u32 %v1882, 4294901760
        %1884 = vmatprep.mubr.f32.mxu0 %v1883
        %v1885 = vand.u32 %v684, 4294901760
        %v1886 = vsub.f32 %v684, %v1885
        %v1887 = vand.u32 %v1886, 4294901760
        %1888 = vmatmul.mubr.f32.gmra.mxu0 %v1887
        %v1889 = vpop.f32.mrf.mxu0
        %v1890 = vadd.f32 %v1737, %v1889
        %v1891 = vpop.f32.mrf.mxu0
        %v1892 = vadd.f32 %v1739, %v1891
        %1893 = vdwg.mxu0
        %v1894 = vand.u32 %v749, 4294901760
        %v1895 = vsub.f32 %v749, %v1894
        %v1896 = vand.u32 %v1895, 4294901760
        %1897 = vmatprep.subr.mxu0 %v1896
        %v1898 = vand.u32 %v748, 4294901760
        %v1899 = vsub.f32 %v748, %v1898
        %v1900 = vand.u32 %v1899, 4294901760
        %1901 = vmatpush1.xpose.msra.mxu0 %v1900
        %v1902 = vand.u32 %v745, 4294901760
        %v1903 = vsub.f32 %v745, %v1902
        %v1904 = vand.u32 %v1903, 4294901760
        %1905 = vmatprep.subr.mxu0 %v1904
        %v1906 = vand.u32 %v744, 4294901760
        %v1907 = vsub.f32 %v744, %v1906
        %v1908 = vand.u32 %v1907, 4294901760
        %1909 = vmatpush1.xpose.msra.mxu0 %v1908
        %v1910 = vand.u32 %v741, 4294901760
        %v1911 = vsub.f32 %v741, %v1910
        %v1912 = vand.u32 %v1911, 4294901760
        %1913 = vmatprep.subr.mxu0 %v1912
        %v1914 = vand.u32 %v740, 4294901760
        %v1915 = vsub.f32 %v740, %v1914
        %v1916 = vand.u32 %v1915, 4294901760
        %1917 = vmatpush1.xpose.msra.mxu0 %v1916
        %v1918 = vand.u32 %v737, 4294901760
        %v1919 = vsub.f32 %v737, %v1918
        %v1920 = vand.u32 %v1919, 4294901760
        %1921 = vmatprep.subr.mxu0 %v1920
        %v1922 = vand.u32 %v736, 4294901760
        %v1923 = vsub.f32 %v736, %v1922
        %v1924 = vand.u32 %v1923, 4294901760
        %1925 = vmatpush1.xpose.msra.mxu0 %v1924
        %v1926 = vand.u32 %v733, 4294901760
        %v1927 = vsub.f32 %v733, %v1926
        %v1928 = vand.u32 %v1927, 4294901760
        %1929 = vmatprep.subr.mxu0 %v1928
        %v1930 = vand.u32 %v732, 4294901760
        %v1931 = vsub.f32 %v732, %v1930
        %v1932 = vand.u32 %v1931, 4294901760
        %1933 = vmatpush1.xpose.msra.mxu0 %v1932
        %v1934 = vand.u32 %v729, 4294901760
        %v1935 = vsub.f32 %v729, %v1934
        %v1936 = vand.u32 %v1935, 4294901760
        %1937 = vmatprep.subr.mxu0 %v1936
        %v1938 = vand.u32 %v728, 4294901760
        %v1939 = vsub.f32 %v728, %v1938
        %v1940 = vand.u32 %v1939, 4294901760
        %1941 = vmatpush1.xpose.msra.mxu0 %v1940
        %v1942 = vand.u32 %v725, 4294901760
        %v1943 = vsub.f32 %v725, %v1942
        %v1944 = vand.u32 %v1943, 4294901760
        %1945 = vmatprep.subr.mxu0 %v1944
        %v1946 = vand.u32 %v724, 4294901760
        %v1947 = vsub.f32 %v724, %v1946
        %v1948 = vand.u32 %v1947, 4294901760
        %1949 = vmatpush1.xpose.msra.mxu0 %v1948
        %v1950 = vand.u32 %v721, 4294901760
        %v1951 = vsub.f32 %v721, %v1950
        %v1952 = vand.u32 %v1951, 4294901760
        %1953 = vmatprep.subr.mxu0 %v1952
        %v1954 = vand.u32 %v720, 4294901760
        %v1955 = vsub.f32 %v720, %v1954
        %v1956 = vand.u32 %v1955, 4294901760
        %1957 = vmatpush1.xpose.msra.mxu0 %v1956
        %v1958 = vand.u32 %v717, 4294901760
        %v1959 = vsub.f32 %v717, %v1958
        %v1960 = vand.u32 %v1959, 4294901760
        %1961 = vmatprep.subr.mxu0 %v1960
        %v1962 = vand.u32 %v716, 4294901760
        %v1963 = vsub.f32 %v716, %v1962
        %v1964 = vand.u32 %v1963, 4294901760
        %1965 = vmatpush1.xpose.msra.mxu0 %v1964
        %v1966 = vand.u32 %v713, 4294901760
        %v1967 = vsub.f32 %v713, %v1966
        %v1968 = vand.u32 %v1967, 4294901760
        %1969 = vmatprep.subr.mxu0 %v1968
        %v1970 = vand.u32 %v712, 4294901760
        %v1971 = vsub.f32 %v712, %v1970
        %v1972 = vand.u32 %v1971, 4294901760
        %1973 = vmatpush1.xpose.msra.mxu0 %v1972
        %v1974 = vand.u32 %v709, 4294901760
        %v1975 = vsub.f32 %v709, %v1974
        %v1976 = vand.u32 %v1975, 4294901760
        %1977 = vmatprep.subr.mxu0 %v1976
        %v1978 = vand.u32 %v708, 4294901760
        %v1979 = vsub.f32 %v708, %v1978
        %v1980 = vand.u32 %v1979, 4294901760
        %1981 = vmatpush1.xpose.msra.mxu0 %v1980
        %v1982 = vand.u32 %v705, 4294901760
        %v1983 = vsub.f32 %v705, %v1982
        %v1984 = vand.u32 %v1983, 4294901760
        %1985 = vmatprep.subr.mxu0 %v1984
        %v1986 = vand.u32 %v704, 4294901760
        %v1987 = vsub.f32 %v704, %v1986
        %v1988 = vand.u32 %v1987, 4294901760
        %1989 = vmatpush1.xpose.msra.mxu0 %v1988
        %v1990 = vand.u32 %v701, 4294901760
        %v1991 = vsub.f32 %v701, %v1990
        %v1992 = vand.u32 %v1991, 4294901760
        %1993 = vmatprep.subr.mxu0 %v1992
        %v1994 = vand.u32 %v700, 4294901760
        %v1995 = vsub.f32 %v700, %v1994
        %v1996 = vand.u32 %v1995, 4294901760
        %1997 = vmatpush1.xpose.msra.mxu0 %v1996
        %v1998 = vand.u32 %v697, 4294901760
        %v1999 = vsub.f32 %v697, %v1998
        %v2000 = vand.u32 %v1999, 4294901760
        %2001 = vmatprep.subr.mxu0 %v2000
        %v2002 = vand.u32 %v696, 4294901760
        %v2003 = vsub.f32 %v696, %v2002
        %v2004 = vand.u32 %v2003, 4294901760
        %2005 = vmatpush1.xpose.msra.mxu0 %v2004
        %v2006 = vand.u32 %v693, 4294901760
        %v2007 = vsub.f32 %v693, %v2006
        %v2008 = vand.u32 %v2007, 4294901760
        %2009 = vmatprep.subr.mxu0 %v2008
        %v2010 = vand.u32 %v692, 4294901760
        %v2011 = vsub.f32 %v692, %v2010
        %v2012 = vand.u32 %v2011, 4294901760
        %2013 = vmatpush1.xpose.msra.mxu0 %v2012
        %v2014 = vand.u32 %v689, 4294901760
        %v2015 = vsub.f32 %v689, %v2014
        %v2016 = vand.u32 %v2015, 4294901760
        %2017 = vmatprep.subr.mxu0 %v2016
        %v2018 = vand.u32 %v688, 4294901760
        %v2019 = vsub.f32 %v688, %v2018
        %v2020 = vand.u32 %v2019, 4294901760
        %2021 = vmatpush1.xpose.msra.mxu0 %v2020
        %v2022 = vand.u32 %v813, 4294901760
        %v2023 = vsub.f32 %v813, %v2022
        %v2024 = vand.u32 %v2023, 4294901760
        %2025 = vmatprep.subr.mxu0 %v2024
        %v2026 = vand.u32 %v812, 4294901760
        %v2027 = vsub.f32 %v812, %v2026
        %v2028 = vand.u32 %v2027, 4294901760
        %2029 = vmatpush2.xpose.msra.mxu0 %v2028
        %v2030 = vand.u32 %v809, 4294901760
        %v2031 = vsub.f32 %v809, %v2030
        %v2032 = vand.u32 %v2031, 4294901760
        %2033 = vmatprep.subr.mxu0 %v2032
        %v2034 = vand.u32 %v808, 4294901760
        %v2035 = vsub.f32 %v808, %v2034
        %v2036 = vand.u32 %v2035, 4294901760
        %2037 = vmatpush2.xpose.msra.mxu0 %v2036
        %v2038 = vand.u32 %v805, 4294901760
        %v2039 = vsub.f32 %v805, %v2038
        %v2040 = vand.u32 %v2039, 4294901760
        %2041 = vmatprep.subr.mxu0 %v2040
        %v2042 = vand.u32 %v804, 4294901760
        %v2043 = vsub.f32 %v804, %v2042
        %v2044 = vand.u32 %v2043, 4294901760
        %2045 = vmatpush2.xpose.msra.mxu0 %v2044
        %v2046 = vand.u32 %v801, 4294901760
        %v2047 = vsub.f32 %v801, %v2046
        %v2048 = vand.u32 %v2047, 4294901760
        %2049 = vmatprep.subr.mxu0 %v2048
        %v2050 = vand.u32 %v800, 4294901760
        %v2051 = vsub.f32 %v800, %v2050
        %v2052 = vand.u32 %v2051, 4294901760
        %2053 = vmatpush2.xpose.msra.mxu0 %v2052
        %v2054 = vand.u32 %v797, 4294901760
        %v2055 = vsub.f32 %v797, %v2054
        %v2056 = vand.u32 %v2055, 4294901760
        %2057 = vmatprep.subr.mxu0 %v2056
        %v2058 = vand.u32 %v796, 4294901760
        %v2059 = vsub.f32 %v796, %v2058
        %v2060 = vand.u32 %v2059, 4294901760
        %2061 = vmatpush2.xpose.msra.mxu0 %v2060
        %v2062 = vand.u32 %v793, 4294901760
        %v2063 = vsub.f32 %v793, %v2062
        %v2064 = vand.u32 %v2063, 4294901760
        %2065 = vmatprep.subr.mxu0 %v2064
        %v2066 = vand.u32 %v792, 4294901760
        %v2067 = vsub.f32 %v792, %v2066
        %v2068 = vand.u32 %v2067, 4294901760
        %2069 = vmatpush2.xpose.msra.mxu0 %v2068
        %v2070 = vand.u32 %v789, 4294901760
        %v2071 = vsub.f32 %v789, %v2070
        %v2072 = vand.u32 %v2071, 4294901760
        %2073 = vmatprep.subr.mxu0 %v2072
        %v2074 = vand.u32 %v788, 4294901760
        %v2075 = vsub.f32 %v788, %v2074
        %v2076 = vand.u32 %v2075, 4294901760
        %2077 = vmatpush2.xpose.msra.mxu0 %v2076
        %v2078 = vand.u32 %v785, 4294901760
        %v2079 = vsub.f32 %v785, %v2078
        %v2080 = vand.u32 %v2079, 4294901760
        %2081 = vmatprep.subr.mxu0 %v2080
        %v2082 = vand.u32 %v784, 4294901760
        %v2083 = vsub.f32 %v784, %v2082
        %v2084 = vand.u32 %v2083, 4294901760
        %2085 = vmatpush2.xpose.msra.mxu0 %v2084
        %v2086 = vand.u32 %v781, 4294901760
        %v2087 = vsub.f32 %v781, %v2086
        %v2088 = vand.u32 %v2087, 4294901760
        %2089 = vmatprep.subr.mxu0 %v2088
        %v2090 = vand.u32 %v780, 4294901760
        %v2091 = vsub.f32 %v780, %v2090
        %v2092 = vand.u32 %v2091, 4294901760
        %2093 = vmatpush2.xpose.msra.mxu0 %v2092
        %v2094 = vand.u32 %v777, 4294901760
        %v2095 = vsub.f32 %v777, %v2094
        %v2096 = vand.u32 %v2095, 4294901760
        %2097 = vmatprep.subr.mxu0 %v2096
        %v2098 = vand.u32 %v776, 4294901760
        %v2099 = vsub.f32 %v776, %v2098
        %v2100 = vand.u32 %v2099, 4294901760
        %2101 = vmatpush2.xpose.msra.mxu0 %v2100
        %v2102 = vand.u32 %v773, 4294901760
        %v2103 = vsub.f32 %v773, %v2102
        %v2104 = vand.u32 %v2103, 4294901760
        %2105 = vmatprep.subr.mxu0 %v2104
        %v2106 = vand.u32 %v772, 4294901760
        %v2107 = vsub.f32 %v772, %v2106
        %v2108 = vand.u32 %v2107, 4294901760
        %2109 = vmatpush2.xpose.msra.mxu0 %v2108
        %v2110 = vand.u32 %v769, 4294901760
        %v2111 = vsub.f32 %v769, %v2110
        %v2112 = vand.u32 %v2111, 4294901760
        %2113 = vmatprep.subr.mxu0 %v2112
        %v2114 = vand.u32 %v768, 4294901760
        %v2115 = vsub.f32 %v768, %v2114
        %v2116 = vand.u32 %v2115, 4294901760
        %2117 = vmatpush2.xpose.msra.mxu0 %v2116
        %v2118 = vand.u32 %v765, 4294901760
        %v2119 = vsub.f32 %v765, %v2118
        %v2120 = vand.u32 %v2119, 4294901760
        %2121 = vmatprep.subr.mxu0 %v2120
        %v2122 = vand.u32 %v764, 4294901760
        %v2123 = vsub.f32 %v764, %v2122
        %v2124 = vand.u32 %v2123, 4294901760
        %2125 = vmatpush2.xpose.msra.mxu0 %v2124
        %v2126 = vand.u32 %v761, 4294901760
        %v2127 = vsub.f32 %v761, %v2126
        %v2128 = vand.u32 %v2127, 4294901760
        %2129 = vmatprep.subr.mxu0 %v2128
        %v2130 = vand.u32 %v760, 4294901760
        %v2131 = vsub.f32 %v760, %v2130
        %v2132 = vand.u32 %v2131, 4294901760
        %2133 = vmatpush2.xpose.msra.mxu0 %v2132
        %v2134 = vand.u32 %v757, 4294901760
        %v2135 = vsub.f32 %v757, %v2134
        %v2136 = vand.u32 %v2135, 4294901760
        %2137 = vmatprep.subr.mxu0 %v2136
        %v2138 = vand.u32 %v756, 4294901760
        %v2139 = vsub.f32 %v756, %v2138
        %v2140 = vand.u32 %v2139, 4294901760
        %2141 = vmatpush2.xpose.msra.mxu0 %v2140
        %v2142 = vand.u32 %v753, 4294901760
        %v2143 = vsub.f32 %v753, %v2142
        %v2144 = vand.u32 %v2143, 4294901760
        %2145 = vmatprep.subr.mxu0 %v2144
        %v2146 = vand.u32 %v752, 4294901760
        %v2147 = vsub.f32 %v752, %v2146
        %v2148 = vand.u32 %v2147, 4294901760
        %2149 = vmatpush2.xpose.msra.mxu0 %v2148
        %v2150 = vand.u32 %v681, 4294901760
        %2151 = vmatprep.mubr.f32.mxu0 %v2150
        %v2152 = vand.u32 %v680, 4294901760
        %2153 = vmatmul.mubr.f32.gmra.mxu0 %v2152
        %v2154 = vpop.f32.mrf.mxu0
        %v2155 = vadd.f32 %v1878, %v2154
        %v2156 = vpop.f32.mrf.mxu0
        %v2157 = vadd.f32 %v1880, %v2156
        %v2158 = vand.u32 %v685, 4294901760
        %2159 = vmatprep.mubr.f32.mxu0 %v2158
        %v2160 = vand.u32 %v684, 4294901760
        %2161 = vmatmul.mubr.f32.gmra.mxu0 %v2160
        %v2162 = vpop.f32.mrf.mxu0
        %v2163 = vadd.f32 %v1890, %v2162
        %v2164 = vpop.f32.mrf.mxu0
        %v2165 = vadd.f32 %v1892, %v2164
        %2166 = vdwg.mxu0
        %v2167 = vand.u32 %v749, 4294901760
        %2168 = vmatprep.subr.mxu0 %v2167
        %v2169 = vand.u32 %v748, 4294901760
        %2170 = vmatpush1.xpose.msra.mxu0 %v2169
        %v2171 = vand.u32 %v745, 4294901760
        %2172 = vmatprep.subr.mxu0 %v2171
        %v2173 = vand.u32 %v744, 4294901760
        %2174 = vmatpush1.xpose.msra.mxu0 %v2173
        %v2175 = vand.u32 %v741, 4294901760
        %2176 = vmatprep.subr.mxu0 %v2175
        %v2177 = vand.u32 %v740, 4294901760
        %2178 = vmatpush1.xpose.msra.mxu0 %v2177
        %v2179 = vand.u32 %v737, 4294901760
        %2180 = vmatprep.subr.mxu0 %v2179
        %v2181 = vand.u32 %v736, 4294901760
        %2182 = vmatpush1.xpose.msra.mxu0 %v2181
        %v2183 = vand.u32 %v733, 4294901760
        %2184 = vmatprep.subr.mxu0 %v2183
        %v2185 = vand.u32 %v732, 4294901760
        %2186 = vmatpush1.xpose.msra.mxu0 %v2185
        %v2187 = vand.u32 %v729, 4294901760
        %2188 = vmatprep.subr.mxu0 %v2187
        %v2189 = vand.u32 %v728, 4294901760
        %2190 = vmatpush1.xpose.msra.mxu0 %v2189
        %v2191 = vand.u32 %v725, 4294901760
        %2192 = vmatprep.subr.mxu0 %v2191
        %v2193 = vand.u32 %v724, 4294901760
        %2194 = vmatpush1.xpose.msra.mxu0 %v2193
        %v2195 = vand.u32 %v721, 4294901760
        %2196 = vmatprep.subr.mxu0 %v2195
        %v2197 = vand.u32 %v720, 4294901760
        %2198 = vmatpush1.xpose.msra.mxu0 %v2197
        %v2199 = vand.u32 %v717, 4294901760
        %2200 = vmatprep.subr.mxu0 %v2199
        %v2201 = vand.u32 %v716, 4294901760
        %2202 = vmatpush1.xpose.msra.mxu0 %v2201
        %v2203 = vand.u32 %v713, 4294901760
        %2204 = vmatprep.subr.mxu0 %v2203
        %v2205 = vand.u32 %v712, 4294901760
        %2206 = vmatpush1.xpose.msra.mxu0 %v2205
        %v2207 = vand.u32 %v709, 4294901760
        %2208 = vmatprep.subr.mxu0 %v2207
        %v2209 = vand.u32 %v708, 4294901760
        %2210 = vmatpush1.xpose.msra.mxu0 %v2209
        %v2211 = vand.u32 %v705, 4294901760
        %2212 = vmatprep.subr.mxu0 %v2211
        %v2213 = vand.u32 %v704, 4294901760
        %2214 = vmatpush1.xpose.msra.mxu0 %v2213
        %v2215 = vand.u32 %v701, 4294901760
        %2216 = vmatprep.subr.mxu0 %v2215
        %v2217 = vand.u32 %v700, 4294901760
        %2218 = vmatpush1.xpose.msra.mxu0 %v2217
        %v2219 = vand.u32 %v697, 4294901760
        %2220 = vmatprep.subr.mxu0 %v2219
        %v2221 = vand.u32 %v696, 4294901760
        %2222 = vmatpush1.xpose.msra.mxu0 %v2221
        %v2223 = vand.u32 %v693, 4294901760
        %2224 = vmatprep.subr.mxu0 %v2223
        %v2225 = vand.u32 %v692, 4294901760
        %2226 = vmatpush1.xpose.msra.mxu0 %v2225
        %v2227 = vand.u32 %v689, 4294901760
        %2228 = vmatprep.subr.mxu0 %v2227
        %v2229 = vand.u32 %v688, 4294901760
        %2230 = vmatpush1.xpose.msra.mxu0 %v2229
        %v2231 = vand.u32 %v813, 4294901760
        %2232 = vmatprep.subr.mxu0 %v2231
        %v2233 = vand.u32 %v812, 4294901760
        %2234 = vmatpush2.xpose.msra.mxu0 %v2233
        %v2235 = vand.u32 %v809, 4294901760
        %2236 = vmatprep.subr.mxu0 %v2235
        %v2237 = vand.u32 %v808, 4294901760
        %2238 = vmatpush2.xpose.msra.mxu0 %v2237
        %v2239 = vand.u32 %v805, 4294901760
        %2240 = vmatprep.subr.mxu0 %v2239
        %v2241 = vand.u32 %v804, 4294901760
        %2242 = vmatpush2.xpose.msra.mxu0 %v2241
        %v2243 = vand.u32 %v801, 4294901760
        %2244 = vmatprep.subr.mxu0 %v2243
        %v2245 = vand.u32 %v800, 4294901760
        %2246 = vmatpush2.xpose.msra.mxu0 %v2245
        %v2247 = vand.u32 %v797, 4294901760
        %2248 = vmatprep.subr.mxu0 %v2247
        %v2249 = vand.u32 %v796, 4294901760
        %2250 = vmatpush2.xpose.msra.mxu0 %v2249
        %v2251 = vand.u32 %v793, 4294901760
        %2252 = vmatprep.subr.mxu0 %v2251
        %v2253 = vand.u32 %v792, 4294901760
        %2254 = vmatpush2.xpose.msra.mxu0 %v2253
        %v2255 = vand.u32 %v789, 4294901760
        %2256 = vmatprep.subr.mxu0 %v2255
        %v2257 = vand.u32 %v788, 4294901760
        %2258 = vmatpush2.xpose.msra.mxu0 %v2257
        %v2259 = vand.u32 %v785, 4294901760
        %2260 = vmatprep.subr.mxu0 %v2259
        %v2261 = vand.u32 %v784, 4294901760
        %2262 = vmatpush2.xpose.msra.mxu0 %v2261
        %v2263 = vand.u32 %v781, 4294901760
        %2264 = vmatprep.subr.mxu0 %v2263
        %v2265 = vand.u32 %v780, 4294901760
        %2266 = vmatpush2.xpose.msra.mxu0 %v2265
        %v2267 = vand.u32 %v777, 4294901760
        %2268 = vmatprep.subr.mxu0 %v2267
        %v2269 = vand.u32 %v776, 4294901760
        %2270 = vmatpush2.xpose.msra.mxu0 %v2269
        %v2271 = vand.u32 %v773, 4294901760
        %2272 = vmatprep.subr.mxu0 %v2271
        %v2273 = vand.u32 %v772, 4294901760
        %2274 = vmatpush2.xpose.msra.mxu0 %v2273
        %v2275 = vand.u32 %v769, 4294901760
        %2276 = vmatprep.subr.mxu0 %v2275
        %v2277 = vand.u32 %v768, 4294901760
        %2278 = vmatpush2.xpose.msra.mxu0 %v2277
        %v2279 = vand.u32 %v765, 4294901760
        %2280 = vmatprep.subr.mxu0 %v2279
        %v2281 = vand.u32 %v764, 4294901760
        %2282 = vmatpush2.xpose.msra.mxu0 %v2281
        %v2283 = vand.u32 %v761, 4294901760
        %2284 = vmatprep.subr.mxu0 %v2283
        %v2285 = vand.u32 %v760, 4294901760
        %2286 = vmatpush2.xpose.msra.mxu0 %v2285
        %v2287 = vand.u32 %v757, 4294901760
        %2288 = vmatprep.subr.mxu0 %v2287
        %v2289 = vand.u32 %v756, 4294901760
        %2290 = vmatpush2.xpose.msra.mxu0 %v2289
        %v2291 = vand.u32 %v753, 4294901760
        %2292 = vmatprep.subr.mxu0 %v2291
        %v2293 = vand.u32 %v752, 4294901760
        %2294 = vmatpush2.xpose.msra.mxu0 %v2293
        %v2295 = vand.u32 %v681, 4294901760
        %2296 = vmatprep.mubr.f32.mxu0 %v2295
        %v2297 = vand.u32 %v680, 4294901760
        %2298 = vmatmul.mubr.f32.gmra.mxu0 %v2297
        %v2299 = vpop.f32.mrf.mxu0
        %v2300 = vadd.f32 %v2155, %v2299
        %v2301 = vpop.f32.mrf.mxu0
        %v2302 = vadd.f32 %v2157, %v2301
        %v2303 = vand.u32 %v685, 4294901760
        %2304 = vmatprep.mubr.f32.mxu0 %v2303
        %v2305 = vand.u32 %v684, 4294901760
        %2306 = vmatmul.mubr.f32.gmra.mxu0 %v2305
        %v2307 = vpop.f32.mrf.mxu0
        %v2308 = vadd.f32 %v2163, %v2307
        %v2309 = vpop.f32.mrf.mxu0
        %v2310 = vadd.f32 %v2165, %v2309
        %2311 = vdwg.mxu0
        %v2312 = vand.u32 %v751, 4294901760
        %2313 = vmatprep.subr.mxu0 %v2312
        %v2314 = vand.u32 %v750, 4294901760
        %2315 = vmatpush1.xpose.msra.mxu0 %v2314
        %v2316 = vand.u32 %v747, 4294901760
        %2317 = vmatprep.subr.mxu0 %v2316
        %v2318 = vand.u32 %v746, 4294901760
        %2319 = vmatpush1.xpose.msra.mxu0 %v2318
        %v2320 = vand.u32 %v743, 4294901760
        %2321 = vmatprep.subr.mxu0 %v2320
        %v2322 = vand.u32 %v742, 4294901760
        %2323 = vmatpush1.xpose.msra.mxu0 %v2322
        %v2324 = vand.u32 %v739, 4294901760
        %2325 = vmatprep.subr.mxu0 %v2324
        %v2326 = vand.u32 %v738, 4294901760
        %2327 = vmatpush1.xpose.msra.mxu0 %v2326
        %v2328 = vand.u32 %v735, 4294901760
        %2329 = vmatprep.subr.mxu0 %v2328
        %v2330 = vand.u32 %v734, 4294901760
        %2331 = vmatpush1.xpose.msra.mxu0 %v2330
        %v2332 = vand.u32 %v731, 4294901760
        %2333 = vmatprep.subr.mxu0 %v2332
        %v2334 = vand.u32 %v730, 4294901760
        %2335 = vmatpush1.xpose.msra.mxu0 %v2334
        %v2336 = vand.u32 %v727, 4294901760
        %2337 = vmatprep.subr.mxu0 %v2336
        %v2338 = vand.u32 %v726, 4294901760
        %2339 = vmatpush1.xpose.msra.mxu0 %v2338
        %v2340 = vand.u32 %v723, 4294901760
        %2341 = vmatprep.subr.mxu0 %v2340
        %v2342 = vand.u32 %v722, 4294901760
        %2343 = vmatpush1.xpose.msra.mxu0 %v2342
        %v2344 = vand.u32 %v719, 4294901760
        %2345 = vmatprep.subr.mxu0 %v2344
        %v2346 = vand.u32 %v718, 4294901760
        %2347 = vmatpush1.xpose.msra.mxu0 %v2346
        %v2348 = vand.u32 %v715, 4294901760
        %2349 = vmatprep.subr.mxu0 %v2348
        %v2350 = vand.u32 %v714, 4294901760
        %2351 = vmatpush1.xpose.msra.mxu0 %v2350
        %v2352 = vand.u32 %v711, 4294901760
        %2353 = vmatprep.subr.mxu0 %v2352
        %v2354 = vand.u32 %v710, 4294901760
        %2355 = vmatpush1.xpose.msra.mxu0 %v2354
        %v2356 = vand.u32 %v707, 4294901760
        %2357 = vmatprep.subr.mxu0 %v2356
        %v2358 = vand.u32 %v706, 4294901760
        %2359 = vmatpush1.xpose.msra.mxu0 %v2358
        %v2360 = vand.u32 %v703, 4294901760
        %2361 = vmatprep.subr.mxu0 %v2360
        %v2362 = vand.u32 %v702, 4294901760
        %2363 = vmatpush1.xpose.msra.mxu0 %v2362
        %v2364 = vand.u32 %v699, 4294901760
        %2365 = vmatprep.subr.mxu0 %v2364
        %v2366 = vand.u32 %v698, 4294901760
        %2367 = vmatpush1.xpose.msra.mxu0 %v2366
        %v2368 = vand.u32 %v695, 4294901760
        %2369 = vmatprep.subr.mxu0 %v2368
        %v2370 = vand.u32 %v694, 4294901760
        %2371 = vmatpush1.xpose.msra.mxu0 %v2370
        %v2372 = vand.u32 %v691, 4294901760
        %2373 = vmatprep.subr.mxu0 %v2372
        %v2374 = vand.u32 %v690, 4294901760
        %2375 = vmatpush1.xpose.msra.mxu0 %v2374
        %v2376 = vand.u32 %v815, 4294901760
        %2377 = vmatprep.subr.mxu0 %v2376
        %v2378 = vand.u32 %v814, 4294901760
        %2379 = vmatpush2.xpose.msra.mxu0 %v2378
        %v2380 = vand.u32 %v811, 4294901760
        %2381 = vmatprep.subr.mxu0 %v2380
        %v2382 = vand.u32 %v810, 4294901760
        %2383 = vmatpush2.xpose.msra.mxu0 %v2382
        %v2384 = vand.u32 %v807, 4294901760
        %2385 = vmatprep.subr.mxu0 %v2384
        %v2386 = vand.u32 %v806, 4294901760
        %2387 = vmatpush2.xpose.msra.mxu0 %v2386
        %v2388 = vand.u32 %v803, 4294901760
        %2389 = vmatprep.subr.mxu0 %v2388
        %v2390 = vand.u32 %v802, 4294901760
        %2391 = vmatpush2.xpose.msra.mxu0 %v2390
        %v2392 = vand.u32 %v799, 4294901760
        %2393 = vmatprep.subr.mxu0 %v2392
        %v2394 = vand.u32 %v798, 4294901760
        %2395 = vmatpush2.xpose.msra.mxu0 %v2394
        %v2396 = vand.u32 %v795, 4294901760
        %2397 = vmatprep.subr.mxu0 %v2396
        %v2398 = vand.u32 %v794, 4294901760
        %2399 = vmatpush2.xpose.msra.mxu0 %v2398
        %v2400 = vand.u32 %v791, 4294901760
        %2401 = vmatprep.subr.mxu0 %v2400
        %v2402 = vand.u32 %v790, 4294901760
        %2403 = vmatpush2.xpose.msra.mxu0 %v2402
        %v2404 = vand.u32 %v787, 4294901760
        %2405 = vmatprep.subr.mxu0 %v2404
        %v2406 = vand.u32 %v786, 4294901760
        %2407 = vmatpush2.xpose.msra.mxu0 %v2406
        %v2408 = vand.u32 %v783, 4294901760
        %2409 = vmatprep.subr.mxu0 %v2408
        %v2410 = vand.u32 %v782, 4294901760
        %2411 = vmatpush2.xpose.msra.mxu0 %v2410
        %v2412 = vand.u32 %v779, 4294901760
        %2413 = vmatprep.subr.mxu0 %v2412
        %v2414 = vand.u32 %v778, 4294901760
        %2415 = vmatpush2.xpose.msra.mxu0 %v2414
        %v2416 = vand.u32 %v775, 4294901760
        %2417 = vmatprep.subr.mxu0 %v2416
        %v2418 = vand.u32 %v774, 4294901760
        %2419 = vmatpush2.xpose.msra.mxu0 %v2418
        %v2420 = vand.u32 %v771, 4294901760
        %2421 = vmatprep.subr.mxu0 %v2420
        %v2422 = vand.u32 %v770, 4294901760
        %2423 = vmatpush2.xpose.msra.mxu0 %v2422
        %v2424 = vand.u32 %v767, 4294901760
        %2425 = vmatprep.subr.mxu0 %v2424
        %v2426 = vand.u32 %v766, 4294901760
        %2427 = vmatpush2.xpose.msra.mxu0 %v2426
        %v2428 = vand.u32 %v763, 4294901760
        %2429 = vmatprep.subr.mxu0 %v2428
        %v2430 = vand.u32 %v762, 4294901760
        %2431 = vmatpush2.xpose.msra.mxu0 %v2430
        %v2432 = vand.u32 %v759, 4294901760
        %2433 = vmatprep.subr.mxu0 %v2432
        %v2434 = vand.u32 %v758, 4294901760
        %2435 = vmatpush2.xpose.msra.mxu0 %v2434
        %v2436 = vand.u32 %v755, 4294901760
        %2437 = vmatprep.subr.mxu0 %v2436
        %v2438 = vand.u32 %v754, 4294901760
        %2439 = vmatpush2.xpose.msra.mxu0 %v2438
        %v2440 = vand.u32 %v683, 4294901760
        %v2441 = vsub.f32 %v683, %v2440
        %v2442 = vand.u32 %v2441, 4294901760
        %v2443 = vsub.f32 %v2441, %v2442
        %v2444 = vand.u32 %v2443, 4294901760
        %2445 = vmatprep.mubr.f32.mxu0 %v2444
        %v2446 = vand.u32 %v682, 4294901760
        %v2447 = vsub.f32 %v682, %v2446
        %v2448 = vand.u32 %v2447, 4294901760
        %v2449 = vsub.f32 %v2447, %v2448
        %v2450 = vand.u32 %v2449, 4294901760
        %2451 = vmatmul.mubr.f32.gmra.mxu0 %v2450
        %v2452 = vpop.f32.mrf.mxu0
        %v2453 = vadd.f32 %v2300, %v2452
        %v2454 = vpop.f32.mrf.mxu0
        %v2455 = vadd.f32 %v2302, %v2454
        %v2456 = vand.u32 %v687, 4294901760
        %v2457 = vsub.f32 %v687, %v2456
        %v2458 = vand.u32 %v2457, 4294901760
        %v2459 = vsub.f32 %v2457, %v2458
        %v2460 = vand.u32 %v2459, 4294901760
        %2461 = vmatprep.mubr.f32.mxu0 %v2460
        %v2462 = vand.u32 %v686, 4294901760
        %v2463 = vsub.f32 %v686, %v2462
        %v2464 = vand.u32 %v2463, 4294901760
        %v2465 = vsub.f32 %v2463, %v2464
        %v2466 = vand.u32 %v2465, 4294901760
        %2467 = vmatmul.mubr.f32.gmra.mxu0 %v2466
        %v2468 = vpop.f32.mrf.mxu0
        %v2469 = vadd.f32 %v2308, %v2468
        %v2470 = vpop.f32.mrf.mxu0
        %v2471 = vadd.f32 %v2310, %v2470
        %2472 = vdwg.mxu0
        %v2473 = vand.u32 %v751, 4294901760
        %v2474 = vsub.f32 %v751, %v2473
        %v2475 = vand.u32 %v2474, 4294901760
        %v2476 = vsub.f32 %v2474, %v2475
        %v2477 = vand.u32 %v2476, 4294901760
        %2478 = vmatprep.subr.mxu0 %v2477
        %v2479 = vand.u32 %v750, 4294901760
        %v2480 = vsub.f32 %v750, %v2479
        %v2481 = vand.u32 %v2480, 4294901760
        %v2482 = vsub.f32 %v2480, %v2481
        %v2483 = vand.u32 %v2482, 4294901760
        %2484 = vmatpush1.xpose.msra.mxu0 %v2483
        %v2485 = vand.u32 %v747, 4294901760
        %v2486 = vsub.f32 %v747, %v2485
        %v2487 = vand.u32 %v2486, 4294901760
        %v2488 = vsub.f32 %v2486, %v2487
        %v2489 = vand.u32 %v2488, 4294901760
        %2490 = vmatprep.subr.mxu0 %v2489
        %v2491 = vand.u32 %v746, 4294901760
        %v2492 = vsub.f32 %v746, %v2491
        %v2493 = vand.u32 %v2492, 4294901760
        %v2494 = vsub.f32 %v2492, %v2493
        %v2495 = vand.u32 %v2494, 4294901760
        %2496 = vmatpush1.xpose.msra.mxu0 %v2495
        %v2497 = vand.u32 %v743, 4294901760
        %v2498 = vsub.f32 %v743, %v2497
        %v2499 = vand.u32 %v2498, 4294901760
        %v2500 = vsub.f32 %v2498, %v2499
        %v2501 = vand.u32 %v2500, 4294901760
        %2502 = vmatprep.subr.mxu0 %v2501
        %v2503 = vand.u32 %v742, 4294901760
        %v2504 = vsub.f32 %v742, %v2503
        %v2505 = vand.u32 %v2504, 4294901760
        %v2506 = vsub.f32 %v2504, %v2505
        %v2507 = vand.u32 %v2506, 4294901760
        %2508 = vmatpush1.xpose.msra.mxu0 %v2507
        %v2509 = vand.u32 %v739, 4294901760
        %v2510 = vsub.f32 %v739, %v2509
        %v2511 = vand.u32 %v2510, 4294901760
        %v2512 = vsub.f32 %v2510, %v2511
        %v2513 = vand.u32 %v2512, 4294901760
        %2514 = vmatprep.subr.mxu0 %v2513
        %v2515 = vand.u32 %v738, 4294901760
        %v2516 = vsub.f32 %v738, %v2515
        %v2517 = vand.u32 %v2516, 4294901760
        %v2518 = vsub.f32 %v2516, %v2517
        %v2519 = vand.u32 %v2518, 4294901760
        %2520 = vmatpush1.xpose.msra.mxu0 %v2519
        %v2521 = vand.u32 %v735, 4294901760
        %v2522 = vsub.f32 %v735, %v2521
        %v2523 = vand.u32 %v2522, 4294901760
        %v2524 = vsub.f32 %v2522, %v2523
        %v2525 = vand.u32 %v2524, 4294901760
        %2526 = vmatprep.subr.mxu0 %v2525
        %v2527 = vand.u32 %v734, 4294901760
        %v2528 = vsub.f32 %v734, %v2527
        %v2529 = vand.u32 %v2528, 4294901760
        %v2530 = vsub.f32 %v2528, %v2529
        %v2531 = vand.u32 %v2530, 4294901760
        %2532 = vmatpush1.xpose.msra.mxu0 %v2531
        %v2533 = vand.u32 %v731, 4294901760
        %v2534 = vsub.f32 %v731, %v2533
        %v2535 = vand.u32 %v2534, 4294901760
        %v2536 = vsub.f32 %v2534, %v2535
        %v2537 = vand.u32 %v2536, 4294901760
        %2538 = vmatprep.subr.mxu0 %v2537
        %v2539 = vand.u32 %v730, 4294901760
        %v2540 = vsub.f32 %v730, %v2539
        %v2541 = vand.u32 %v2540, 4294901760
        %v2542 = vsub.f32 %v2540, %v2541
        %v2543 = vand.u32 %v2542, 4294901760
        %2544 = vmatpush1.xpose.msra.mxu0 %v2543
        %v2545 = vand.u32 %v727, 4294901760
        %v2546 = vsub.f32 %v727, %v2545
        %v2547 = vand.u32 %v2546, 4294901760
        %v2548 = vsub.f32 %v2546, %v2547
        %v2549 = vand.u32 %v2548, 4294901760
        %2550 = vmatprep.subr.mxu0 %v2549
        %v2551 = vand.u32 %v726, 4294901760
        %v2552 = vsub.f32 %v726, %v2551
        %v2553 = vand.u32 %v2552, 4294901760
        %v2554 = vsub.f32 %v2552, %v2553
        %v2555 = vand.u32 %v2554, 4294901760
        %2556 = vmatpush1.xpose.msra.mxu0 %v2555
        %v2557 = vand.u32 %v723, 4294901760
        %v2558 = vsub.f32 %v723, %v2557
        %v2559 = vand.u32 %v2558, 4294901760
        %v2560 = vsub.f32 %v2558, %v2559
        %v2561 = vand.u32 %v2560, 4294901760
        %2562 = vmatprep.subr.mxu0 %v2561
        %v2563 = vand.u32 %v722, 4294901760
        %v2564 = vsub.f32 %v722, %v2563
        %v2565 = vand.u32 %v2564, 4294901760
        %v2566 = vsub.f32 %v2564, %v2565
        %v2567 = vand.u32 %v2566, 4294901760
        %2568 = vmatpush1.xpose.msra.mxu0 %v2567
        %v2569 = vand.u32 %v719, 4294901760
        %v2570 = vsub.f32 %v719, %v2569
        %v2571 = vand.u32 %v2570, 4294901760
        %v2572 = vsub.f32 %v2570, %v2571
        %v2573 = vand.u32 %v2572, 4294901760
        %2574 = vmatprep.subr.mxu0 %v2573
        %v2575 = vand.u32 %v718, 4294901760
        %v2576 = vsub.f32 %v718, %v2575
        %v2577 = vand.u32 %v2576, 4294901760
        %v2578 = vsub.f32 %v2576, %v2577
        %v2579 = vand.u32 %v2578, 4294901760
        %2580 = vmatpush1.xpose.msra.mxu0 %v2579
        %v2581 = vand.u32 %v715, 4294901760
        %v2582 = vsub.f32 %v715, %v2581
        %v2583 = vand.u32 %v2582, 4294901760
        %v2584 = vsub.f32 %v2582, %v2583
        %v2585 = vand.u32 %v2584, 4294901760
        %2586 = vmatprep.subr.mxu0 %v2585
        %v2587 = vand.u32 %v714, 4294901760
        %v2588 = vsub.f32 %v714, %v2587
        %v2589 = vand.u32 %v2588, 4294901760
        %v2590 = vsub.f32 %v2588, %v2589
        %v2591 = vand.u32 %v2590, 4294901760
        %2592 = vmatpush1.xpose.msra.mxu0 %v2591
        %v2593 = vand.u32 %v711, 4294901760
        %v2594 = vsub.f32 %v711, %v2593
        %v2595 = vand.u32 %v2594, 4294901760
        %v2596 = vsub.f32 %v2594, %v2595
        %v2597 = vand.u32 %v2596, 4294901760
        %2598 = vmatprep.subr.mxu0 %v2597
        %v2599 = vand.u32 %v710, 4294901760
        %v2600 = vsub.f32 %v710, %v2599
        %v2601 = vand.u32 %v2600, 4294901760
        %v2602 = vsub.f32 %v2600, %v2601
        %v2603 = vand.u32 %v2602, 4294901760
        %2604 = vmatpush1.xpose.msra.mxu0 %v2603
        %v2605 = vand.u32 %v707, 4294901760
        %v2606 = vsub.f32 %v707, %v2605
        %v2607 = vand.u32 %v2606, 4294901760
        %v2608 = vsub.f32 %v2606, %v2607
        %v2609 = vand.u32 %v2608, 4294901760
        %2610 = vmatprep.subr.mxu0 %v2609
        %v2611 = vand.u32 %v706, 4294901760
        %v2612 = vsub.f32 %v706, %v2611
        %v2613 = vand.u32 %v2612, 4294901760
        %v2614 = vsub.f32 %v2612, %v2613
        %v2615 = vand.u32 %v2614, 4294901760
        %2616 = vmatpush1.xpose.msra.mxu0 %v2615
        %v2617 = vand.u32 %v703, 4294901760
        %v2618 = vsub.f32 %v703, %v2617
        %v2619 = vand.u32 %v2618, 4294901760
        %v2620 = vsub.f32 %v2618, %v2619
        %v2621 = vand.u32 %v2620, 4294901760
        %2622 = vmatprep.subr.mxu0 %v2621
        %v2623 = vand.u32 %v702, 4294901760
        %v2624 = vsub.f32 %v702, %v2623
        %v2625 = vand.u32 %v2624, 4294901760
        %v2626 = vsub.f32 %v2624, %v2625
        %v2627 = vand.u32 %v2626, 4294901760
        %2628 = vmatpush1.xpose.msra.mxu0 %v2627
        %v2629 = vand.u32 %v699, 4294901760
        %v2630 = vsub.f32 %v699, %v2629
        %v2631 = vand.u32 %v2630, 4294901760
        %v2632 = vsub.f32 %v2630, %v2631
        %v2633 = vand.u32 %v2632, 4294901760
        %2634 = vmatprep.subr.mxu0 %v2633
        %v2635 = vand.u32 %v698, 4294901760
        %v2636 = vsub.f32 %v698, %v2635
        %v2637 = vand.u32 %v2636, 4294901760
        %v2638 = vsub.f32 %v2636, %v2637
        %v2639 = vand.u32 %v2638, 4294901760
        %2640 = vmatpush1.xpose.msra.mxu0 %v2639
        %v2641 = vand.u32 %v695, 4294901760
        %v2642 = vsub.f32 %v695, %v2641
        %v2643 = vand.u32 %v2642, 4294901760
        %v2644 = vsub.f32 %v2642, %v2643
        %v2645 = vand.u32 %v2644, 4294901760
        %2646 = vmatprep.subr.mxu0 %v2645
        %v2647 = vand.u32 %v694, 4294901760
        %v2648 = vsub.f32 %v694, %v2647
        %v2649 = vand.u32 %v2648, 4294901760
        %v2650 = vsub.f32 %v2648, %v2649
        %v2651 = vand.u32 %v2650, 4294901760
        %2652 = vmatpush1.xpose.msra.mxu0 %v2651
        %v2653 = vand.u32 %v691, 4294901760
        %v2654 = vsub.f32 %v691, %v2653
        %v2655 = vand.u32 %v2654, 4294901760
        %v2656 = vsub.f32 %v2654, %v2655
        %v2657 = vand.u32 %v2656, 4294901760
        %2658 = vmatprep.subr.mxu0 %v2657
        %v2659 = vand.u32 %v690, 4294901760
        %v2660 = vsub.f32 %v690, %v2659
        %v2661 = vand.u32 %v2660, 4294901760
        %v2662 = vsub.f32 %v2660, %v2661
        %v2663 = vand.u32 %v2662, 4294901760
        %2664 = vmatpush1.xpose.msra.mxu0 %v2663
        %v2665 = vand.u32 %v815, 4294901760
        %v2666 = vsub.f32 %v815, %v2665
        %v2667 = vand.u32 %v2666, 4294901760
        %v2668 = vsub.f32 %v2666, %v2667
        %v2669 = vand.u32 %v2668, 4294901760
        %2670 = vmatprep.subr.mxu0 %v2669
        %v2671 = vand.u32 %v814, 4294901760
        %v2672 = vsub.f32 %v814, %v2671
        %v2673 = vand.u32 %v2672, 4294901760
        %v2674 = vsub.f32 %v2672, %v2673
        %v2675 = vand.u32 %v2674, 4294901760
        %2676 = vmatpush2.xpose.msra.mxu0 %v2675
        %v2677 = vand.u32 %v811, 4294901760
        %v2678 = vsub.f32 %v811, %v2677
        %v2679 = vand.u32 %v2678, 4294901760
        %v2680 = vsub.f32 %v2678, %v2679
        %v2681 = vand.u32 %v2680, 4294901760
        %2682 = vmatprep.subr.mxu0 %v2681
        %v2683 = vand.u32 %v810, 4294901760
        %v2684 = vsub.f32 %v810, %v2683
        %v2685 = vand.u32 %v2684, 4294901760
        %v2686 = vsub.f32 %v2684, %v2685
        %v2687 = vand.u32 %v2686, 4294901760
        %2688 = vmatpush2.xpose.msra.mxu0 %v2687
        %v2689 = vand.u32 %v807, 4294901760
        %v2690 = vsub.f32 %v807, %v2689
        %v2691 = vand.u32 %v2690, 4294901760
        %v2692 = vsub.f32 %v2690, %v2691
        %v2693 = vand.u32 %v2692, 4294901760
        %2694 = vmatprep.subr.mxu0 %v2693
        %v2695 = vand.u32 %v806, 4294901760
        %v2696 = vsub.f32 %v806, %v2695
        %v2697 = vand.u32 %v2696, 4294901760
        %v2698 = vsub.f32 %v2696, %v2697
        %v2699 = vand.u32 %v2698, 4294901760
        %2700 = vmatpush2.xpose.msra.mxu0 %v2699
        %v2701 = vand.u32 %v803, 4294901760
        %v2702 = vsub.f32 %v803, %v2701
        %v2703 = vand.u32 %v2702, 4294901760
        %v2704 = vsub.f32 %v2702, %v2703
        %v2705 = vand.u32 %v2704, 4294901760
        %2706 = vmatprep.subr.mxu0 %v2705
        %v2707 = vand.u32 %v802, 4294901760
        %v2708 = vsub.f32 %v802, %v2707
        %v2709 = vand.u32 %v2708, 4294901760
        %v2710 = vsub.f32 %v2708, %v2709
        %v2711 = vand.u32 %v2710, 4294901760
        %2712 = vmatpush2.xpose.msra.mxu0 %v2711
        %v2713 = vand.u32 %v799, 4294901760
        %v2714 = vsub.f32 %v799, %v2713
        %v2715 = vand.u32 %v2714, 4294901760
        %v2716 = vsub.f32 %v2714, %v2715
        %v2717 = vand.u32 %v2716, 4294901760
        %2718 = vmatprep.subr.mxu0 %v2717
        %v2719 = vand.u32 %v798, 4294901760
        %v2720 = vsub.f32 %v798, %v2719
        %v2721 = vand.u32 %v2720, 4294901760
        %v2722 = vsub.f32 %v2720, %v2721
        %v2723 = vand.u32 %v2722, 4294901760
        %2724 = vmatpush2.xpose.msra.mxu0 %v2723
        %v2725 = vand.u32 %v795, 4294901760
        %v2726 = vsub.f32 %v795, %v2725
        %v2727 = vand.u32 %v2726, 4294901760
        %v2728 = vsub.f32 %v2726, %v2727
        %v2729 = vand.u32 %v2728, 4294901760
        %2730 = vmatprep.subr.mxu0 %v2729
        %v2731 = vand.u32 %v794, 4294901760
        %v2732 = vsub.f32 %v794, %v2731
        %v2733 = vand.u32 %v2732, 4294901760
        %v2734 = vsub.f32 %v2732, %v2733
        %v2735 = vand.u32 %v2734, 4294901760
        %2736 = vmatpush2.xpose.msra.mxu0 %v2735
        %v2737 = vand.u32 %v791, 4294901760
        %v2738 = vsub.f32 %v791, %v2737
        %v2739 = vand.u32 %v2738, 4294901760
        %v2740 = vsub.f32 %v2738, %v2739
        %v2741 = vand.u32 %v2740, 4294901760
        %2742 = vmatprep.subr.mxu0 %v2741
        %v2743 = vand.u32 %v790, 4294901760
        %v2744 = vsub.f32 %v790, %v2743
        %v2745 = vand.u32 %v2744, 4294901760
        %v2746 = vsub.f32 %v2744, %v2745
        %v2747 = vand.u32 %v2746, 4294901760
        %2748 = vmatpush2.xpose.msra.mxu0 %v2747
        %v2749 = vand.u32 %v787, 4294901760
        %v2750 = vsub.f32 %v787, %v2749
        %v2751 = vand.u32 %v2750, 4294901760
        %v2752 = vsub.f32 %v2750, %v2751
        %v2753 = vand.u32 %v2752, 4294901760
        %2754 = vmatprep.subr.mxu0 %v2753
        %v2755 = vand.u32 %v786, 4294901760
        %v2756 = vsub.f32 %v786, %v2755
        %v2757 = vand.u32 %v2756, 4294901760
        %v2758 = vsub.f32 %v2756, %v2757
        %v2759 = vand.u32 %v2758, 4294901760
        %2760 = vmatpush2.xpose.msra.mxu0 %v2759
        %v2761 = vand.u32 %v783, 4294901760
        %v2762 = vsub.f32 %v783, %v2761
        %v2763 = vand.u32 %v2762, 4294901760
        %v2764 = vsub.f32 %v2762, %v2763
        %v2765 = vand.u32 %v2764, 4294901760
        %2766 = vmatprep.subr.mxu0 %v2765
        %v2767 = vand.u32 %v782, 4294901760
        %v2768 = vsub.f32 %v782, %v2767
        %v2769 = vand.u32 %v2768, 4294901760
        %v2770 = vsub.f32 %v2768, %v2769
        %v2771 = vand.u32 %v2770, 4294901760
        %2772 = vmatpush2.xpose.msra.mxu0 %v2771
        %v2773 = vand.u32 %v779, 4294901760
        %v2774 = vsub.f32 %v779, %v2773
        %v2775 = vand.u32 %v2774, 4294901760
        %v2776 = vsub.f32 %v2774, %v2775
        %v2777 = vand.u32 %v2776, 4294901760
        %2778 = vmatprep.subr.mxu0 %v2777
        %v2779 = vand.u32 %v778, 4294901760
        %v2780 = vsub.f32 %v778, %v2779
        %v2781 = vand.u32 %v2780, 4294901760
        %v2782 = vsub.f32 %v2780, %v2781
        %v2783 = vand.u32 %v2782, 4294901760
        %2784 = vmatpush2.xpose.msra.mxu0 %v2783
        %v2785 = vand.u32 %v775, 4294901760
        %v2786 = vsub.f32 %v775, %v2785
        %v2787 = vand.u32 %v2786, 4294901760
        %v2788 = vsub.f32 %v2786, %v2787
        %v2789 = vand.u32 %v2788, 4294901760
        %2790 = vmatprep.subr.mxu0 %v2789
        %v2791 = vand.u32 %v774, 4294901760
        %v2792 = vsub.f32 %v774, %v2791
        %v2793 = vand.u32 %v2792, 4294901760
        %v2794 = vsub.f32 %v2792, %v2793
        %v2795 = vand.u32 %v2794, 4294901760
        %2796 = vmatpush2.xpose.msra.mxu0 %v2795
        %v2797 = vand.u32 %v771, 4294901760
        %v2798 = vsub.f32 %v771, %v2797
        %v2799 = vand.u32 %v2798, 4294901760
        %v2800 = vsub.f32 %v2798, %v2799
        %v2801 = vand.u32 %v2800, 4294901760
        %2802 = vmatprep.subr.mxu0 %v2801
        %v2803 = vand.u32 %v770, 4294901760
        %v2804 = vsub.f32 %v770, %v2803
        %v2805 = vand.u32 %v2804, 4294901760
        %v2806 = vsub.f32 %v2804, %v2805
        %v2807 = vand.u32 %v2806, 4294901760
        %2808 = vmatpush2.xpose.msra.mxu0 %v2807
        %v2809 = vand.u32 %v767, 4294901760
        %v2810 = vsub.f32 %v767, %v2809
        %v2811 = vand.u32 %v2810, 4294901760
        %v2812 = vsub.f32 %v2810, %v2811
        %v2813 = vand.u32 %v2812, 4294901760
        %2814 = vmatprep.subr.mxu0 %v2813
        %v2815 = vand.u32 %v766, 4294901760
        %v2816 = vsub.f32 %v766, %v2815
        %v2817 = vand.u32 %v2816, 4294901760
        %v2818 = vsub.f32 %v2816, %v2817
        %v2819 = vand.u32 %v2818, 4294901760
        %2820 = vmatpush2.xpose.msra.mxu0 %v2819
        %v2821 = vand.u32 %v763, 4294901760
        %v2822 = vsub.f32 %v763, %v2821
        %v2823 = vand.u32 %v2822, 4294901760
        %v2824 = vsub.f32 %v2822, %v2823
        %v2825 = vand.u32 %v2824, 4294901760
        %2826 = vmatprep.subr.mxu0 %v2825
        %v2827 = vand.u32 %v762, 4294901760
        %v2828 = vsub.f32 %v762, %v2827
        %v2829 = vand.u32 %v2828, 4294901760
        %v2830 = vsub.f32 %v2828, %v2829
        %v2831 = vand.u32 %v2830, 4294901760
        %2832 = vmatpush2.xpose.msra.mxu0 %v2831
        %v2833 = vand.u32 %v759, 4294901760
        %v2834 = vsub.f32 %v759, %v2833
        %v2835 = vand.u32 %v2834, 4294901760
        %v2836 = vsub.f32 %v2834, %v2835
        %v2837 = vand.u32 %v2836, 4294901760
        %2838 = vmatprep.subr.mxu0 %v2837
        %v2839 = vand.u32 %v758, 4294901760
        %v2840 = vsub.f32 %v758, %v2839
        %v2841 = vand.u32 %v2840, 4294901760
        %v2842 = vsub.f32 %v2840, %v2841
        %v2843 = vand.u32 %v2842, 4294901760
        %2844 = vmatpush2.xpose.msra.mxu0 %v2843
        %v2845 = vand.u32 %v755, 4294901760
        %v2846 = vsub.f32 %v755, %v2845
        %v2847 = vand.u32 %v2846, 4294901760
        %v2848 = vsub.f32 %v2846, %v2847
        %v2849 = vand.u32 %v2848, 4294901760
        %2850 = vmatprep.subr.mxu0 %v2849
        %v2851 = vand.u32 %v754, 4294901760
        %v2852 = vsub.f32 %v754, %v2851
        %v2853 = vand.u32 %v2852, 4294901760
        %v2854 = vsub.f32 %v2852, %v2853
        %v2855 = vand.u32 %v2854, 4294901760
        %2856 = vmatpush2.xpose.msra.mxu0 %v2855
        %v2857 = vand.u32 %v683, 4294901760
        %2858 = vmatprep.mubr.f32.mxu0 %v2857
        %v2859 = vand.u32 %v682, 4294901760
        %2860 = vmatmul.mubr.f32.gmra.mxu0 %v2859
        %v2861 = vpop.f32.mrf.mxu0
        %v2862 = vadd.f32 %v2453, %v2861
        %v2863 = vpop.f32.mrf.mxu0
        %v2864 = vadd.f32 %v2455, %v2863
        %v2865 = vand.u32 %v687, 4294901760
        %2866 = vmatprep.mubr.f32.mxu0 %v2865
        %v2867 = vand.u32 %v686, 4294901760
        %2868 = vmatmul.mubr.f32.gmra.mxu0 %v2867
        %v2869 = vpop.f32.mrf.mxu0
        %v2870 = vadd.f32 %v2469, %v2869
        %v2871 = vpop.f32.mrf.mxu0
        %v2872 = vadd.f32 %v2471, %v2871
        %2873 = vdwg.mxu0
        %v2874 = vand.u32 %v751, 4294901760
        %v2875 = vsub.f32 %v751, %v2874
        %2876 = vmatprep.subr.mxu0 %v2875
        %v2877 = vand.u32 %v750, 4294901760
        %v2878 = vsub.f32 %v750, %v2877
        %2879 = vmatpush1.xpose.msra.mxu0 %v2878
        %v2880 = vand.u32 %v747, 4294901760
        %v2881 = vsub.f32 %v747, %v2880
        %2882 = vmatprep.subr.mxu0 %v2881
        %v2883 = vand.u32 %v746, 4294901760
        %v2884 = vsub.f32 %v746, %v2883
        %2885 = vmatpush1.xpose.msra.mxu0 %v2884
        %v2886 = vand.u32 %v743, 4294901760
        %v2887 = vsub.f32 %v743, %v2886
        %2888 = vmatprep.subr.mxu0 %v2887
        %v2889 = vand.u32 %v742, 4294901760
        %v2890 = vsub.f32 %v742, %v2889
        %2891 = vmatpush1.xpose.msra.mxu0 %v2890
        %v2892 = vand.u32 %v739, 4294901760
        %v2893 = vsub.f32 %v739, %v2892
        %2894 = vmatprep.subr.mxu0 %v2893
        %v2895 = vand.u32 %v738, 4294901760
        %v2896 = vsub.f32 %v738, %v2895
        %2897 = vmatpush1.xpose.msra.mxu0 %v2896
        %v2898 = vand.u32 %v735, 4294901760
        %v2899 = vsub.f32 %v735, %v2898
        %2900 = vmatprep.subr.mxu0 %v2899
        %v2901 = vand.u32 %v734, 4294901760
        %v2902 = vsub.f32 %v734, %v2901
        %2903 = vmatpush1.xpose.msra.mxu0 %v2902
        %v2904 = vand.u32 %v731, 4294901760
        %v2905 = vsub.f32 %v731, %v2904
        %2906 = vmatprep.subr.mxu0 %v2905
        %v2907 = vand.u32 %v730, 4294901760
        %v2908 = vsub.f32 %v730, %v2907
        %2909 = vmatpush1.xpose.msra.mxu0 %v2908
        %v2910 = vand.u32 %v727, 4294901760
        %v2911 = vsub.f32 %v727, %v2910
        %2912 = vmatprep.subr.mxu0 %v2911
        %v2913 = vand.u32 %v726, 4294901760
        %v2914 = vsub.f32 %v726, %v2913
        %2915 = vmatpush1.xpose.msra.mxu0 %v2914
        %v2916 = vand.u32 %v723, 4294901760
        %v2917 = vsub.f32 %v723, %v2916
        %2918 = vmatprep.subr.mxu0 %v2917
        %v2919 = vand.u32 %v722, 4294901760
        %v2920 = vsub.f32 %v722, %v2919
        %2921 = vmatpush1.xpose.msra.mxu0 %v2920
        %v2922 = vand.u32 %v719, 4294901760
        %v2923 = vsub.f32 %v719, %v2922
        %2924 = vmatprep.subr.mxu0 %v2923
        %v2925 = vand.u32 %v718, 4294901760
        %v2926 = vsub.f32 %v718, %v2925
        %2927 = vmatpush1.xpose.msra.mxu0 %v2926
        %v2928 = vand.u32 %v715, 4294901760
        %v2929 = vsub.f32 %v715, %v2928
        %2930 = vmatprep.subr.mxu0 %v2929
        %v2931 = vand.u32 %v714, 4294901760
        %v2932 = vsub.f32 %v714, %v2931
        %2933 = vmatpush1.xpose.msra.mxu0 %v2932
        %v2934 = vand.u32 %v711, 4294901760
        %v2935 = vsub.f32 %v711, %v2934
        %2936 = vmatprep.subr.mxu0 %v2935
        %v2937 = vand.u32 %v710, 4294901760
        %v2938 = vsub.f32 %v710, %v2937
        %2939 = vmatpush1.xpose.msra.mxu0 %v2938
        %v2940 = vand.u32 %v707, 4294901760
        %v2941 = vsub.f32 %v707, %v2940
        %2942 = vmatprep.subr.mxu0 %v2941
        %v2943 = vand.u32 %v706, 4294901760
        %v2944 = vsub.f32 %v706, %v2943
        %2945 = vmatpush1.xpose.msra.mxu0 %v2944
        %v2946 = vand.u32 %v703, 4294901760
        %v2947 = vsub.f32 %v703, %v2946
        %2948 = vmatprep.subr.mxu0 %v2947
        %v2949 = vand.u32 %v702, 4294901760
        %v2950 = vsub.f32 %v702, %v2949
        %2951 = vmatpush1.xpose.msra.mxu0 %v2950
        %v2952 = vand.u32 %v699, 4294901760
        %v2953 = vsub.f32 %v699, %v2952
        %2954 = vmatprep.subr.mxu0 %v2953
        %v2955 = vand.u32 %v698, 4294901760
        %v2956 = vsub.f32 %v698, %v2955
        %2957 = vmatpush1.xpose.msra.mxu0 %v2956
        %v2958 = vand.u32 %v695, 4294901760
        %v2959 = vsub.f32 %v695, %v2958
        %2960 = vmatprep.subr.mxu0 %v2959
        %v2961 = vand.u32 %v694, 4294901760
        %v2962 = vsub.f32 %v694, %v2961
        %2963 = vmatpush1.xpose.msra.mxu0 %v2962
        %v2964 = vand.u32 %v691, 4294901760
        %v2965 = vsub.f32 %v691, %v2964
        %2966 = vmatprep.subr.mxu0 %v2965
        %v2967 = vand.u32 %v690, 4294901760
        %v2968 = vsub.f32 %v690, %v2967
        %2969 = vmatpush1.xpose.msra.mxu0 %v2968
        %v2970 = vand.u32 %v815, 4294901760
        %v2971 = vsub.f32 %v815, %v2970
        %2972 = vmatprep.subr.mxu0 %v2971
        %v2973 = vand.u32 %v814, 4294901760
        %v2974 = vsub.f32 %v814, %v2973
        %2975 = vmatpush2.xpose.msra.mxu0 %v2974
        %v2976 = vand.u32 %v811, 4294901760
        %v2977 = vsub.f32 %v811, %v2976
        %2978 = vmatprep.subr.mxu0 %v2977
        %v2979 = vand.u32 %v810, 4294901760
        %v2980 = vsub.f32 %v810, %v2979
        %2981 = vmatpush2.xpose.msra.mxu0 %v2980
        %v2982 = vand.u32 %v807, 4294901760
        %v2983 = vsub.f32 %v807, %v2982
        %2984 = vmatprep.subr.mxu0 %v2983
        %v2985 = vand.u32 %v806, 4294901760
        %v2986 = vsub.f32 %v806, %v2985
        %2987 = vmatpush2.xpose.msra.mxu0 %v2986
        %v2988 = vand.u32 %v803, 4294901760
        %v2989 = vsub.f32 %v803, %v2988
        %2990 = vmatprep.subr.mxu0 %v2989
        %v2991 = vand.u32 %v802, 4294901760
        %v2992 = vsub.f32 %v802, %v2991
        %2993 = vmatpush2.xpose.msra.mxu0 %v2992
        %v2994 = vand.u32 %v799, 4294901760
        %v2995 = vsub.f32 %v799, %v2994
        %2996 = vmatprep.subr.mxu0 %v2995
        %v2997 = vand.u32 %v798, 4294901760
        %v2998 = vsub.f32 %v798, %v2997
        %2999 = vmatpush2.xpose.msra.mxu0 %v2998
        %v3000 = vand.u32 %v795, 4294901760
        %v3001 = vsub.f32 %v795, %v3000
        %3002 = vmatprep.subr.mxu0 %v3001
        %v3003 = vand.u32 %v794, 4294901760
        %v3004 = vsub.f32 %v794, %v3003
        %3005 = vmatpush2.xpose.msra.mxu0 %v3004
        %v3006 = vand.u32 %v791, 4294901760
        %v3007 = vsub.f32 %v791, %v3006
        %3008 = vmatprep.subr.mxu0 %v3007
        %v3009 = vand.u32 %v790, 4294901760
        %v3010 = vsub.f32 %v790, %v3009
        %3011 = vmatpush2.xpose.msra.mxu0 %v3010
        %v3012 = vand.u32 %v787, 4294901760
        %v3013 = vsub.f32 %v787, %v3012
        %3014 = vmatprep.subr.mxu0 %v3013
        %v3015 = vand.u32 %v786, 4294901760
        %v3016 = vsub.f32 %v786, %v3015
        %3017 = vmatpush2.xpose.msra.mxu0 %v3016
        %v3018 = vand.u32 %v783, 4294901760
        %v3019 = vsub.f32 %v783, %v3018
        %3020 = vmatprep.subr.mxu0 %v3019
        %v3021 = vand.u32 %v782, 4294901760
        %v3022 = vsub.f32 %v782, %v3021
        %3023 = vmatpush2.xpose.msra.mxu0 %v3022
        %v3024 = vand.u32 %v779, 4294901760
        %v3025 = vsub.f32 %v779, %v3024
        %3026 = vmatprep.subr.mxu0 %v3025
        %v3027 = vand.u32 %v778, 4294901760
        %v3028 = vsub.f32 %v778, %v3027
        %3029 = vmatpush2.xpose.msra.mxu0 %v3028
        %v3030 = vand.u32 %v775, 4294901760
        %v3031 = vsub.f32 %v775, %v3030
        %3032 = vmatprep.subr.mxu0 %v3031
        %v3033 = vand.u32 %v774, 4294901760
        %v3034 = vsub.f32 %v774, %v3033
        %3035 = vmatpush2.xpose.msra.mxu0 %v3034
        %v3036 = vand.u32 %v771, 4294901760
        %v3037 = vsub.f32 %v771, %v3036
        %3038 = vmatprep.subr.mxu0 %v3037
        %v3039 = vand.u32 %v770, 4294901760
        %v3040 = vsub.f32 %v770, %v3039
        %3041 = vmatpush2.xpose.msra.mxu0 %v3040
        %v3042 = vand.u32 %v767, 4294901760
        %v3043 = vsub.f32 %v767, %v3042
        %3044 = vmatprep.subr.mxu0 %v3043
        %v3045 = vand.u32 %v766, 4294901760
        %v3046 = vsub.f32 %v766, %v3045
        %3047 = vmatpush2.xpose.msra.mxu0 %v3046
        %v3048 = vand.u32 %v763, 4294901760
        %v3049 = vsub.f32 %v763, %v3048
        %3050 = vmatprep.subr.mxu0 %v3049
        %v3051 = vand.u32 %v762, 4294901760
        %v3052 = vsub.f32 %v762, %v3051
        %3053 = vmatpush2.xpose.msra.mxu0 %v3052
        %v3054 = vand.u32 %v759, 4294901760
        %v3055 = vsub.f32 %v759, %v3054
        %3056 = vmatprep.subr.mxu0 %v3055
        %v3057 = vand.u32 %v758, 4294901760
        %v3058 = vsub.f32 %v758, %v3057
        %3059 = vmatpush2.xpose.msra.mxu0 %v3058
        %v3060 = vand.u32 %v755, 4294901760
        %v3061 = vsub.f32 %v755, %v3060
        %3062 = vmatprep.subr.mxu0 %v3061
        %v3063 = vand.u32 %v754, 4294901760
        %v3064 = vsub.f32 %v754, %v3063
        %3065 = vmatpush2.xpose.msra.mxu0 %v3064
        %v3066 = vand.u32 %v683, 4294901760
        %v3067 = vsub.f32 %v683, %v3066
        %3068 = vmatprep.mubr.f32.mxu0 %v3067
        %v3069 = vand.u32 %v682, 4294901760
        %v3070 = vsub.f32 %v682, %v3069
        %3071 = vmatmul.mubr.f32.gmra.mxu0 %v3070
        %v3072 = vpop.f32.mrf.mxu0
        %v3073 = vadd.f32 %v2862, %v3072
        %v3074 = vpop.f32.mrf.mxu0
        %v3075 = vadd.f32 %v2864, %v3074
        %v3076 = vand.u32 %v687, 4294901760
        %v3077 = vsub.f32 %v687, %v3076
        %3078 = vmatprep.mubr.f32.mxu0 %v3077
        %v3079 = vand.u32 %v686, 4294901760
        %v3080 = vsub.f32 %v686, %v3079
        %3081 = vmatmul.mubr.f32.gmra.mxu0 %v3080
        %v3082 = vpop.f32.mrf.mxu0
        %v3083 = vadd.f32 %v2870, %v3082
        %v3084 = vpop.f32.mrf.mxu0
        %v3085 = vadd.f32 %v2872, %v3084
        %3086 = vdwg.mxu0
        %v3087 = vand.u32 %v751, 4294901760
        %3088 = vmatprep.subr.mxu0 %v3087
        %v3089 = vand.u32 %v750, 4294901760
        %3090 = vmatpush1.xpose.msra.mxu0 %v3089
        %v3091 = vand.u32 %v747, 4294901760
        %3092 = vmatprep.subr.mxu0 %v3091
        %v3093 = vand.u32 %v746, 4294901760
        %3094 = vmatpush1.xpose.msra.mxu0 %v3093
        %v3095 = vand.u32 %v743, 4294901760
        %3096 = vmatprep.subr.mxu0 %v3095
        %v3097 = vand.u32 %v742, 4294901760
        %3098 = vmatpush1.xpose.msra.mxu0 %v3097
        %v3099 = vand.u32 %v739, 4294901760
        %3100 = vmatprep.subr.mxu0 %v3099
        %v3101 = vand.u32 %v738, 4294901760
        %3102 = vmatpush1.xpose.msra.mxu0 %v3101
        %v3103 = vand.u32 %v735, 4294901760
        %3104 = vmatprep.subr.mxu0 %v3103
        %v3105 = vand.u32 %v734, 4294901760
        %3106 = vmatpush1.xpose.msra.mxu0 %v3105
        %v3107 = vand.u32 %v731, 4294901760
        %3108 = vmatprep.subr.mxu0 %v3107
        %v3109 = vand.u32 %v730, 4294901760
        %3110 = vmatpush1.xpose.msra.mxu0 %v3109
        %v3111 = vand.u32 %v727, 4294901760
        %3112 = vmatprep.subr.mxu0 %v3111
        %v3113 = vand.u32 %v726, 4294901760
        %3114 = vmatpush1.xpose.msra.mxu0 %v3113
        %v3115 = vand.u32 %v723, 4294901760
        %3116 = vmatprep.subr.mxu0 %v3115
        %v3117 = vand.u32 %v722, 4294901760
        %3118 = vmatpush1.xpose.msra.mxu0 %v3117
        %v3119 = vand.u32 %v719, 4294901760
        %3120 = vmatprep.subr.mxu0 %v3119
        %v3121 = vand.u32 %v718, 4294901760
        %3122 = vmatpush1.xpose.msra.mxu0 %v3121
        %v3123 = vand.u32 %v715, 4294901760
        %3124 = vmatprep.subr.mxu0 %v3123
        %v3125 = vand.u32 %v714, 4294901760
        %3126 = vmatpush1.xpose.msra.mxu0 %v3125
        %v3127 = vand.u32 %v711, 4294901760
        %3128 = vmatprep.subr.mxu0 %v3127
        %v3129 = vand.u32 %v710, 4294901760
        %3130 = vmatpush1.xpose.msra.mxu0 %v3129
        %v3131 = vand.u32 %v707, 4294901760
        %3132 = vmatprep.subr.mxu0 %v3131
        %v3133 = vand.u32 %v706, 4294901760
        %3134 = vmatpush1.xpose.msra.mxu0 %v3133
        %v3135 = vand.u32 %v703, 4294901760
        %3136 = vmatprep.subr.mxu0 %v3135
        %v3137 = vand.u32 %v702, 4294901760
        %3138 = vmatpush1.xpose.msra.mxu0 %v3137
        %v3139 = vand.u32 %v699, 4294901760
        %3140 = vmatprep.subr.mxu0 %v3139
        %v3141 = vand.u32 %v698, 4294901760
        %3142 = vmatpush1.xpose.msra.mxu0 %v3141
        %v3143 = vand.u32 %v695, 4294901760
        %3144 = vmatprep.subr.mxu0 %v3143
        %v3145 = vand.u32 %v694, 4294901760
        %3146 = vmatpush1.xpose.msra.mxu0 %v3145
        %v3147 = vand.u32 %v691, 4294901760
        %3148 = vmatprep.subr.mxu0 %v3147
        %v3149 = vand.u32 %v690, 4294901760
        %3150 = vmatpush1.xpose.msra.mxu0 %v3149
        %v3151 = vand.u32 %v815, 4294901760
        %3152 = vmatprep.subr.mxu0 %v3151
        %v3153 = vand.u32 %v814, 4294901760
        %3154 = vmatpush2.xpose.msra.mxu0 %v3153
        %v3155 = vand.u32 %v811, 4294901760
        %3156 = vmatprep.subr.mxu0 %v3155
        %v3157 = vand.u32 %v810, 4294901760
        %3158 = vmatpush2.xpose.msra.mxu0 %v3157
        %v3159 = vand.u32 %v807, 4294901760
        %3160 = vmatprep.subr.mxu0 %v3159
        %v3161 = vand.u32 %v806, 4294901760
        %3162 = vmatpush2.xpose.msra.mxu0 %v3161
        %v3163 = vand.u32 %v803, 4294901760
        %3164 = vmatprep.subr.mxu0 %v3163
        %v3165 = vand.u32 %v802, 4294901760
        %3166 = vmatpush2.xpose.msra.mxu0 %v3165
        %v3167 = vand.u32 %v799, 4294901760
        %3168 = vmatprep.subr.mxu0 %v3167
        %v3169 = vand.u32 %v798, 4294901760
        %3170 = vmatpush2.xpose.msra.mxu0 %v3169
        %v3171 = vand.u32 %v795, 4294901760
        %3172 = vmatprep.subr.mxu0 %v3171
        %v3173 = vand.u32 %v794, 4294901760
        %3174 = vmatpush2.xpose.msra.mxu0 %v3173
        %v3175 = vand.u32 %v791, 4294901760
        %3176 = vmatprep.subr.mxu0 %v3175
        %v3177 = vand.u32 %v790, 4294901760
        %3178 = vmatpush2.xpose.msra.mxu0 %v3177
        %v3179 = vand.u32 %v787, 4294901760
        %3180 = vmatprep.subr.mxu0 %v3179
        %v3181 = vand.u32 %v786, 4294901760
        %3182 = vmatpush2.xpose.msra.mxu0 %v3181
        %v3183 = vand.u32 %v783, 4294901760
        %3184 = vmatprep.subr.mxu0 %v3183
        %v3185 = vand.u32 %v782, 4294901760
        %3186 = vmatpush2.xpose.msra.mxu0 %v3185
        %v3187 = vand.u32 %v779, 4294901760
        %3188 = vmatprep.subr.mxu0 %v3187
        %v3189 = vand.u32 %v778, 4294901760
        %3190 = vmatpush2.xpose.msra.mxu0 %v3189
        %v3191 = vand.u32 %v775, 4294901760
        %3192 = vmatprep.subr.mxu0 %v3191
        %v3193 = vand.u32 %v774, 4294901760
        %3194 = vmatpush2.xpose.msra.mxu0 %v3193
        %v3195 = vand.u32 %v771, 4294901760
        %3196 = vmatprep.subr.mxu0 %v3195
        %v3197 = vand.u32 %v770, 4294901760
        %3198 = vmatpush2.xpose.msra.mxu0 %v3197
        %v3199 = vand.u32 %v767, 4294901760
        %3200 = vmatprep.subr.mxu0 %v3199
        %v3201 = vand.u32 %v766, 4294901760
        %3202 = vmatpush2.xpose.msra.mxu0 %v3201
        %v3203 = vand.u32 %v763, 4294901760
        %3204 = vmatprep.subr.mxu0 %v3203
        %v3205 = vand.u32 %v762, 4294901760
        %3206 = vmatpush2.xpose.msra.mxu0 %v3205
        %v3207 = vand.u32 %v759, 4294901760
        %3208 = vmatprep.subr.mxu0 %v3207
        %v3209 = vand.u32 %v758, 4294901760
        %3210 = vmatpush2.xpose.msra.mxu0 %v3209
        %v3211 = vand.u32 %v755, 4294901760
        %3212 = vmatprep.subr.mxu0 %v3211
        %v3213 = vand.u32 %v754, 4294901760
        %3214 = vmatpush2.xpose.msra.mxu0 %v3213
        %v3215 = vand.u32 %v683, 4294901760
        %v3216 = vsub.f32 %v683, %v3215
        %v3217 = vand.u32 %v3216, 4294901760
        %3218 = vmatprep.mubr.f32.mxu0 %v3217
        %v3219 = vand.u32 %v682, 4294901760
        %v3220 = vsub.f32 %v682, %v3219
        %v3221 = vand.u32 %v3220, 4294901760
        %3222 = vmatmul.mubr.f32.gmra.mxu0 %v3221
        %v3223 = vpop.f32.mrf.mxu0
        %v3224 = vadd.f32 %v3073, %v3223
        %v3225 = vpop.f32.mrf.mxu0
        %v3226 = vadd.f32 %v3075, %v3225
        %v3227 = vand.u32 %v687, 4294901760
        %v3228 = vsub.f32 %v687, %v3227
        %v3229 = vand.u32 %v3228, 4294901760
        %3230 = vmatprep.mubr.f32.mxu0 %v3229
        %v3231 = vand.u32 %v686, 4294901760
        %v3232 = vsub.f32 %v686, %v3231
        %v3233 = vand.u32 %v3232, 4294901760
        %3234 = vmatmul.mubr.f32.gmra.mxu0 %v3233
        %v3235 = vpop.f32.mrf.mxu0
        %v3236 = vadd.f32 %v3083, %v3235
        %v3237 = vpop.f32.mrf.mxu0
        %v3238 = vadd.f32 %v3085, %v3237
        %3239 = vdwg.mxu0
        %v3240 = vand.u32 %v751, 4294901760
        %v3241 = vsub.f32 %v751, %v3240
        %v3242 = vand.u32 %v3241, 4294901760
        %3243 = vmatprep.subr.mxu0 %v3242
        %v3244 = vand.u32 %v750, 4294901760
        %v3245 = vsub.f32 %v750, %v3244
        %v3246 = vand.u32 %v3245, 4294901760
        %3247 = vmatpush1.xpose.msra.mxu0 %v3246
        %v3248 = vand.u32 %v747, 4294901760
        %v3249 = vsub.f32 %v747, %v3248
        %v3250 = vand.u32 %v3249, 4294901760
        %3251 = vmatprep.subr.mxu0 %v3250
        %v3252 = vand.u32 %v746, 4294901760
        %v3253 = vsub.f32 %v746, %v3252
        %v3254 = vand.u32 %v3253, 4294901760
        %3255 = vmatpush1.xpose.msra.mxu0 %v3254
        %v3256 = vand.u32 %v743, 4294901760
        %v3257 = vsub.f32 %v743, %v3256
        %v3258 = vand.u32 %v3257, 4294901760
        %3259 = vmatprep.subr.mxu0 %v3258
        %v3260 = vand.u32 %v742, 4294901760
        %v3261 = vsub.f32 %v742, %v3260
        %v3262 = vand.u32 %v3261, 4294901760
        %3263 = vmatpush1.xpose.msra.mxu0 %v3262
        %v3264 = vand.u32 %v739, 4294901760
        %v3265 = vsub.f32 %v739, %v3264
        %v3266 = vand.u32 %v3265, 4294901760
        %3267 = vmatprep.subr.mxu0 %v3266
        %v3268 = vand.u32 %v738, 4294901760
        %v3269 = vsub.f32 %v738, %v3268
        %v3270 = vand.u32 %v3269, 4294901760
        %3271 = vmatpush1.xpose.msra.mxu0 %v3270
        %v3272 = vand.u32 %v735, 4294901760
        %v3273 = vsub.f32 %v735, %v3272
        %v3274 = vand.u32 %v3273, 4294901760
        %3275 = vmatprep.subr.mxu0 %v3274
        %v3276 = vand.u32 %v734, 4294901760
        %v3277 = vsub.f32 %v734, %v3276
        %v3278 = vand.u32 %v3277, 4294901760
        %3279 = vmatpush1.xpose.msra.mxu0 %v3278
        %v3280 = vand.u32 %v731, 4294901760
        %v3281 = vsub.f32 %v731, %v3280
        %v3282 = vand.u32 %v3281, 4294901760
        %3283 = vmatprep.subr.mxu0 %v3282
        %v3284 = vand.u32 %v730, 4294901760
        %v3285 = vsub.f32 %v730, %v3284
        %v3286 = vand.u32 %v3285, 4294901760
        %3287 = vmatpush1.xpose.msra.mxu0 %v3286
        %v3288 = vand.u32 %v727, 4294901760
        %v3289 = vsub.f32 %v727, %v3288
        %v3290 = vand.u32 %v3289, 4294901760
        %3291 = vmatprep.subr.mxu0 %v3290
        %v3292 = vand.u32 %v726, 4294901760
        %v3293 = vsub.f32 %v726, %v3292
        %v3294 = vand.u32 %v3293, 4294901760
        %3295 = vmatpush1.xpose.msra.mxu0 %v3294
        %v3296 = vand.u32 %v723, 4294901760
        %v3297 = vsub.f32 %v723, %v3296
        %v3298 = vand.u32 %v3297, 4294901760
        %3299 = vmatprep.subr.mxu0 %v3298
        %v3300 = vand.u32 %v722, 4294901760
        %v3301 = vsub.f32 %v722, %v3300
        %v3302 = vand.u32 %v3301, 4294901760
        %3303 = vmatpush1.xpose.msra.mxu0 %v3302
        %v3304 = vand.u32 %v719, 4294901760
        %v3305 = vsub.f32 %v719, %v3304
        %v3306 = vand.u32 %v3305, 4294901760
        %3307 = vmatprep.subr.mxu0 %v3306
        %v3308 = vand.u32 %v718, 4294901760
        %v3309 = vsub.f32 %v718, %v3308
        %v3310 = vand.u32 %v3309, 4294901760
        %3311 = vmatpush1.xpose.msra.mxu0 %v3310
        %v3312 = vand.u32 %v715, 4294901760
        %v3313 = vsub.f32 %v715, %v3312
        %v3314 = vand.u32 %v3313, 4294901760
        %3315 = vmatprep.subr.mxu0 %v3314
        %v3316 = vand.u32 %v714, 4294901760
        %v3317 = vsub.f32 %v714, %v3316
        %v3318 = vand.u32 %v3317, 4294901760
        %3319 = vmatpush1.xpose.msra.mxu0 %v3318
        %v3320 = vand.u32 %v711, 4294901760
        %v3321 = vsub.f32 %v711, %v3320
        %v3322 = vand.u32 %v3321, 4294901760
        %3323 = vmatprep.subr.mxu0 %v3322
        %v3324 = vand.u32 %v710, 4294901760
        %v3325 = vsub.f32 %v710, %v3324
        %v3326 = vand.u32 %v3325, 4294901760
        %3327 = vmatpush1.xpose.msra.mxu0 %v3326
        %v3328 = vand.u32 %v707, 4294901760
        %v3329 = vsub.f32 %v707, %v3328
        %v3330 = vand.u32 %v3329, 4294901760
        %3331 = vmatprep.subr.mxu0 %v3330
        %v3332 = vand.u32 %v706, 4294901760
        %v3333 = vsub.f32 %v706, %v3332
        %v3334 = vand.u32 %v3333, 4294901760
        %3335 = vmatpush1.xpose.msra.mxu0 %v3334
        %v3336 = vand.u32 %v703, 4294901760
        %v3337 = vsub.f32 %v703, %v3336
        %v3338 = vand.u32 %v3337, 4294901760
        %3339 = vmatprep.subr.mxu0 %v3338
        %v3340 = vand.u32 %v702, 4294901760
        %v3341 = vsub.f32 %v702, %v3340
        %v3342 = vand.u32 %v3341, 4294901760
        %3343 = vmatpush1.xpose.msra.mxu0 %v3342
        %v3344 = vand.u32 %v699, 4294901760
        %v3345 = vsub.f32 %v699, %v3344
        %v3346 = vand.u32 %v3345, 4294901760
        %3347 = vmatprep.subr.mxu0 %v3346
        %v3348 = vand.u32 %v698, 4294901760
        %v3349 = vsub.f32 %v698, %v3348
        %v3350 = vand.u32 %v3349, 4294901760
        %3351 = vmatpush1.xpose.msra.mxu0 %v3350
        %v3352 = vand.u32 %v695, 4294901760
        %v3353 = vsub.f32 %v695, %v3352
        %v3354 = vand.u32 %v3353, 4294901760
        %3355 = vmatprep.subr.mxu0 %v3354
        %v3356 = vand.u32 %v694, 4294901760
        %v3357 = vsub.f32 %v694, %v3356
        %v3358 = vand.u32 %v3357, 4294901760
        %3359 = vmatpush1.xpose.msra.mxu0 %v3358
        %v3360 = vand.u32 %v691, 4294901760
        %v3361 = vsub.f32 %v691, %v3360
        %v3362 = vand.u32 %v3361, 4294901760
        %3363 = vmatprep.subr.mxu0 %v3362
        %v3364 = vand.u32 %v690, 4294901760
        %v3365 = vsub.f32 %v690, %v3364
        %v3366 = vand.u32 %v3365, 4294901760
        %3367 = vmatpush1.xpose.msra.mxu0 %v3366
        %v3368 = vand.u32 %v815, 4294901760
        %v3369 = vsub.f32 %v815, %v3368
        %v3370 = vand.u32 %v3369, 4294901760
        %3371 = vmatprep.subr.mxu0 %v3370
        %v3372 = vand.u32 %v814, 4294901760
        %v3373 = vsub.f32 %v814, %v3372
        %v3374 = vand.u32 %v3373, 4294901760
        %3375 = vmatpush2.xpose.msra.mxu0 %v3374
        %v3376 = vand.u32 %v811, 4294901760
        %v3377 = vsub.f32 %v811, %v3376
        %v3378 = vand.u32 %v3377, 4294901760
        %3379 = vmatprep.subr.mxu0 %v3378
        %v3380 = vand.u32 %v810, 4294901760
        %v3381 = vsub.f32 %v810, %v3380
        %v3382 = vand.u32 %v3381, 4294901760
        %3383 = vmatpush2.xpose.msra.mxu0 %v3382
        %v3384 = vand.u32 %v807, 4294901760
        %v3385 = vsub.f32 %v807, %v3384
        %v3386 = vand.u32 %v3385, 4294901760
        %3387 = vmatprep.subr.mxu0 %v3386
        %v3388 = vand.u32 %v806, 4294901760
        %v3389 = vsub.f32 %v806, %v3388
        %v3390 = vand.u32 %v3389, 4294901760
        %3391 = vmatpush2.xpose.msra.mxu0 %v3390
        %v3392 = vand.u32 %v803, 4294901760
        %v3393 = vsub.f32 %v803, %v3392
        %v3394 = vand.u32 %v3393, 4294901760
        %3395 = vmatprep.subr.mxu0 %v3394
        %v3396 = vand.u32 %v802, 4294901760
        %v3397 = vsub.f32 %v802, %v3396
        %v3398 = vand.u32 %v3397, 4294901760
        %3399 = vmatpush2.xpose.msra.mxu0 %v3398
        %v3400 = vand.u32 %v799, 4294901760
        %v3401 = vsub.f32 %v799, %v3400
        %v3402 = vand.u32 %v3401, 4294901760
        %3403 = vmatprep.subr.mxu0 %v3402
        %v3404 = vand.u32 %v798, 4294901760
        %v3405 = vsub.f32 %v798, %v3404
        %v3406 = vand.u32 %v3405, 4294901760
        %3407 = vmatpush2.xpose.msra.mxu0 %v3406
        %v3408 = vand.u32 %v795, 4294901760
        %v3409 = vsub.f32 %v795, %v3408
        %v3410 = vand.u32 %v3409, 4294901760
        %3411 = vmatprep.subr.mxu0 %v3410
        %v3412 = vand.u32 %v794, 4294901760
        %v3413 = vsub.f32 %v794, %v3412
        %v3414 = vand.u32 %v3413, 4294901760
        %3415 = vmatpush2.xpose.msra.mxu0 %v3414
        %v3416 = vand.u32 %v791, 4294901760
        %v3417 = vsub.f32 %v791, %v3416
        %v3418 = vand.u32 %v3417, 4294901760
        %3419 = vmatprep.subr.mxu0 %v3418
        %v3420 = vand.u32 %v790, 4294901760
        %v3421 = vsub.f32 %v790, %v3420
        %v3422 = vand.u32 %v3421, 4294901760
        %3423 = vmatpush2.xpose.msra.mxu0 %v3422
        %v3424 = vand.u32 %v787, 4294901760
        %v3425 = vsub.f32 %v787, %v3424
        %v3426 = vand.u32 %v3425, 4294901760
        %3427 = vmatprep.subr.mxu0 %v3426
        %v3428 = vand.u32 %v786, 4294901760
        %v3429 = vsub.f32 %v786, %v3428
        %v3430 = vand.u32 %v3429, 4294901760
        %3431 = vmatpush2.xpose.msra.mxu0 %v3430
        %v3432 = vand.u32 %v783, 4294901760
        %v3433 = vsub.f32 %v783, %v3432
        %v3434 = vand.u32 %v3433, 4294901760
        %3435 = vmatprep.subr.mxu0 %v3434
        %v3436 = vand.u32 %v782, 4294901760
        %v3437 = vsub.f32 %v782, %v3436
        %v3438 = vand.u32 %v3437, 4294901760
        %3439 = vmatpush2.xpose.msra.mxu0 %v3438
        %v3440 = vand.u32 %v779, 4294901760
        %v3441 = vsub.f32 %v779, %v3440
        %v3442 = vand.u32 %v3441, 4294901760
        %3443 = vmatprep.subr.mxu0 %v3442
        %v3444 = vand.u32 %v778, 4294901760
        %v3445 = vsub.f32 %v778, %v3444
        %v3446 = vand.u32 %v3445, 4294901760
        %3447 = vmatpush2.xpose.msra.mxu0 %v3446
        %v3448 = vand.u32 %v775, 4294901760
        %v3449 = vsub.f32 %v775, %v3448
        %v3450 = vand.u32 %v3449, 4294901760
        %3451 = vmatprep.subr.mxu0 %v3450
        %v3452 = vand.u32 %v774, 4294901760
        %v3453 = vsub.f32 %v774, %v3452
        %v3454 = vand.u32 %v3453, 4294901760
        %3455 = vmatpush2.xpose.msra.mxu0 %v3454
        %v3456 = vand.u32 %v771, 4294901760
        %v3457 = vsub.f32 %v771, %v3456
        %v3458 = vand.u32 %v3457, 4294901760
        %3459 = vmatprep.subr.mxu0 %v3458
        %v3460 = vand.u32 %v770, 4294901760
        %v3461 = vsub.f32 %v770, %v3460
        %v3462 = vand.u32 %v3461, 4294901760
        %3463 = vmatpush2.xpose.msra.mxu0 %v3462
        %v3464 = vand.u32 %v767, 4294901760
        %v3465 = vsub.f32 %v767, %v3464
        %v3466 = vand.u32 %v3465, 4294901760
        %3467 = vmatprep.subr.mxu0 %v3466
        %v3468 = vand.u32 %v766, 4294901760
        %v3469 = vsub.f32 %v766, %v3468
        %v3470 = vand.u32 %v3469, 4294901760
        %3471 = vmatpush2.xpose.msra.mxu0 %v3470
        %v3472 = vand.u32 %v763, 4294901760
        %v3473 = vsub.f32 %v763, %v3472
        %v3474 = vand.u32 %v3473, 4294901760
        %3475 = vmatprep.subr.mxu0 %v3474
        %v3476 = vand.u32 %v762, 4294901760
        %v3477 = vsub.f32 %v762, %v3476
        %v3478 = vand.u32 %v3477, 4294901760
        %3479 = vmatpush2.xpose.msra.mxu0 %v3478
        %v3480 = vand.u32 %v759, 4294901760
        %v3481 = vsub.f32 %v759, %v3480
        %v3482 = vand.u32 %v3481, 4294901760
        %3483 = vmatprep.subr.mxu0 %v3482
        %v3484 = vand.u32 %v758, 4294901760
        %v3485 = vsub.f32 %v758, %v3484
        %v3486 = vand.u32 %v3485, 4294901760
        %3487 = vmatpush2.xpose.msra.mxu0 %v3486
        %v3488 = vand.u32 %v755, 4294901760
        %v3489 = vsub.f32 %v755, %v3488
        %v3490 = vand.u32 %v3489, 4294901760
        %3491 = vmatprep.subr.mxu0 %v3490
        %v3492 = vand.u32 %v754, 4294901760
        %v3493 = vsub.f32 %v754, %v3492
        %v3494 = vand.u32 %v3493, 4294901760
        %3495 = vmatpush2.xpose.msra.mxu0 %v3494
        %v3496 = vand.u32 %v683, 4294901760
        %3497 = vmatprep.mubr.f32.mxu0 %v3496
        %v3498 = vand.u32 %v682, 4294901760
        %3499 = vmatmul.mubr.f32.gmra.mxu0 %v3498
        %v3500 = vpop.f32.mrf.mxu0
        %v3501 = vadd.f32 %v3224, %v3500
        %v3502 = vpop.f32.mrf.mxu0
        %v3503 = vadd.f32 %v3226, %v3502
        %v3504 = vand.u32 %v687, 4294901760
        %3505 = vmatprep.mubr.f32.mxu0 %v3504
        %v3506 = vand.u32 %v686, 4294901760
        %3507 = vmatmul.mubr.f32.gmra.mxu0 %v3506
        %v3508 = vpop.f32.mrf.mxu0
        %v3509 = vadd.f32 %v3236, %v3508
        %v3510 = vpop.f32.mrf.mxu0
        %v3511 = vadd.f32 %v3238, %v3510
        %3512 = vdwg.mxu0
        %v3513 = vand.u32 %v751, 4294901760
        %3514 = vmatprep.subr.mxu0 %v3513
        %v3515 = vand.u32 %v750, 4294901760
        %3516 = vmatpush1.xpose.msra.mxu0 %v3515
        %v3517 = vand.u32 %v747, 4294901760
        %3518 = vmatprep.subr.mxu0 %v3517
        %v3519 = vand.u32 %v746, 4294901760
        %3520 = vmatpush1.xpose.msra.mxu0 %v3519
        %v3521 = vand.u32 %v743, 4294901760
        %3522 = vmatprep.subr.mxu0 %v3521
        %v3523 = vand.u32 %v742, 4294901760
        %3524 = vmatpush1.xpose.msra.mxu0 %v3523
        %v3525 = vand.u32 %v739, 4294901760
        %3526 = vmatprep.subr.mxu0 %v3525
        %v3527 = vand.u32 %v738, 4294901760
        %3528 = vmatpush1.xpose.msra.mxu0 %v3527
        %v3529 = vand.u32 %v735, 4294901760
        %3530 = vmatprep.subr.mxu0 %v3529
        %v3531 = vand.u32 %v734, 4294901760
        %3532 = vmatpush1.xpose.msra.mxu0 %v3531
        %v3533 = vand.u32 %v731, 4294901760
        %3534 = vmatprep.subr.mxu0 %v3533
        %v3535 = vand.u32 %v730, 4294901760
        %3536 = vmatpush1.xpose.msra.mxu0 %v3535
        %v3537 = vand.u32 %v727, 4294901760
        %3538 = vmatprep.subr.mxu0 %v3537
        %v3539 = vand.u32 %v726, 4294901760
        %3540 = vmatpush1.xpose.msra.mxu0 %v3539
        %v3541 = vand.u32 %v723, 4294901760
        %3542 = vmatprep.subr.mxu0 %v3541
        %v3543 = vand.u32 %v722, 4294901760
        %3544 = vmatpush1.xpose.msra.mxu0 %v3543
        %v3545 = vand.u32 %v719, 4294901760
        %3546 = vmatprep.subr.mxu0 %v3545
        %v3547 = vand.u32 %v718, 4294901760
        %3548 = vmatpush1.xpose.msra.mxu0 %v3547
        %v3549 = vand.u32 %v715, 4294901760
        %3550 = vmatprep.subr.mxu0 %v3549
        %v3551 = vand.u32 %v714, 4294901760
        %3552 = vmatpush1.xpose.msra.mxu0 %v3551
        %v3553 = vand.u32 %v711, 4294901760
        %3554 = vmatprep.subr.mxu0 %v3553
        %v3555 = vand.u32 %v710, 4294901760
        %3556 = vmatpush1.xpose.msra.mxu0 %v3555
        %v3557 = vand.u32 %v707, 4294901760
        %3558 = vmatprep.subr.mxu0 %v3557
        %v3559 = vand.u32 %v706, 4294901760
        %3560 = vmatpush1.xpose.msra.mxu0 %v3559
        %v3561 = vand.u32 %v703, 4294901760
        %3562 = vmatprep.subr.mxu0 %v3561
        %v3563 = vand.u32 %v702, 4294901760
        %3564 = vmatpush1.xpose.msra.mxu0 %v3563
        %v3565 = vand.u32 %v699, 4294901760
        %3566 = vmatprep.subr.mxu0 %v3565
        %v3567 = vand.u32 %v698, 4294901760
        %3568 = vmatpush1.xpose.msra.mxu0 %v3567
        %v3569 = vand.u32 %v695, 4294901760
        %3570 = vmatprep.subr.mxu0 %v3569
        %v3571 = vand.u32 %v694, 4294901760
        %3572 = vmatpush1.xpose.msra.mxu0 %v3571
        %v3573 = vand.u32 %v691, 4294901760
        %3574 = vmatprep.subr.mxu0 %v3573
        %v3575 = vand.u32 %v690, 4294901760
        %3576 = vmatpush1.xpose.msra.mxu0 %v3575
        %v3577 = vand.u32 %v815, 4294901760
        %3578 = vmatprep.subr.mxu0 %v3577
        %v3579 = vand.u32 %v814, 4294901760
        %3580 = vmatpush2.xpose.msra.mxu0 %v3579
        %v3581 = vand.u32 %v811, 4294901760
        %3582 = vmatprep.subr.mxu0 %v3581
        %v3583 = vand.u32 %v810, 4294901760
        %3584 = vmatpush2.xpose.msra.mxu0 %v3583
        %v3585 = vand.u32 %v807, 4294901760
        %3586 = vmatprep.subr.mxu0 %v3585
        %v3587 = vand.u32 %v806, 4294901760
        %3588 = vmatpush2.xpose.msra.mxu0 %v3587
        %v3589 = vand.u32 %v803, 4294901760
        %3590 = vmatprep.subr.mxu0 %v3589
        %v3591 = vand.u32 %v802, 4294901760
        %3592 = vmatpush2.xpose.msra.mxu0 %v3591
        %v3593 = vand.u32 %v799, 4294901760
        %3594 = vmatprep.subr.mxu0 %v3593
        %v3595 = vand.u32 %v798, 4294901760
        %3596 = vmatpush2.xpose.msra.mxu0 %v3595
        %v3597 = vand.u32 %v795, 4294901760
        %3598 = vmatprep.subr.mxu0 %v3597
        %v3599 = vand.u32 %v794, 4294901760
        %3600 = vmatpush2.xpose.msra.mxu0 %v3599
        %v3601 = vand.u32 %v791, 4294901760
        %3602 = vmatprep.subr.mxu0 %v3601
        %v3603 = vand.u32 %v790, 4294901760
        %3604 = vmatpush2.xpose.msra.mxu0 %v3603
        %v3605 = vand.u32 %v787, 4294901760
        %3606 = vmatprep.subr.mxu0 %v3605
        %v3607 = vand.u32 %v786, 4294901760
        %3608 = vmatpush2.xpose.msra.mxu0 %v3607
        %v3609 = vand.u32 %v783, 4294901760
        %3610 = vmatprep.subr.mxu0 %v3609
        %v3611 = vand.u32 %v782, 4294901760
        %3612 = vmatpush2.xpose.msra.mxu0 %v3611
        %v3613 = vand.u32 %v779, 4294901760
        %3614 = vmatprep.subr.mxu0 %v3613
        %v3615 = vand.u32 %v778, 4294901760
        %3616 = vmatpush2.xpose.msra.mxu0 %v3615
        %v3617 = vand.u32 %v775, 4294901760
        %3618 = vmatprep.subr.mxu0 %v3617
        %v3619 = vand.u32 %v774, 4294901760
        %3620 = vmatpush2.xpose.msra.mxu0 %v3619
        %v3621 = vand.u32 %v771, 4294901760
        %3622 = vmatprep.subr.mxu0 %v3621
        %v3623 = vand.u32 %v770, 4294901760
        %3624 = vmatpush2.xpose.msra.mxu0 %v3623
        %v3625 = vand.u32 %v767, 4294901760
        %3626 = vmatprep.subr.mxu0 %v3625
        %v3627 = vand.u32 %v766, 4294901760
        %3628 = vmatpush2.xpose.msra.mxu0 %v3627
        %v3629 = vand.u32 %v763, 4294901760
        %3630 = vmatprep.subr.mxu0 %v3629
        %v3631 = vand.u32 %v762, 4294901760
        %3632 = vmatpush2.xpose.msra.mxu0 %v3631
        %v3633 = vand.u32 %v759, 4294901760
        %3634 = vmatprep.subr.mxu0 %v3633
        %v3635 = vand.u32 %v758, 4294901760
        %3636 = vmatpush2.xpose.msra.mxu0 %v3635
        %v3637 = vand.u32 %v755, 4294901760
        %3638 = vmatprep.subr.mxu0 %v3637
        %v3639 = vand.u32 %v754, 4294901760
        %3640 = vmatpush2.xpose.msra.mxu0 %v3639
        %v3641 = vand.u32 %v683, 4294901760
        %3642 = vmatprep.mubr.f32.mxu0 %v3641
        %v3643 = vand.u32 %v682, 4294901760
        %3644 = vmatmul.mubr.f32.gmra.mxu0 %v3643
        %v3645 = vpop.f32.mrf.mxu0
        %v3646 = vadd.f32 %v3501, %v3645
        %v3647 = vpop.f32.mrf.mxu0
        %v3648 = vadd.f32 %v3503, %v3647
        %v3649 = vand.u32 %v687, 4294901760
        %3650 = vmatprep.mubr.f32.mxu0 %v3649
        %v3651 = vand.u32 %v686, 4294901760
        %3652 = vmatmul.mubr.f32.gmra.mxu0 %v3651
        %v3653 = vpop.f32.mrf.mxu0
        %v3654 = vadd.f32 %v3509, %v3653
        %v3655 = vpop.f32.mrf.mxu0
        %v3656 = vadd.f32 %v3511, %v3655
        %3657 = vdwg.mxu0
        %v3658 = vand.u32 %v877, 4294901760
        %3659 = vmatprep.subr.mxu0 %v3658
        %v3660 = vand.u32 %v876, 4294901760
        %3661 = vmatpush1.xpose.msra.mxu0 %v3660
        %v3662 = vand.u32 %v873, 4294901760
        %3663 = vmatprep.subr.mxu0 %v3662
        %v3664 = vand.u32 %v872, 4294901760
        %3665 = vmatpush1.xpose.msra.mxu0 %v3664
        %v3666 = vand.u32 %v869, 4294901760
        %3667 = vmatprep.subr.mxu0 %v3666
        %v3668 = vand.u32 %v868, 4294901760
        %3669 = vmatpush1.xpose.msra.mxu0 %v3668
        %v3670 = vand.u32 %v865, 4294901760
        %3671 = vmatprep.subr.mxu0 %v3670
        %v3672 = vand.u32 %v864, 4294901760
        %3673 = vmatpush1.xpose.msra.mxu0 %v3672
        %v3674 = vand.u32 %v861, 4294901760
        %3675 = vmatprep.subr.mxu0 %v3674
        %v3676 = vand.u32 %v860, 4294901760
        %3677 = vmatpush1.xpose.msra.mxu0 %v3676
        %v3678 = vand.u32 %v857, 4294901760
        %3679 = vmatprep.subr.mxu0 %v3678
        %v3680 = vand.u32 %v856, 4294901760
        %3681 = vmatpush1.xpose.msra.mxu0 %v3680
        %v3682 = vand.u32 %v853, 4294901760
        %3683 = vmatprep.subr.mxu0 %v3682
        %v3684 = vand.u32 %v852, 4294901760
        %3685 = vmatpush1.xpose.msra.mxu0 %v3684
        %v3686 = vand.u32 %v849, 4294901760
        %3687 = vmatprep.subr.mxu0 %v3686
        %v3688 = vand.u32 %v848, 4294901760
        %3689 = vmatpush1.xpose.msra.mxu0 %v3688
        %v3690 = vand.u32 %v845, 4294901760
        %3691 = vmatprep.subr.mxu0 %v3690
        %v3692 = vand.u32 %v844, 4294901760
        %3693 = vmatpush1.xpose.msra.mxu0 %v3692
        %v3694 = vand.u32 %v841, 4294901760
        %3695 = vmatprep.subr.mxu0 %v3694
        %v3696 = vand.u32 %v840, 4294901760
        %3697 = vmatpush1.xpose.msra.mxu0 %v3696
        %v3698 = vand.u32 %v837, 4294901760
        %3699 = vmatprep.subr.mxu0 %v3698
        %v3700 = vand.u32 %v836, 4294901760
        %3701 = vmatpush1.xpose.msra.mxu0 %v3700
        %v3702 = vand.u32 %v833, 4294901760
        %3703 = vmatprep.subr.mxu0 %v3702
        %v3704 = vand.u32 %v832, 4294901760
        %3705 = vmatpush1.xpose.msra.mxu0 %v3704
        %v3706 = vand.u32 %v829, 4294901760
        %3707 = vmatprep.subr.mxu0 %v3706
        %v3708 = vand.u32 %v828, 4294901760
        %3709 = vmatpush1.xpose.msra.mxu0 %v3708
        %v3710 = vand.u32 %v825, 4294901760
        %3711 = vmatprep.subr.mxu0 %v3710
        %v3712 = vand.u32 %v824, 4294901760
        %3713 = vmatpush1.xpose.msra.mxu0 %v3712
        %v3714 = vand.u32 %v821, 4294901760
        %3715 = vmatprep.subr.mxu0 %v3714
        %v3716 = vand.u32 %v820, 4294901760
        %3717 = vmatpush1.xpose.msra.mxu0 %v3716
        %v3718 = vand.u32 %v817, 4294901760
        %3719 = vmatprep.subr.mxu0 %v3718
        %v3720 = vand.u32 %v816, 4294901760
        %3721 = vmatpush1.xpose.msra.mxu0 %v3720
        %v3722 = vand.u32 %v941, 4294901760
        %3723 = vmatprep.subr.mxu0 %v3722
        %v3724 = vand.u32 %v940, 4294901760
        %3725 = vmatpush2.xpose.msra.mxu0 %v3724
        %v3726 = vand.u32 %v937, 4294901760
        %3727 = vmatprep.subr.mxu0 %v3726
        %v3728 = vand.u32 %v936, 4294901760
        %3729 = vmatpush2.xpose.msra.mxu0 %v3728
        %v3730 = vand.u32 %v933, 4294901760
        %3731 = vmatprep.subr.mxu0 %v3730
        %v3732 = vand.u32 %v932, 4294901760
        %3733 = vmatpush2.xpose.msra.mxu0 %v3732
        %v3734 = vand.u32 %v929, 4294901760
        %3735 = vmatprep.subr.mxu0 %v3734
        %v3736 = vand.u32 %v928, 4294901760
        %3737 = vmatpush2.xpose.msra.mxu0 %v3736
        %v3738 = vand.u32 %v925, 4294901760
        %3739 = vmatprep.subr.mxu0 %v3738
        %v3740 = vand.u32 %v924, 4294901760
        %3741 = vmatpush2.xpose.msra.mxu0 %v3740
        %v3742 = vand.u32 %v921, 4294901760
        %3743 = vmatprep.subr.mxu0 %v3742
        %v3744 = vand.u32 %v920, 4294901760
        %3745 = vmatpush2.xpose.msra.mxu0 %v3744
        %v3746 = vand.u32 %v917, 4294901760
        %3747 = vmatprep.subr.mxu0 %v3746
        %v3748 = vand.u32 %v916, 4294901760
        %3749 = vmatpush2.xpose.msra.mxu0 %v3748
        %v3750 = vand.u32 %v913, 4294901760
        %3751 = vmatprep.subr.mxu0 %v3750
        %v3752 = vand.u32 %v912, 4294901760
        %3753 = vmatpush2.xpose.msra.mxu0 %v3752
        %v3754 = vand.u32 %v909, 4294901760
        %3755 = vmatprep.subr.mxu0 %v3754
        %v3756 = vand.u32 %v908, 4294901760
        %3757 = vmatpush2.xpose.msra.mxu0 %v3756
        %v3758 = vand.u32 %v905, 4294901760
        %3759 = vmatprep.subr.mxu0 %v3758
        %v3760 = vand.u32 %v904, 4294901760
        %3761 = vmatpush2.xpose.msra.mxu0 %v3760
        %v3762 = vand.u32 %v901, 4294901760
        %3763 = vmatprep.subr.mxu0 %v3762
        %v3764 = vand.u32 %v900, 4294901760
        %3765 = vmatpush2.xpose.msra.mxu0 %v3764
        %v3766 = vand.u32 %v897, 4294901760
        %3767 = vmatprep.subr.mxu0 %v3766
        %v3768 = vand.u32 %v896, 4294901760
        %3769 = vmatpush2.xpose.msra.mxu0 %v3768
        %v3770 = vand.u32 %v893, 4294901760
        %3771 = vmatprep.subr.mxu0 %v3770
        %v3772 = vand.u32 %v892, 4294901760
        %3773 = vmatpush2.xpose.msra.mxu0 %v3772
        %v3774 = vand.u32 %v889, 4294901760
        %3775 = vmatprep.subr.mxu0 %v3774
        %v3776 = vand.u32 %v888, 4294901760
        %3777 = vmatpush2.xpose.msra.mxu0 %v3776
        %v3778 = vand.u32 %v885, 4294901760
        %3779 = vmatprep.subr.mxu0 %v3778
        %v3780 = vand.u32 %v884, 4294901760
        %3781 = vmatpush2.xpose.msra.mxu0 %v3780
        %v3782 = vand.u32 %v881, 4294901760
        %3783 = vmatprep.subr.mxu0 %v3782
        %v3784 = vand.u32 %v880, 4294901760
        %3785 = vmatpush2.xpose.msra.mxu0 %v3784
        %v3786 = vand.u32 %v681, 4294901760
        %v3787 = vsub.f32 %v681, %v3786
        %v3788 = vand.u32 %v3787, 4294901760
        %v3789 = vsub.f32 %v3787, %v3788
        %v3790 = vand.u32 %v3789, 4294901760
        %3791 = vmatprep.mubr.f32.mxu0 %v3790
        %v3792 = vand.u32 %v680, 4294901760
        %v3793 = vsub.f32 %v680, %v3792
        %v3794 = vand.u32 %v3793, 4294901760
        %v3795 = vsub.f32 %v3793, %v3794
        %v3796 = vand.u32 %v3795, 4294901760
        %3797 = vmatmul.mubr.f32.gmra.mxu0 %v3796
        %v3798 = vpop.f32.mrf.mxu0
        %v3799 = vadd.f32 %v957, %v3798
        %v3800 = vpop.f32.mrf.mxu0
        %v3801 = vadd.f32 %v961, %v3800
        %v3802 = vand.u32 %v685, 4294901760
        %v3803 = vsub.f32 %v685, %v3802
        %v3804 = vand.u32 %v3803, 4294901760
        %v3805 = vsub.f32 %v3803, %v3804
        %v3806 = vand.u32 %v3805, 4294901760
        %3807 = vmatprep.mubr.f32.mxu0 %v3806
        %v3808 = vand.u32 %v684, 4294901760
        %v3809 = vsub.f32 %v684, %v3808
        %v3810 = vand.u32 %v3809, 4294901760
        %v3811 = vsub.f32 %v3809, %v3810
        %v3812 = vand.u32 %v3811, 4294901760
        %3813 = vmatmul.mubr.f32.gmra.mxu0 %v3812
        %v3814 = vpop.f32.mrf.mxu0
        %v3815 = vadd.f32 %v957, %v3814
        %v3816 = vpop.f32.mrf.mxu0
        %v3817 = vadd.f32 %v961, %v3816
        %3818 = vdwg.mxu0
        %v3819 = vand.u32 %v877, 4294901760
        %v3820 = vsub.f32 %v877, %v3819
        %v3821 = vand.u32 %v3820, 4294901760
        %v3822 = vsub.f32 %v3820, %v3821
        %v3823 = vand.u32 %v3822, 4294901760
        %3824 = vmatprep.subr.mxu0 %v3823
        %v3825 = vand.u32 %v876, 4294901760
        %v3826 = vsub.f32 %v876, %v3825
        %v3827 = vand.u32 %v3826, 4294901760
        %v3828 = vsub.f32 %v3826, %v3827
        %v3829 = vand.u32 %v3828, 4294901760
        %3830 = vmatpush1.xpose.msra.mxu0 %v3829
        %v3831 = vand.u32 %v873, 4294901760
        %v3832 = vsub.f32 %v873, %v3831
        %v3833 = vand.u32 %v3832, 4294901760
        %v3834 = vsub.f32 %v3832, %v3833
        %v3835 = vand.u32 %v3834, 4294901760
        %3836 = vmatprep.subr.mxu0 %v3835
        %v3837 = vand.u32 %v872, 4294901760
        %v3838 = vsub.f32 %v872, %v3837
        %v3839 = vand.u32 %v3838, 4294901760
        %v3840 = vsub.f32 %v3838, %v3839
        %v3841 = vand.u32 %v3840, 4294901760
        %3842 = vmatpush1.xpose.msra.mxu0 %v3841
        %v3843 = vand.u32 %v869, 4294901760
        %v3844 = vsub.f32 %v869, %v3843
        %v3845 = vand.u32 %v3844, 4294901760
        %v3846 = vsub.f32 %v3844, %v3845
        %v3847 = vand.u32 %v3846, 4294901760
        %3848 = vmatprep.subr.mxu0 %v3847
        %v3849 = vand.u32 %v868, 4294901760
        %v3850 = vsub.f32 %v868, %v3849
        %v3851 = vand.u32 %v3850, 4294901760
        %v3852 = vsub.f32 %v3850, %v3851
        %v3853 = vand.u32 %v3852, 4294901760
        %3854 = vmatpush1.xpose.msra.mxu0 %v3853
        %v3855 = vand.u32 %v865, 4294901760
        %v3856 = vsub.f32 %v865, %v3855
        %v3857 = vand.u32 %v3856, 4294901760
        %v3858 = vsub.f32 %v3856, %v3857
        %v3859 = vand.u32 %v3858, 4294901760
        %3860 = vmatprep.subr.mxu0 %v3859
        %v3861 = vand.u32 %v864, 4294901760
        %v3862 = vsub.f32 %v864, %v3861
        %v3863 = vand.u32 %v3862, 4294901760
        %v3864 = vsub.f32 %v3862, %v3863
        %v3865 = vand.u32 %v3864, 4294901760
        %3866 = vmatpush1.xpose.msra.mxu0 %v3865
        %v3867 = vand.u32 %v861, 4294901760
        %v3868 = vsub.f32 %v861, %v3867
        %v3869 = vand.u32 %v3868, 4294901760
        %v3870 = vsub.f32 %v3868, %v3869
        %v3871 = vand.u32 %v3870, 4294901760
        %3872 = vmatprep.subr.mxu0 %v3871
        %v3873 = vand.u32 %v860, 4294901760
        %v3874 = vsub.f32 %v860, %v3873
        %v3875 = vand.u32 %v3874, 4294901760
        %v3876 = vsub.f32 %v3874, %v3875
        %v3877 = vand.u32 %v3876, 4294901760
        %3878 = vmatpush1.xpose.msra.mxu0 %v3877
        %v3879 = vand.u32 %v857, 4294901760
        %v3880 = vsub.f32 %v857, %v3879
        %v3881 = vand.u32 %v3880, 4294901760
        %v3882 = vsub.f32 %v3880, %v3881
        %v3883 = vand.u32 %v3882, 4294901760
        %3884 = vmatprep.subr.mxu0 %v3883
        %v3885 = vand.u32 %v856, 4294901760
        %v3886 = vsub.f32 %v856, %v3885
        %v3887 = vand.u32 %v3886, 4294901760
        %v3888 = vsub.f32 %v3886, %v3887
        %v3889 = vand.u32 %v3888, 4294901760
        %3890 = vmatpush1.xpose.msra.mxu0 %v3889
        %v3891 = vand.u32 %v853, 4294901760
        %v3892 = vsub.f32 %v853, %v3891
        %v3893 = vand.u32 %v3892, 4294901760
        %v3894 = vsub.f32 %v3892, %v3893
        %v3895 = vand.u32 %v3894, 4294901760
        %3896 = vmatprep.subr.mxu0 %v3895
        %v3897 = vand.u32 %v852, 4294901760
        %v3898 = vsub.f32 %v852, %v3897
        %v3899 = vand.u32 %v3898, 4294901760
        %v3900 = vsub.f32 %v3898, %v3899
        %v3901 = vand.u32 %v3900, 4294901760
        %3902 = vmatpush1.xpose.msra.mxu0 %v3901
        %v3903 = vand.u32 %v849, 4294901760
        %v3904 = vsub.f32 %v849, %v3903
        %v3905 = vand.u32 %v3904, 4294901760
        %v3906 = vsub.f32 %v3904, %v3905
        %v3907 = vand.u32 %v3906, 4294901760
        %3908 = vmatprep.subr.mxu0 %v3907
        %v3909 = vand.u32 %v848, 4294901760
        %v3910 = vsub.f32 %v848, %v3909
        %v3911 = vand.u32 %v3910, 4294901760
        %v3912 = vsub.f32 %v3910, %v3911
        %v3913 = vand.u32 %v3912, 4294901760
        %3914 = vmatpush1.xpose.msra.mxu0 %v3913
        %v3915 = vand.u32 %v845, 4294901760
        %v3916 = vsub.f32 %v845, %v3915
        %v3917 = vand.u32 %v3916, 4294901760
        %v3918 = vsub.f32 %v3916, %v3917
        %v3919 = vand.u32 %v3918, 4294901760
        %3920 = vmatprep.subr.mxu0 %v3919
        %v3921 = vand.u32 %v844, 4294901760
        %v3922 = vsub.f32 %v844, %v3921
        %v3923 = vand.u32 %v3922, 4294901760
        %v3924 = vsub.f32 %v3922, %v3923
        %v3925 = vand.u32 %v3924, 4294901760
        %3926 = vmatpush1.xpose.msra.mxu0 %v3925
        %v3927 = vand.u32 %v841, 4294901760
        %v3928 = vsub.f32 %v841, %v3927
        %v3929 = vand.u32 %v3928, 4294901760
        %v3930 = vsub.f32 %v3928, %v3929
        %v3931 = vand.u32 %v3930, 4294901760
        %3932 = vmatprep.subr.mxu0 %v3931
        %v3933 = vand.u32 %v840, 4294901760
        %v3934 = vsub.f32 %v840, %v3933
        %v3935 = vand.u32 %v3934, 4294901760
        %v3936 = vsub.f32 %v3934, %v3935
        %v3937 = vand.u32 %v3936, 4294901760
        %3938 = vmatpush1.xpose.msra.mxu0 %v3937
        %v3939 = vand.u32 %v837, 4294901760
        %v3940 = vsub.f32 %v837, %v3939
        %v3941 = vand.u32 %v3940, 4294901760
        %v3942 = vsub.f32 %v3940, %v3941
        %v3943 = vand.u32 %v3942, 4294901760
        %3944 = vmatprep.subr.mxu0 %v3943
        %v3945 = vand.u32 %v836, 4294901760
        %v3946 = vsub.f32 %v836, %v3945
        %v3947 = vand.u32 %v3946, 4294901760
        %v3948 = vsub.f32 %v3946, %v3947
        %v3949 = vand.u32 %v3948, 4294901760
        %3950 = vmatpush1.xpose.msra.mxu0 %v3949
        %v3951 = vand.u32 %v833, 4294901760
        %v3952 = vsub.f32 %v833, %v3951
        %v3953 = vand.u32 %v3952, 4294901760
        %v3954 = vsub.f32 %v3952, %v3953
        %v3955 = vand.u32 %v3954, 4294901760
        %3956 = vmatprep.subr.mxu0 %v3955
        %v3957 = vand.u32 %v832, 4294901760
        %v3958 = vsub.f32 %v832, %v3957
        %v3959 = vand.u32 %v3958, 4294901760
        %v3960 = vsub.f32 %v3958, %v3959
        %v3961 = vand.u32 %v3960, 4294901760
        %3962 = vmatpush1.xpose.msra.mxu0 %v3961
        %v3963 = vand.u32 %v829, 4294901760
        %v3964 = vsub.f32 %v829, %v3963
        %v3965 = vand.u32 %v3964, 4294901760
        %v3966 = vsub.f32 %v3964, %v3965
        %v3967 = vand.u32 %v3966, 4294901760
        %3968 = vmatprep.subr.mxu0 %v3967
        %v3969 = vand.u32 %v828, 4294901760
        %v3970 = vsub.f32 %v828, %v3969
        %v3971 = vand.u32 %v3970, 4294901760
        %v3972 = vsub.f32 %v3970, %v3971
        %v3973 = vand.u32 %v3972, 4294901760
        %3974 = vmatpush1.xpose.msra.mxu0 %v3973
        %v3975 = vand.u32 %v825, 4294901760
        %v3976 = vsub.f32 %v825, %v3975
        %v3977 = vand.u32 %v3976, 4294901760
        %v3978 = vsub.f32 %v3976, %v3977
        %v3979 = vand.u32 %v3978, 4294901760
        %3980 = vmatprep.subr.mxu0 %v3979
        %v3981 = vand.u32 %v824, 4294901760
        %v3982 = vsub.f32 %v824, %v3981
        %v3983 = vand.u32 %v3982, 4294901760
        %v3984 = vsub.f32 %v3982, %v3983
        %v3985 = vand.u32 %v3984, 4294901760
        %3986 = vmatpush1.xpose.msra.mxu0 %v3985
        %v3987 = vand.u32 %v821, 4294901760
        %v3988 = vsub.f32 %v821, %v3987
        %v3989 = vand.u32 %v3988, 4294901760
        %v3990 = vsub.f32 %v3988, %v3989
        %v3991 = vand.u32 %v3990, 4294901760
        %3992 = vmatprep.subr.mxu0 %v3991
        %v3993 = vand.u32 %v820, 4294901760
        %v3994 = vsub.f32 %v820, %v3993
        %v3995 = vand.u32 %v3994, 4294901760
        %v3996 = vsub.f32 %v3994, %v3995
        %v3997 = vand.u32 %v3996, 4294901760
        %3998 = vmatpush1.xpose.msra.mxu0 %v3997
        %v3999 = vand.u32 %v817, 4294901760
        %v4000 = vsub.f32 %v817, %v3999
        %v4001 = vand.u32 %v4000, 4294901760
        %v4002 = vsub.f32 %v4000, %v4001
        %v4003 = vand.u32 %v4002, 4294901760
        %4004 = vmatprep.subr.mxu0 %v4003
        %v4005 = vand.u32 %v816, 4294901760
        %v4006 = vsub.f32 %v816, %v4005
        %v4007 = vand.u32 %v4006, 4294901760
        %v4008 = vsub.f32 %v4006, %v4007
        %v4009 = vand.u32 %v4008, 4294901760
        %4010 = vmatpush1.xpose.msra.mxu0 %v4009
        %v4011 = vand.u32 %v941, 4294901760
        %v4012 = vsub.f32 %v941, %v4011
        %v4013 = vand.u32 %v4012, 4294901760
        %v4014 = vsub.f32 %v4012, %v4013
        %v4015 = vand.u32 %v4014, 4294901760
        %4016 = vmatprep.subr.mxu0 %v4015
        %v4017 = vand.u32 %v940, 4294901760
        %v4018 = vsub.f32 %v940, %v4017
        %v4019 = vand.u32 %v4018, 4294901760
        %v4020 = vsub.f32 %v4018, %v4019
        %v4021 = vand.u32 %v4020, 4294901760
        %4022 = vmatpush2.xpose.msra.mxu0 %v4021
        %v4023 = vand.u32 %v937, 4294901760
        %v4024 = vsub.f32 %v937, %v4023
        %v4025 = vand.u32 %v4024, 4294901760
        %v4026 = vsub.f32 %v4024, %v4025
        %v4027 = vand.u32 %v4026, 4294901760
        %4028 = vmatprep.subr.mxu0 %v4027
        %v4029 = vand.u32 %v936, 4294901760
        %v4030 = vsub.f32 %v936, %v4029
        %v4031 = vand.u32 %v4030, 4294901760
        %v4032 = vsub.f32 %v4030, %v4031
        %v4033 = vand.u32 %v4032, 4294901760
        %4034 = vmatpush2.xpose.msra.mxu0 %v4033
        %v4035 = vand.u32 %v933, 4294901760
        %v4036 = vsub.f32 %v933, %v4035
        %v4037 = vand.u32 %v4036, 4294901760
        %v4038 = vsub.f32 %v4036, %v4037
        %v4039 = vand.u32 %v4038, 4294901760
        %4040 = vmatprep.subr.mxu0 %v4039
        %v4041 = vand.u32 %v932, 4294901760
        %v4042 = vsub.f32 %v932, %v4041
        %v4043 = vand.u32 %v4042, 4294901760
        %v4044 = vsub.f32 %v4042, %v4043
        %v4045 = vand.u32 %v4044, 4294901760
        %4046 = vmatpush2.xpose.msra.mxu0 %v4045
        %v4047 = vand.u32 %v929, 4294901760
        %v4048 = vsub.f32 %v929, %v4047
        %v4049 = vand.u32 %v4048, 4294901760
        %v4050 = vsub.f32 %v4048, %v4049
        %v4051 = vand.u32 %v4050, 4294901760
        %4052 = vmatprep.subr.mxu0 %v4051
        %v4053 = vand.u32 %v928, 4294901760
        %v4054 = vsub.f32 %v928, %v4053
        %v4055 = vand.u32 %v4054, 4294901760
        %v4056 = vsub.f32 %v4054, %v4055
        %v4057 = vand.u32 %v4056, 4294901760
        %4058 = vmatpush2.xpose.msra.mxu0 %v4057
        %v4059 = vand.u32 %v925, 4294901760
        %v4060 = vsub.f32 %v925, %v4059
        %v4061 = vand.u32 %v4060, 4294901760
        %v4062 = vsub.f32 %v4060, %v4061
        %v4063 = vand.u32 %v4062, 4294901760
        %4064 = vmatprep.subr.mxu0 %v4063
        %v4065 = vand.u32 %v924, 4294901760
        %v4066 = vsub.f32 %v924, %v4065
        %v4067 = vand.u32 %v4066, 4294901760
        %v4068 = vsub.f32 %v4066, %v4067
        %v4069 = vand.u32 %v4068, 4294901760
        %4070 = vmatpush2.xpose.msra.mxu0 %v4069
        %v4071 = vand.u32 %v921, 4294901760
        %v4072 = vsub.f32 %v921, %v4071
        %v4073 = vand.u32 %v4072, 4294901760
        %v4074 = vsub.f32 %v4072, %v4073
        %v4075 = vand.u32 %v4074, 4294901760
        %4076 = vmatprep.subr.mxu0 %v4075
        %v4077 = vand.u32 %v920, 4294901760
        %v4078 = vsub.f32 %v920, %v4077
        %v4079 = vand.u32 %v4078, 4294901760
        %v4080 = vsub.f32 %v4078, %v4079
        %v4081 = vand.u32 %v4080, 4294901760
        %4082 = vmatpush2.xpose.msra.mxu0 %v4081
        %v4083 = vand.u32 %v917, 4294901760
        %v4084 = vsub.f32 %v917, %v4083
        %v4085 = vand.u32 %v4084, 4294901760
        %v4086 = vsub.f32 %v4084, %v4085
        %v4087 = vand.u32 %v4086, 4294901760
        %4088 = vmatprep.subr.mxu0 %v4087
        %v4089 = vand.u32 %v916, 4294901760
        %v4090 = vsub.f32 %v916, %v4089
        %v4091 = vand.u32 %v4090, 4294901760
        %v4092 = vsub.f32 %v4090, %v4091
        %v4093 = vand.u32 %v4092, 4294901760
        %4094 = vmatpush2.xpose.msra.mxu0 %v4093
        %v4095 = vand.u32 %v913, 4294901760
        %v4096 = vsub.f32 %v913, %v4095
        %v4097 = vand.u32 %v4096, 4294901760
        %v4098 = vsub.f32 %v4096, %v4097
        %v4099 = vand.u32 %v4098, 4294901760
        %4100 = vmatprep.subr.mxu0 %v4099
        %v4101 = vand.u32 %v912, 4294901760
        %v4102 = vsub.f32 %v912, %v4101
        %v4103 = vand.u32 %v4102, 4294901760
        %v4104 = vsub.f32 %v4102, %v4103
        %v4105 = vand.u32 %v4104, 4294901760
        %4106 = vmatpush2.xpose.msra.mxu0 %v4105
        %v4107 = vand.u32 %v909, 4294901760
        %v4108 = vsub.f32 %v909, %v4107
        %v4109 = vand.u32 %v4108, 4294901760
        %v4110 = vsub.f32 %v4108, %v4109
        %v4111 = vand.u32 %v4110, 4294901760
        %4112 = vmatprep.subr.mxu0 %v4111
        %v4113 = vand.u32 %v908, 4294901760
        %v4114 = vsub.f32 %v908, %v4113
        %v4115 = vand.u32 %v4114, 4294901760
        %v4116 = vsub.f32 %v4114, %v4115
        %v4117 = vand.u32 %v4116, 4294901760
        %4118 = vmatpush2.xpose.msra.mxu0 %v4117
        %v4119 = vand.u32 %v905, 4294901760
        %v4120 = vsub.f32 %v905, %v4119
        %v4121 = vand.u32 %v4120, 4294901760
        %v4122 = vsub.f32 %v4120, %v4121
        %v4123 = vand.u32 %v4122, 4294901760
        %4124 = vmatprep.subr.mxu0 %v4123
        %v4125 = vand.u32 %v904, 4294901760
        %v4126 = vsub.f32 %v904, %v4125
        %v4127 = vand.u32 %v4126, 4294901760
        %v4128 = vsub.f32 %v4126, %v4127
        %v4129 = vand.u32 %v4128, 4294901760
        %4130 = vmatpush2.xpose.msra.mxu0 %v4129
        %v4131 = vand.u32 %v901, 4294901760
        %v4132 = vsub.f32 %v901, %v4131
        %v4133 = vand.u32 %v4132, 4294901760
        %v4134 = vsub.f32 %v4132, %v4133
        %v4135 = vand.u32 %v4134, 4294901760
        %4136 = vmatprep.subr.mxu0 %v4135
        %v4137 = vand.u32 %v900, 4294901760
        %v4138 = vsub.f32 %v900, %v4137
        %v4139 = vand.u32 %v4138, 4294901760
        %v4140 = vsub.f32 %v4138, %v4139
        %v4141 = vand.u32 %v4140, 4294901760
        %4142 = vmatpush2.xpose.msra.mxu0 %v4141
        %v4143 = vand.u32 %v897, 4294901760
        %v4144 = vsub.f32 %v897, %v4143
        %v4145 = vand.u32 %v4144, 4294901760
        %v4146 = vsub.f32 %v4144, %v4145
        %v4147 = vand.u32 %v4146, 4294901760
        %4148 = vmatprep.subr.mxu0 %v4147
        %v4149 = vand.u32 %v896, 4294901760
        %v4150 = vsub.f32 %v896, %v4149
        %v4151 = vand.u32 %v4150, 4294901760
        %v4152 = vsub.f32 %v4150, %v4151
        %v4153 = vand.u32 %v4152, 4294901760
        %4154 = vmatpush2.xpose.msra.mxu0 %v4153
        %v4155 = vand.u32 %v893, 4294901760
        %v4156 = vsub.f32 %v893, %v4155
        %v4157 = vand.u32 %v4156, 4294901760
        %v4158 = vsub.f32 %v4156, %v4157
        %v4159 = vand.u32 %v4158, 4294901760
        %4160 = vmatprep.subr.mxu0 %v4159
        %v4161 = vand.u32 %v892, 4294901760
        %v4162 = vsub.f32 %v892, %v4161
        %v4163 = vand.u32 %v4162, 4294901760
        %v4164 = vsub.f32 %v4162, %v4163
        %v4165 = vand.u32 %v4164, 4294901760
        %4166 = vmatpush2.xpose.msra.mxu0 %v4165
        %v4167 = vand.u32 %v889, 4294901760
        %v4168 = vsub.f32 %v889, %v4167
        %v4169 = vand.u32 %v4168, 4294901760
        %v4170 = vsub.f32 %v4168, %v4169
        %v4171 = vand.u32 %v4170, 4294901760
        %4172 = vmatprep.subr.mxu0 %v4171
        %v4173 = vand.u32 %v888, 4294901760
        %v4174 = vsub.f32 %v888, %v4173
        %v4175 = vand.u32 %v4174, 4294901760
        %v4176 = vsub.f32 %v4174, %v4175
        %v4177 = vand.u32 %v4176, 4294901760
        %4178 = vmatpush2.xpose.msra.mxu0 %v4177
        %v4179 = vand.u32 %v885, 4294901760
        %v4180 = vsub.f32 %v885, %v4179
        %v4181 = vand.u32 %v4180, 4294901760
        %v4182 = vsub.f32 %v4180, %v4181
        %v4183 = vand.u32 %v4182, 4294901760
        %4184 = vmatprep.subr.mxu0 %v4183
        %v4185 = vand.u32 %v884, 4294901760
        %v4186 = vsub.f32 %v884, %v4185
        %v4187 = vand.u32 %v4186, 4294901760
        %v4188 = vsub.f32 %v4186, %v4187
        %v4189 = vand.u32 %v4188, 4294901760
        %4190 = vmatpush2.xpose.msra.mxu0 %v4189
        %v4191 = vand.u32 %v881, 4294901760
        %v4192 = vsub.f32 %v881, %v4191
        %v4193 = vand.u32 %v4192, 4294901760
        %v4194 = vsub.f32 %v4192, %v4193
        %v4195 = vand.u32 %v4194, 4294901760
        %4196 = vmatprep.subr.mxu0 %v4195
        %v4197 = vand.u32 %v880, 4294901760
        %v4198 = vsub.f32 %v880, %v4197
        %v4199 = vand.u32 %v4198, 4294901760
        %v4200 = vsub.f32 %v4198, %v4199
        %v4201 = vand.u32 %v4200, 4294901760
        %4202 = vmatpush2.xpose.msra.mxu0 %v4201
        %v4203 = vand.u32 %v681, 4294901760
        %4204 = vmatprep.mubr.f32.mxu0 %v4203
        %v4205 = vand.u32 %v680, 4294901760
        %4206 = vmatmul.mubr.f32.gmra.mxu0 %v4205
        %v4207 = vpop.f32.mrf.mxu0
        %v4208 = vadd.f32 %v3799, %v4207
        %v4209 = vpop.f32.mrf.mxu0
        %v4210 = vadd.f32 %v3801, %v4209
        %v4211 = vand.u32 %v685, 4294901760
        %4212 = vmatprep.mubr.f32.mxu0 %v4211
        %v4213 = vand.u32 %v684, 4294901760
        %4214 = vmatmul.mubr.f32.gmra.mxu0 %v4213
        %v4215 = vpop.f32.mrf.mxu0
        %v4216 = vadd.f32 %v3815, %v4215
        %v4217 = vpop.f32.mrf.mxu0
        %v4218 = vadd.f32 %v3817, %v4217
        %4219 = vdwg.mxu0
        %v4220 = vand.u32 %v877, 4294901760
        %v4221 = vsub.f32 %v877, %v4220
        %4222 = vmatprep.subr.mxu0 %v4221
        %v4223 = vand.u32 %v876, 4294901760
        %v4224 = vsub.f32 %v876, %v4223
        %4225 = vmatpush1.xpose.msra.mxu0 %v4224
        %v4226 = vand.u32 %v873, 4294901760
        %v4227 = vsub.f32 %v873, %v4226
        %4228 = vmatprep.subr.mxu0 %v4227
        %v4229 = vand.u32 %v872, 4294901760
        %v4230 = vsub.f32 %v872, %v4229
        %4231 = vmatpush1.xpose.msra.mxu0 %v4230
        %v4232 = vand.u32 %v869, 4294901760
        %v4233 = vsub.f32 %v869, %v4232
        %4234 = vmatprep.subr.mxu0 %v4233
        %v4235 = vand.u32 %v868, 4294901760
        %v4236 = vsub.f32 %v868, %v4235
        %4237 = vmatpush1.xpose.msra.mxu0 %v4236
        %v4238 = vand.u32 %v865, 4294901760
        %v4239 = vsub.f32 %v865, %v4238
        %4240 = vmatprep.subr.mxu0 %v4239
        %v4241 = vand.u32 %v864, 4294901760
        %v4242 = vsub.f32 %v864, %v4241
        %4243 = vmatpush1.xpose.msra.mxu0 %v4242
        %v4244 = vand.u32 %v861, 4294901760
        %v4245 = vsub.f32 %v861, %v4244
        %4246 = vmatprep.subr.mxu0 %v4245
        %v4247 = vand.u32 %v860, 4294901760
        %v4248 = vsub.f32 %v860, %v4247
        %4249 = vmatpush1.xpose.msra.mxu0 %v4248
        %v4250 = vand.u32 %v857, 4294901760
        %v4251 = vsub.f32 %v857, %v4250
        %4252 = vmatprep.subr.mxu0 %v4251
        %v4253 = vand.u32 %v856, 4294901760
        %v4254 = vsub.f32 %v856, %v4253
        %4255 = vmatpush1.xpose.msra.mxu0 %v4254
        %v4256 = vand.u32 %v853, 4294901760
        %v4257 = vsub.f32 %v853, %v4256
        %4258 = vmatprep.subr.mxu0 %v4257
        %v4259 = vand.u32 %v852, 4294901760
        %v4260 = vsub.f32 %v852, %v4259
        %4261 = vmatpush1.xpose.msra.mxu0 %v4260
        %v4262 = vand.u32 %v849, 4294901760
        %v4263 = vsub.f32 %v849, %v4262
        %4264 = vmatprep.subr.mxu0 %v4263
        %v4265 = vand.u32 %v848, 4294901760
        %v4266 = vsub.f32 %v848, %v4265
        %4267 = vmatpush1.xpose.msra.mxu0 %v4266
        %v4268 = vand.u32 %v845, 4294901760
        %v4269 = vsub.f32 %v845, %v4268
        %4270 = vmatprep.subr.mxu0 %v4269
        %v4271 = vand.u32 %v844, 4294901760
        %v4272 = vsub.f32 %v844, %v4271
        %4273 = vmatpush1.xpose.msra.mxu0 %v4272
        %v4274 = vand.u32 %v841, 4294901760
        %v4275 = vsub.f32 %v841, %v4274
        %4276 = vmatprep.subr.mxu0 %v4275
        %v4277 = vand.u32 %v840, 4294901760
        %v4278 = vsub.f32 %v840, %v4277
        %4279 = vmatpush1.xpose.msra.mxu0 %v4278
        %v4280 = vand.u32 %v837, 4294901760
        %v4281 = vsub.f32 %v837, %v4280
        %4282 = vmatprep.subr.mxu0 %v4281
        %v4283 = vand.u32 %v836, 4294901760
        %v4284 = vsub.f32 %v836, %v4283
        %4285 = vmatpush1.xpose.msra.mxu0 %v4284
        %v4286 = vand.u32 %v833, 4294901760
        %v4287 = vsub.f32 %v833, %v4286
        %4288 = vmatprep.subr.mxu0 %v4287
        %v4289 = vand.u32 %v832, 4294901760
        %v4290 = vsub.f32 %v832, %v4289
        %4291 = vmatpush1.xpose.msra.mxu0 %v4290
        %v4292 = vand.u32 %v829, 4294901760
        %v4293 = vsub.f32 %v829, %v4292
        %4294 = vmatprep.subr.mxu0 %v4293
        %v4295 = vand.u32 %v828, 4294901760
        %v4296 = vsub.f32 %v828, %v4295
        %4297 = vmatpush1.xpose.msra.mxu0 %v4296
        %v4298 = vand.u32 %v825, 4294901760
        %v4299 = vsub.f32 %v825, %v4298
        %4300 = vmatprep.subr.mxu0 %v4299
        %v4301 = vand.u32 %v824, 4294901760
        %v4302 = vsub.f32 %v824, %v4301
        %4303 = vmatpush1.xpose.msra.mxu0 %v4302
        %v4304 = vand.u32 %v821, 4294901760
        %v4305 = vsub.f32 %v821, %v4304
        %4306 = vmatprep.subr.mxu0 %v4305
        %v4307 = vand.u32 %v820, 4294901760
        %v4308 = vsub.f32 %v820, %v4307
        %4309 = vmatpush1.xpose.msra.mxu0 %v4308
        %v4310 = vand.u32 %v817, 4294901760
        %v4311 = vsub.f32 %v817, %v4310
        %4312 = vmatprep.subr.mxu0 %v4311
        %v4313 = vand.u32 %v816, 4294901760
        %v4314 = vsub.f32 %v816, %v4313
        %4315 = vmatpush1.xpose.msra.mxu0 %v4314
        %v4316 = vand.u32 %v941, 4294901760
        %v4317 = vsub.f32 %v941, %v4316
        %4318 = vmatprep.subr.mxu0 %v4317
        %v4319 = vand.u32 %v940, 4294901760
        %v4320 = vsub.f32 %v940, %v4319
        %4321 = vmatpush2.xpose.msra.mxu0 %v4320
        %v4322 = vand.u32 %v937, 4294901760
        %v4323 = vsub.f32 %v937, %v4322
        %4324 = vmatprep.subr.mxu0 %v4323
        %v4325 = vand.u32 %v936, 4294901760
        %v4326 = vsub.f32 %v936, %v4325
        %4327 = vmatpush2.xpose.msra.mxu0 %v4326
        %v4328 = vand.u32 %v933, 4294901760
        %v4329 = vsub.f32 %v933, %v4328
        %4330 = vmatprep.subr.mxu0 %v4329
        %v4331 = vand.u32 %v932, 4294901760
        %v4332 = vsub.f32 %v932, %v4331
        %4333 = vmatpush2.xpose.msra.mxu0 %v4332
        %v4334 = vand.u32 %v929, 4294901760
        %v4335 = vsub.f32 %v929, %v4334
        %4336 = vmatprep.subr.mxu0 %v4335
        %v4337 = vand.u32 %v928, 4294901760
        %v4338 = vsub.f32 %v928, %v4337
        %4339 = vmatpush2.xpose.msra.mxu0 %v4338
        %v4340 = vand.u32 %v925, 4294901760
        %v4341 = vsub.f32 %v925, %v4340
        %4342 = vmatprep.subr.mxu0 %v4341
        %v4343 = vand.u32 %v924, 4294901760
        %v4344 = vsub.f32 %v924, %v4343
        %4345 = vmatpush2.xpose.msra.mxu0 %v4344
        %v4346 = vand.u32 %v921, 4294901760
        %v4347 = vsub.f32 %v921, %v4346
        %4348 = vmatprep.subr.mxu0 %v4347
        %v4349 = vand.u32 %v920, 4294901760
        %v4350 = vsub.f32 %v920, %v4349
        %4351 = vmatpush2.xpose.msra.mxu0 %v4350
        %v4352 = vand.u32 %v917, 4294901760
        %v4353 = vsub.f32 %v917, %v4352
        %4354 = vmatprep.subr.mxu0 %v4353
        %v4355 = vand.u32 %v916, 4294901760
        %v4356 = vsub.f32 %v916, %v4355
        %4357 = vmatpush2.xpose.msra.mxu0 %v4356
        %v4358 = vand.u32 %v913, 4294901760
        %v4359 = vsub.f32 %v913, %v4358
        %4360 = vmatprep.subr.mxu0 %v4359
        %v4361 = vand.u32 %v912, 4294901760
        %v4362 = vsub.f32 %v912, %v4361
        %4363 = vmatpush2.xpose.msra.mxu0 %v4362
        %v4364 = vand.u32 %v909, 4294901760
        %v4365 = vsub.f32 %v909, %v4364
        %4366 = vmatprep.subr.mxu0 %v4365
        %v4367 = vand.u32 %v908, 4294901760
        %v4368 = vsub.f32 %v908, %v4367
        %4369 = vmatpush2.xpose.msra.mxu0 %v4368
        %v4370 = vand.u32 %v905, 4294901760
        %v4371 = vsub.f32 %v905, %v4370
        %4372 = vmatprep.subr.mxu0 %v4371
        %v4373 = vand.u32 %v904, 4294901760
        %v4374 = vsub.f32 %v904, %v4373
        %4375 = vmatpush2.xpose.msra.mxu0 %v4374
        %v4376 = vand.u32 %v901, 4294901760
        %v4377 = vsub.f32 %v901, %v4376
        %4378 = vmatprep.subr.mxu0 %v4377
        %v4379 = vand.u32 %v900, 4294901760
        %v4380 = vsub.f32 %v900, %v4379
        %4381 = vmatpush2.xpose.msra.mxu0 %v4380
        %v4382 = vand.u32 %v897, 4294901760
        %v4383 = vsub.f32 %v897, %v4382
        %4384 = vmatprep.subr.mxu0 %v4383
        %v4385 = vand.u32 %v896, 4294901760
        %v4386 = vsub.f32 %v896, %v4385
        %4387 = vmatpush2.xpose.msra.mxu0 %v4386
        %v4388 = vand.u32 %v893, 4294901760
        %v4389 = vsub.f32 %v893, %v4388
        %4390 = vmatprep.subr.mxu0 %v4389
        %v4391 = vand.u32 %v892, 4294901760
        %v4392 = vsub.f32 %v892, %v4391
        %4393 = vmatpush2.xpose.msra.mxu0 %v4392
        %v4394 = vand.u32 %v889, 4294901760
        %v4395 = vsub.f32 %v889, %v4394
        %4396 = vmatprep.subr.mxu0 %v4395
        %v4397 = vand.u32 %v888, 4294901760
        %v4398 = vsub.f32 %v888, %v4397
        %4399 = vmatpush2.xpose.msra.mxu0 %v4398
        %v4400 = vand.u32 %v885, 4294901760
        %v4401 = vsub.f32 %v885, %v4400
        %4402 = vmatprep.subr.mxu0 %v4401
        %v4403 = vand.u32 %v884, 4294901760
        %v4404 = vsub.f32 %v884, %v4403
        %4405 = vmatpush2.xpose.msra.mxu0 %v4404
        %v4406 = vand.u32 %v881, 4294901760
        %v4407 = vsub.f32 %v881, %v4406
        %4408 = vmatprep.subr.mxu0 %v4407
        %v4409 = vand.u32 %v880, 4294901760
        %v4410 = vsub.f32 %v880, %v4409
        %4411 = vmatpush2.xpose.msra.mxu0 %v4410
        %v4412 = vand.u32 %v681, 4294901760
        %v4413 = vsub.f32 %v681, %v4412
        %4414 = vmatprep.mubr.f32.mxu0 %v4413
        %v4415 = vand.u32 %v680, 4294901760
        %v4416 = vsub.f32 %v680, %v4415
        %4417 = vmatmul.mubr.f32.gmra.mxu0 %v4416
        %v4418 = vpop.f32.mrf.mxu0
        %v4419 = vadd.f32 %v4208, %v4418
        %v4420 = vpop.f32.mrf.mxu0
        %v4421 = vadd.f32 %v4210, %v4420
        %v4422 = vand.u32 %v685, 4294901760
        %v4423 = vsub.f32 %v685, %v4422
        %4424 = vmatprep.mubr.f32.mxu0 %v4423
        %v4425 = vand.u32 %v684, 4294901760
        %v4426 = vsub.f32 %v684, %v4425
        %4427 = vmatmul.mubr.f32.gmra.mxu0 %v4426
        %v4428 = vpop.f32.mrf.mxu0
        %v4429 = vadd.f32 %v4216, %v4428
        %v4430 = vpop.f32.mrf.mxu0
        %v4431 = vadd.f32 %v4218, %v4430
        %4432 = vdwg.mxu0
        %v4433 = vand.u32 %v877, 4294901760
        %4434 = vmatprep.subr.mxu0 %v4433
        %v4435 = vand.u32 %v876, 4294901760
        %4436 = vmatpush1.xpose.msra.mxu0 %v4435
        %v4437 = vand.u32 %v873, 4294901760
        %4438 = vmatprep.subr.mxu0 %v4437
        %v4439 = vand.u32 %v872, 4294901760
        %4440 = vmatpush1.xpose.msra.mxu0 %v4439
        %v4441 = vand.u32 %v869, 4294901760
        %4442 = vmatprep.subr.mxu0 %v4441
        %v4443 = vand.u32 %v868, 4294901760
        %4444 = vmatpush1.xpose.msra.mxu0 %v4443
        %v4445 = vand.u32 %v865, 4294901760
        %4446 = vmatprep.subr.mxu0 %v4445
        %v4447 = vand.u32 %v864, 4294901760
        %4448 = vmatpush1.xpose.msra.mxu0 %v4447
        %v4449 = vand.u32 %v861, 4294901760
        %4450 = vmatprep.subr.mxu0 %v4449
        %v4451 = vand.u32 %v860, 4294901760
        %4452 = vmatpush1.xpose.msra.mxu0 %v4451
        %v4453 = vand.u32 %v857, 4294901760
        %4454 = vmatprep.subr.mxu0 %v4453
        %v4455 = vand.u32 %v856, 4294901760
        %4456 = vmatpush1.xpose.msra.mxu0 %v4455
        %v4457 = vand.u32 %v853, 4294901760
        %4458 = vmatprep.subr.mxu0 %v4457
        %v4459 = vand.u32 %v852, 4294901760
        %4460 = vmatpush1.xpose.msra.mxu0 %v4459
        %v4461 = vand.u32 %v849, 4294901760
        %4462 = vmatprep.subr.mxu0 %v4461
        %v4463 = vand.u32 %v848, 4294901760
        %4464 = vmatpush1.xpose.msra.mxu0 %v4463
        %v4465 = vand.u32 %v845, 4294901760
        %4466 = vmatprep.subr.mxu0 %v4465
        %v4467 = vand.u32 %v844, 4294901760
        %4468 = vmatpush1.xpose.msra.mxu0 %v4467
        %v4469 = vand.u32 %v841, 4294901760
        %4470 = vmatprep.subr.mxu0 %v4469
        %v4471 = vand.u32 %v840, 4294901760
        %4472 = vmatpush1.xpose.msra.mxu0 %v4471
        %v4473 = vand.u32 %v837, 4294901760
        %4474 = vmatprep.subr.mxu0 %v4473
        %v4475 = vand.u32 %v836, 4294901760
        %4476 = vmatpush1.xpose.msra.mxu0 %v4475
        %v4477 = vand.u32 %v833, 4294901760
        %4478 = vmatprep.subr.mxu0 %v4477
        %v4479 = vand.u32 %v832, 4294901760
        %4480 = vmatpush1.xpose.msra.mxu0 %v4479
        %v4481 = vand.u32 %v829, 4294901760
        %4482 = vmatprep.subr.mxu0 %v4481
        %v4483 = vand.u32 %v828, 4294901760
        %4484 = vmatpush1.xpose.msra.mxu0 %v4483
        %v4485 = vand.u32 %v825, 4294901760
        %4486 = vmatprep.subr.mxu0 %v4485
        %v4487 = vand.u32 %v824, 4294901760
        %4488 = vmatpush1.xpose.msra.mxu0 %v4487
        %v4489 = vand.u32 %v821, 4294901760
        %4490 = vmatprep.subr.mxu0 %v4489
        %v4491 = vand.u32 %v820, 4294901760
        %4492 = vmatpush1.xpose.msra.mxu0 %v4491
        %v4493 = vand.u32 %v817, 4294901760
        %4494 = vmatprep.subr.mxu0 %v4493
        %v4495 = vand.u32 %v816, 4294901760
        %4496 = vmatpush1.xpose.msra.mxu0 %v4495
        %v4497 = vand.u32 %v941, 4294901760
        %4498 = vmatprep.subr.mxu0 %v4497
        %v4499 = vand.u32 %v940, 4294901760
        %4500 = vmatpush2.xpose.msra.mxu0 %v4499
        %v4501 = vand.u32 %v937, 4294901760
        %4502 = vmatprep.subr.mxu0 %v4501
        %v4503 = vand.u32 %v936, 4294901760
        %4504 = vmatpush2.xpose.msra.mxu0 %v4503
        %v4505 = vand.u32 %v933, 4294901760
        %4506 = vmatprep.subr.mxu0 %v4505
        %v4507 = vand.u32 %v932, 4294901760
        %4508 = vmatpush2.xpose.msra.mxu0 %v4507
        %v4509 = vand.u32 %v929, 4294901760
        %4510 = vmatprep.subr.mxu0 %v4509
        %v4511 = vand.u32 %v928, 4294901760
        %4512 = vmatpush2.xpose.msra.mxu0 %v4511
        %v4513 = vand.u32 %v925, 4294901760
        %4514 = vmatprep.subr.mxu0 %v4513
        %v4515 = vand.u32 %v924, 4294901760
        %4516 = vmatpush2.xpose.msra.mxu0 %v4515
        %v4517 = vand.u32 %v921, 4294901760
        %4518 = vmatprep.subr.mxu0 %v4517
        %v4519 = vand.u32 %v920, 4294901760
        %4520 = vmatpush2.xpose.msra.mxu0 %v4519
        %v4521 = vand.u32 %v917, 4294901760
        %4522 = vmatprep.subr.mxu0 %v4521
        %v4523 = vand.u32 %v916, 4294901760
        %4524 = vmatpush2.xpose.msra.mxu0 %v4523
        %v4525 = vand.u32 %v913, 4294901760
        %4526 = vmatprep.subr.mxu0 %v4525
        %v4527 = vand.u32 %v912, 4294901760
        %4528 = vmatpush2.xpose.msra.mxu0 %v4527
        %v4529 = vand.u32 %v909, 4294901760
        %4530 = vmatprep.subr.mxu0 %v4529
        %v4531 = vand.u32 %v908, 4294901760
        %4532 = vmatpush2.xpose.msra.mxu0 %v4531
        %v4533 = vand.u32 %v905, 4294901760
        %4534 = vmatprep.subr.mxu0 %v4533
        %v4535 = vand.u32 %v904, 4294901760
        %4536 = vmatpush2.xpose.msra.mxu0 %v4535
        %v4537 = vand.u32 %v901, 4294901760
        %4538 = vmatprep.subr.mxu0 %v4537
        %v4539 = vand.u32 %v900, 4294901760
        %4540 = vmatpush2.xpose.msra.mxu0 %v4539
        %v4541 = vand.u32 %v897, 4294901760
        %4542 = vmatprep.subr.mxu0 %v4541
        %v4543 = vand.u32 %v896, 4294901760
        %4544 = vmatpush2.xpose.msra.mxu0 %v4543
        %v4545 = vand.u32 %v893, 4294901760
        %4546 = vmatprep.subr.mxu0 %v4545
        %v4547 = vand.u32 %v892, 4294901760
        %4548 = vmatpush2.xpose.msra.mxu0 %v4547
        %v4549 = vand.u32 %v889, 4294901760
        %4550 = vmatprep.subr.mxu0 %v4549
        %v4551 = vand.u32 %v888, 4294901760
        %4552 = vmatpush2.xpose.msra.mxu0 %v4551
        %v4553 = vand.u32 %v885, 4294901760
        %4554 = vmatprep.subr.mxu0 %v4553
        %v4555 = vand.u32 %v884, 4294901760
        %4556 = vmatpush2.xpose.msra.mxu0 %v4555
        %v4557 = vand.u32 %v881, 4294901760
        %4558 = vmatprep.subr.mxu0 %v4557
        %v4559 = vand.u32 %v880, 4294901760
        %4560 = vmatpush2.xpose.msra.mxu0 %v4559
        %v4561 = vand.u32 %v681, 4294901760
        %v4562 = vsub.f32 %v681, %v4561
        %v4563 = vand.u32 %v4562, 4294901760
        %4564 = vmatprep.mubr.f32.mxu0 %v4563
        %v4565 = vand.u32 %v680, 4294901760
        %v4566 = vsub.f32 %v680, %v4565
        %v4567 = vand.u32 %v4566, 4294901760
        %4568 = vmatmul.mubr.f32.gmra.mxu0 %v4567
        %v4569 = vpop.f32.mrf.mxu0
        %v4570 = vadd.f32 %v4419, %v4569
        %v4571 = vpop.f32.mrf.mxu0
        %v4572 = vadd.f32 %v4421, %v4571
        %v4573 = vand.u32 %v685, 4294901760
        %v4574 = vsub.f32 %v685, %v4573
        %v4575 = vand.u32 %v4574, 4294901760
        %4576 = vmatprep.mubr.f32.mxu0 %v4575
        %v4577 = vand.u32 %v684, 4294901760
        %v4578 = vsub.f32 %v684, %v4577
        %v4579 = vand.u32 %v4578, 4294901760
        %4580 = vmatmul.mubr.f32.gmra.mxu0 %v4579
        %v4581 = vpop.f32.mrf.mxu0
        %v4582 = vadd.f32 %v4429, %v4581
        %v4583 = vpop.f32.mrf.mxu0
        %v4584 = vadd.f32 %v4431, %v4583
        %4585 = vdwg.mxu0
        %v4586 = vand.u32 %v877, 4294901760
        %v4587 = vsub.f32 %v877, %v4586
        %v4588 = vand.u32 %v4587, 4294901760
        %4589 = vmatprep.subr.mxu0 %v4588
        %v4590 = vand.u32 %v876, 4294901760
        %v4591 = vsub.f32 %v876, %v4590
        %v4592 = vand.u32 %v4591, 4294901760
        %4593 = vmatpush1.xpose.msra.mxu0 %v4592
        %v4594 = vand.u32 %v873, 4294901760
        %v4595 = vsub.f32 %v873, %v4594
        %v4596 = vand.u32 %v4595, 4294901760
        %4597 = vmatprep.subr.mxu0 %v4596
        %v4598 = vand.u32 %v872, 4294901760
        %v4599 = vsub.f32 %v872, %v4598
        %v4600 = vand.u32 %v4599, 4294901760
        %4601 = vmatpush1.xpose.msra.mxu0 %v4600
        %v4602 = vand.u32 %v869, 4294901760
        %v4603 = vsub.f32 %v869, %v4602
        %v4604 = vand.u32 %v4603, 4294901760
        %4605 = vmatprep.subr.mxu0 %v4604
        %v4606 = vand.u32 %v868, 4294901760
        %v4607 = vsub.f32 %v868, %v4606
        %v4608 = vand.u32 %v4607, 4294901760
        %4609 = vmatpush1.xpose.msra.mxu0 %v4608
        %v4610 = vand.u32 %v865, 4294901760
        %v4611 = vsub.f32 %v865, %v4610
        %v4612 = vand.u32 %v4611, 4294901760
        %4613 = vmatprep.subr.mxu0 %v4612
        %v4614 = vand.u32 %v864, 4294901760
        %v4615 = vsub.f32 %v864, %v4614
        %v4616 = vand.u32 %v4615, 4294901760
        %4617 = vmatpush1.xpose.msra.mxu0 %v4616
        %v4618 = vand.u32 %v861, 4294901760
        %v4619 = vsub.f32 %v861, %v4618
        %v4620 = vand.u32 %v4619, 4294901760
        %4621 = vmatprep.subr.mxu0 %v4620
        %v4622 = vand.u32 %v860, 4294901760
        %v4623 = vsub.f32 %v860, %v4622
        %v4624 = vand.u32 %v4623, 4294901760
        %4625 = vmatpush1.xpose.msra.mxu0 %v4624
        %v4626 = vand.u32 %v857, 4294901760
        %v4627 = vsub.f32 %v857, %v4626
        %v4628 = vand.u32 %v4627, 4294901760
        %4629 = vmatprep.subr.mxu0 %v4628
        %v4630 = vand.u32 %v856, 4294901760
        %v4631 = vsub.f32 %v856, %v4630
        %v4632 = vand.u32 %v4631, 4294901760
        %4633 = vmatpush1.xpose.msra.mxu0 %v4632
        %v4634 = vand.u32 %v853, 4294901760
        %v4635 = vsub.f32 %v853, %v4634
        %v4636 = vand.u32 %v4635, 4294901760
        %4637 = vmatprep.subr.mxu0 %v4636
        %v4638 = vand.u32 %v852, 4294901760
        %v4639 = vsub.f32 %v852, %v4638
        %v4640 = vand.u32 %v4639, 4294901760
        %4641 = vmatpush1.xpose.msra.mxu0 %v4640
        %v4642 = vand.u32 %v849, 4294901760
        %v4643 = vsub.f32 %v849, %v4642
        %v4644 = vand.u32 %v4643, 4294901760
        %4645 = vmatprep.subr.mxu0 %v4644
        %v4646 = vand.u32 %v848, 4294901760
        %v4647 = vsub.f32 %v848, %v4646
        %v4648 = vand.u32 %v4647, 4294901760
        %4649 = vmatpush1.xpose.msra.mxu0 %v4648
        %v4650 = vand.u32 %v845, 4294901760
        %v4651 = vsub.f32 %v845, %v4650
        %v4652 = vand.u32 %v4651, 4294901760
        %4653 = vmatprep.subr.mxu0 %v4652
        %v4654 = vand.u32 %v844, 4294901760
        %v4655 = vsub.f32 %v844, %v4654
        %v4656 = vand.u32 %v4655, 4294901760
        %4657 = vmatpush1.xpose.msra.mxu0 %v4656
        %v4658 = vand.u32 %v841, 4294901760
        %v4659 = vsub.f32 %v841, %v4658
        %v4660 = vand.u32 %v4659, 4294901760
        %4661 = vmatprep.subr.mxu0 %v4660
        %v4662 = vand.u32 %v840, 4294901760
        %v4663 = vsub.f32 %v840, %v4662
        %v4664 = vand.u32 %v4663, 4294901760
        %4665 = vmatpush1.xpose.msra.mxu0 %v4664
        %v4666 = vand.u32 %v837, 4294901760
        %v4667 = vsub.f32 %v837, %v4666
        %v4668 = vand.u32 %v4667, 4294901760
        %4669 = vmatprep.subr.mxu0 %v4668
        %v4670 = vand.u32 %v836, 4294901760
        %v4671 = vsub.f32 %v836, %v4670
        %v4672 = vand.u32 %v4671, 4294901760
        %4673 = vmatpush1.xpose.msra.mxu0 %v4672
        %v4674 = vand.u32 %v833, 4294901760
        %v4675 = vsub.f32 %v833, %v4674
        %v4676 = vand.u32 %v4675, 4294901760
        %4677 = vmatprep.subr.mxu0 %v4676
        %v4678 = vand.u32 %v832, 4294901760
        %v4679 = vsub.f32 %v832, %v4678
        %v4680 = vand.u32 %v4679, 4294901760
        %4681 = vmatpush1.xpose.msra.mxu0 %v4680
        %v4682 = vand.u32 %v829, 4294901760
        %v4683 = vsub.f32 %v829, %v4682
        %v4684 = vand.u32 %v4683, 4294901760
        %4685 = vmatprep.subr.mxu0 %v4684
        %v4686 = vand.u32 %v828, 4294901760
        %v4687 = vsub.f32 %v828, %v4686
        %v4688 = vand.u32 %v4687, 4294901760
        %4689 = vmatpush1.xpose.msra.mxu0 %v4688
        %v4690 = vand.u32 %v825, 4294901760
        %v4691 = vsub.f32 %v825, %v4690
        %v4692 = vand.u32 %v4691, 4294901760
        %4693 = vmatprep.subr.mxu0 %v4692
        %v4694 = vand.u32 %v824, 4294901760
        %v4695 = vsub.f32 %v824, %v4694
        %v4696 = vand.u32 %v4695, 4294901760
        %4697 = vmatpush1.xpose.msra.mxu0 %v4696
        %v4698 = vand.u32 %v821, 4294901760
        %v4699 = vsub.f32 %v821, %v4698
        %v4700 = vand.u32 %v4699, 4294901760
        %4701 = vmatprep.subr.mxu0 %v4700
        %v4702 = vand.u32 %v820, 4294901760
        %v4703 = vsub.f32 %v820, %v4702
        %v4704 = vand.u32 %v4703, 4294901760
        %4705 = vmatpush1.xpose.msra.mxu0 %v4704
        %v4706 = vand.u32 %v817, 4294901760
        %v4707 = vsub.f32 %v817, %v4706
        %v4708 = vand.u32 %v4707, 4294901760
        %4709 = vmatprep.subr.mxu0 %v4708
        %v4710 = vand.u32 %v816, 4294901760
        %v4711 = vsub.f32 %v816, %v4710
        %v4712 = vand.u32 %v4711, 4294901760
        %4713 = vmatpush1.xpose.msra.mxu0 %v4712
        %v4714 = vand.u32 %v941, 4294901760
        %v4715 = vsub.f32 %v941, %v4714
        %v4716 = vand.u32 %v4715, 4294901760
        %4717 = vmatprep.subr.mxu0 %v4716
        %v4718 = vand.u32 %v940, 4294901760
        %v4719 = vsub.f32 %v940, %v4718
        %v4720 = vand.u32 %v4719, 4294901760
        %4721 = vmatpush2.xpose.msra.mxu0 %v4720
        %v4722 = vand.u32 %v937, 4294901760
        %v4723 = vsub.f32 %v937, %v4722
        %v4724 = vand.u32 %v4723, 4294901760
        %4725 = vmatprep.subr.mxu0 %v4724
        %v4726 = vand.u32 %v936, 4294901760
        %v4727 = vsub.f32 %v936, %v4726
        %v4728 = vand.u32 %v4727, 4294901760
        %4729 = vmatpush2.xpose.msra.mxu0 %v4728
        %v4730 = vand.u32 %v933, 4294901760
        %v4731 = vsub.f32 %v933, %v4730
        %v4732 = vand.u32 %v4731, 4294901760
        %4733 = vmatprep.subr.mxu0 %v4732
        %v4734 = vand.u32 %v932, 4294901760
        %v4735 = vsub.f32 %v932, %v4734
        %v4736 = vand.u32 %v4735, 4294901760
        %4737 = vmatpush2.xpose.msra.mxu0 %v4736
        %v4738 = vand.u32 %v929, 4294901760
        %v4739 = vsub.f32 %v929, %v4738
        %v4740 = vand.u32 %v4739, 4294901760
        %4741 = vmatprep.subr.mxu0 %v4740
        %v4742 = vand.u32 %v928, 4294901760
        %v4743 = vsub.f32 %v928, %v4742
        %v4744 = vand.u32 %v4743, 4294901760
        %4745 = vmatpush2.xpose.msra.mxu0 %v4744
        %v4746 = vand.u32 %v925, 4294901760
        %v4747 = vsub.f32 %v925, %v4746
        %v4748 = vand.u32 %v4747, 4294901760
        %4749 = vmatprep.subr.mxu0 %v4748
        %v4750 = vand.u32 %v924, 4294901760
        %v4751 = vsub.f32 %v924, %v4750
        %v4752 = vand.u32 %v4751, 4294901760
        %4753 = vmatpush2.xpose.msra.mxu0 %v4752
        %v4754 = vand.u32 %v921, 4294901760
        %v4755 = vsub.f32 %v921, %v4754
        %v4756 = vand.u32 %v4755, 4294901760
        %4757 = vmatprep.subr.mxu0 %v4756
        %v4758 = vand.u32 %v920, 4294901760
        %v4759 = vsub.f32 %v920, %v4758
        %v4760 = vand.u32 %v4759, 4294901760
        %4761 = vmatpush2.xpose.msra.mxu0 %v4760
        %v4762 = vand.u32 %v917, 4294901760
        %v4763 = vsub.f32 %v917, %v4762
        %v4764 = vand.u32 %v4763, 4294901760
        %4765 = vmatprep.subr.mxu0 %v4764
        %v4766 = vand.u32 %v916, 4294901760
        %v4767 = vsub.f32 %v916, %v4766
        %v4768 = vand.u32 %v4767, 4294901760
        %4769 = vmatpush2.xpose.msra.mxu0 %v4768
        %v4770 = vand.u32 %v913, 4294901760
        %v4771 = vsub.f32 %v913, %v4770
        %v4772 = vand.u32 %v4771, 4294901760
        %4773 = vmatprep.subr.mxu0 %v4772
        %v4774 = vand.u32 %v912, 4294901760
        %v4775 = vsub.f32 %v912, %v4774
        %v4776 = vand.u32 %v4775, 4294901760
        %4777 = vmatpush2.xpose.msra.mxu0 %v4776
        %v4778 = vand.u32 %v909, 4294901760
        %v4779 = vsub.f32 %v909, %v4778
        %v4780 = vand.u32 %v4779, 4294901760
        %4781 = vmatprep.subr.mxu0 %v4780
        %v4782 = vand.u32 %v908, 4294901760
        %v4783 = vsub.f32 %v908, %v4782
        %v4784 = vand.u32 %v4783, 4294901760
        %4785 = vmatpush2.xpose.msra.mxu0 %v4784
        %v4786 = vand.u32 %v905, 4294901760
        %v4787 = vsub.f32 %v905, %v4786
        %v4788 = vand.u32 %v4787, 4294901760
        %4789 = vmatprep.subr.mxu0 %v4788
        %v4790 = vand.u32 %v904, 4294901760
        %v4791 = vsub.f32 %v904, %v4790
        %v4792 = vand.u32 %v4791, 4294901760
        %4793 = vmatpush2.xpose.msra.mxu0 %v4792
        %v4794 = vand.u32 %v901, 4294901760
        %v4795 = vsub.f32 %v901, %v4794
        %v4796 = vand.u32 %v4795, 4294901760
        %4797 = vmatprep.subr.mxu0 %v4796
        %v4798 = vand.u32 %v900, 4294901760
        %v4799 = vsub.f32 %v900, %v4798
        %v4800 = vand.u32 %v4799, 4294901760
        %4801 = vmatpush2.xpose.msra.mxu0 %v4800
        %v4802 = vand.u32 %v897, 4294901760
        %v4803 = vsub.f32 %v897, %v4802
        %v4804 = vand.u32 %v4803, 4294901760
        %4805 = vmatprep.subr.mxu0 %v4804
        %v4806 = vand.u32 %v896, 4294901760
        %v4807 = vsub.f32 %v896, %v4806
        %v4808 = vand.u32 %v4807, 4294901760
        %4809 = vmatpush2.xpose.msra.mxu0 %v4808
        %v4810 = vand.u32 %v893, 4294901760
        %v4811 = vsub.f32 %v893, %v4810
        %v4812 = vand.u32 %v4811, 4294901760
        %4813 = vmatprep.subr.mxu0 %v4812
        %v4814 = vand.u32 %v892, 4294901760
        %v4815 = vsub.f32 %v892, %v4814
        %v4816 = vand.u32 %v4815, 4294901760
        %4817 = vmatpush2.xpose.msra.mxu0 %v4816
        %v4818 = vand.u32 %v889, 4294901760
        %v4819 = vsub.f32 %v889, %v4818
        %v4820 = vand.u32 %v4819, 4294901760
        %4821 = vmatprep.subr.mxu0 %v4820
        %v4822 = vand.u32 %v888, 4294901760
        %v4823 = vsub.f32 %v888, %v4822
        %v4824 = vand.u32 %v4823, 4294901760
        %4825 = vmatpush2.xpose.msra.mxu0 %v4824
        %v4826 = vand.u32 %v885, 4294901760
        %v4827 = vsub.f32 %v885, %v4826
        %v4828 = vand.u32 %v4827, 4294901760
        %4829 = vmatprep.subr.mxu0 %v4828
        %v4830 = vand.u32 %v884, 4294901760
        %v4831 = vsub.f32 %v884, %v4830
        %v4832 = vand.u32 %v4831, 4294901760
        %4833 = vmatpush2.xpose.msra.mxu0 %v4832
        %v4834 = vand.u32 %v881, 4294901760
        %v4835 = vsub.f32 %v881, %v4834
        %v4836 = vand.u32 %v4835, 4294901760
        %4837 = vmatprep.subr.mxu0 %v4836
        %v4838 = vand.u32 %v880, 4294901760
        %v4839 = vsub.f32 %v880, %v4838
        %v4840 = vand.u32 %v4839, 4294901760
        %4841 = vmatpush2.xpose.msra.mxu0 %v4840
        %v4842 = vand.u32 %v681, 4294901760
        %4843 = vmatprep.mubr.f32.mxu0 %v4842
        %v4844 = vand.u32 %v680, 4294901760
        %4845 = vmatmul.mubr.f32.gmra.mxu0 %v4844
        %v4846 = vpop.f32.mrf.mxu0
        %v4847 = vadd.f32 %v4570, %v4846
        %v4848 = vpop.f32.mrf.mxu0
        %v4849 = vadd.f32 %v4572, %v4848
        %v4850 = vand.u32 %v685, 4294901760
        %4851 = vmatprep.mubr.f32.mxu0 %v4850
        %v4852 = vand.u32 %v684, 4294901760
        %4853 = vmatmul.mubr.f32.gmra.mxu0 %v4852
        %v4854 = vpop.f32.mrf.mxu0
        %v4855 = vadd.f32 %v4582, %v4854
        %v4856 = vpop.f32.mrf.mxu0
        %v4857 = vadd.f32 %v4584, %v4856
        %4858 = vdwg.mxu0
        %v4859 = vand.u32 %v877, 4294901760
        %4860 = vmatprep.subr.mxu0 %v4859
        %v4861 = vand.u32 %v876, 4294901760
        %4862 = vmatpush1.xpose.msra.mxu0 %v4861
        %v4863 = vand.u32 %v873, 4294901760
        %4864 = vmatprep.subr.mxu0 %v4863
        %v4865 = vand.u32 %v872, 4294901760
        %4866 = vmatpush1.xpose.msra.mxu0 %v4865
        %v4867 = vand.u32 %v869, 4294901760
        %4868 = vmatprep.subr.mxu0 %v4867
        %v4869 = vand.u32 %v868, 4294901760
        %4870 = vmatpush1.xpose.msra.mxu0 %v4869
        %v4871 = vand.u32 %v865, 4294901760
        %4872 = vmatprep.subr.mxu0 %v4871
        %v4873 = vand.u32 %v864, 4294901760
        %4874 = vmatpush1.xpose.msra.mxu0 %v4873
        %v4875 = vand.u32 %v861, 4294901760
        %4876 = vmatprep.subr.mxu0 %v4875
        %v4877 = vand.u32 %v860, 4294901760
        %4878 = vmatpush1.xpose.msra.mxu0 %v4877
        %v4879 = vand.u32 %v857, 4294901760
        %4880 = vmatprep.subr.mxu0 %v4879
        %v4881 = vand.u32 %v856, 4294901760
        %4882 = vmatpush1.xpose.msra.mxu0 %v4881
        %v4883 = vand.u32 %v853, 4294901760
        %4884 = vmatprep.subr.mxu0 %v4883
        %v4885 = vand.u32 %v852, 4294901760
        %4886 = vmatpush1.xpose.msra.mxu0 %v4885
        %v4887 = vand.u32 %v849, 4294901760
        %4888 = vmatprep.subr.mxu0 %v4887
        %v4889 = vand.u32 %v848, 4294901760
        %4890 = vmatpush1.xpose.msra.mxu0 %v4889
        %v4891 = vand.u32 %v845, 4294901760
        %4892 = vmatprep.subr.mxu0 %v4891
        %v4893 = vand.u32 %v844, 4294901760
        %4894 = vmatpush1.xpose.msra.mxu0 %v4893
        %v4895 = vand.u32 %v841, 4294901760
        %4896 = vmatprep.subr.mxu0 %v4895
        %v4897 = vand.u32 %v840, 4294901760
        %4898 = vmatpush1.xpose.msra.mxu0 %v4897
        %v4899 = vand.u32 %v837, 4294901760
        %4900 = vmatprep.subr.mxu0 %v4899
        %v4901 = vand.u32 %v836, 4294901760
        %4902 = vmatpush1.xpose.msra.mxu0 %v4901
        %v4903 = vand.u32 %v833, 4294901760
        %4904 = vmatprep.subr.mxu0 %v4903
        %v4905 = vand.u32 %v832, 4294901760
        %4906 = vmatpush1.xpose.msra.mxu0 %v4905
        %v4907 = vand.u32 %v829, 4294901760
        %4908 = vmatprep.subr.mxu0 %v4907
        %v4909 = vand.u32 %v828, 4294901760
        %4910 = vmatpush1.xpose.msra.mxu0 %v4909
        %v4911 = vand.u32 %v825, 4294901760
        %4912 = vmatprep.subr.mxu0 %v4911
        %v4913 = vand.u32 %v824, 4294901760
        %4914 = vmatpush1.xpose.msra.mxu0 %v4913
        %v4915 = vand.u32 %v821, 4294901760
        %4916 = vmatprep.subr.mxu0 %v4915
        %v4917 = vand.u32 %v820, 4294901760
        %4918 = vmatpush1.xpose.msra.mxu0 %v4917
        %v4919 = vand.u32 %v817, 4294901760
        %4920 = vmatprep.subr.mxu0 %v4919
        %v4921 = vand.u32 %v816, 4294901760
        %4922 = vmatpush1.xpose.msra.mxu0 %v4921
        %v4923 = vand.u32 %v941, 4294901760
        %4924 = vmatprep.subr.mxu0 %v4923
        %v4925 = vand.u32 %v940, 4294901760
        %4926 = vmatpush2.xpose.msra.mxu0 %v4925
        %v4927 = vand.u32 %v937, 4294901760
        %4928 = vmatprep.subr.mxu0 %v4927
        %v4929 = vand.u32 %v936, 4294901760
        %4930 = vmatpush2.xpose.msra.mxu0 %v4929
        %v4931 = vand.u32 %v933, 4294901760
        %4932 = vmatprep.subr.mxu0 %v4931
        %v4933 = vand.u32 %v932, 4294901760
        %4934 = vmatpush2.xpose.msra.mxu0 %v4933
        %v4935 = vand.u32 %v929, 4294901760
        %4936 = vmatprep.subr.mxu0 %v4935
        %v4937 = vand.u32 %v928, 4294901760
        %4938 = vmatpush2.xpose.msra.mxu0 %v4937
        %v4939 = vand.u32 %v925, 4294901760
        %4940 = vmatprep.subr.mxu0 %v4939
        %v4941 = vand.u32 %v924, 4294901760
        %4942 = vmatpush2.xpose.msra.mxu0 %v4941
        %v4943 = vand.u32 %v921, 4294901760
        %4944 = vmatprep.subr.mxu0 %v4943
        %v4945 = vand.u32 %v920, 4294901760
        %4946 = vmatpush2.xpose.msra.mxu0 %v4945
        %v4947 = vand.u32 %v917, 4294901760
        %4948 = vmatprep.subr.mxu0 %v4947
        %v4949 = vand.u32 %v916, 4294901760
        %4950 = vmatpush2.xpose.msra.mxu0 %v4949
        %v4951 = vand.u32 %v913, 4294901760
        %4952 = vmatprep.subr.mxu0 %v4951
        %v4953 = vand.u32 %v912, 4294901760
        %4954 = vmatpush2.xpose.msra.mxu0 %v4953
        %v4955 = vand.u32 %v909, 4294901760
        %4956 = vmatprep.subr.mxu0 %v4955
        %v4957 = vand.u32 %v908, 4294901760
        %4958 = vmatpush2.xpose.msra.mxu0 %v4957
        %v4959 = vand.u32 %v905, 4294901760
        %4960 = vmatprep.subr.mxu0 %v4959
        %v4961 = vand.u32 %v904, 4294901760
        %4962 = vmatpush2.xpose.msra.mxu0 %v4961
        %v4963 = vand.u32 %v901, 4294901760
        %4964 = vmatprep.subr.mxu0 %v4963
        %v4965 = vand.u32 %v900, 4294901760
        %4966 = vmatpush2.xpose.msra.mxu0 %v4965
        %v4967 = vand.u32 %v897, 4294901760
        %4968 = vmatprep.subr.mxu0 %v4967
        %v4969 = vand.u32 %v896, 4294901760
        %4970 = vmatpush2.xpose.msra.mxu0 %v4969
        %v4971 = vand.u32 %v893, 4294901760
        %4972 = vmatprep.subr.mxu0 %v4971
        %v4973 = vand.u32 %v892, 4294901760
        %4974 = vmatpush2.xpose.msra.mxu0 %v4973
        %v4975 = vand.u32 %v889, 4294901760
        %4976 = vmatprep.subr.mxu0 %v4975
        %v4977 = vand.u32 %v888, 4294901760
        %4978 = vmatpush2.xpose.msra.mxu0 %v4977
        %v4979 = vand.u32 %v885, 4294901760
        %4980 = vmatprep.subr.mxu0 %v4979
        %v4981 = vand.u32 %v884, 4294901760
        %4982 = vmatpush2.xpose.msra.mxu0 %v4981
        %v4983 = vand.u32 %v881, 4294901760
        %4984 = vmatprep.subr.mxu0 %v4983
        %v4985 = vand.u32 %v880, 4294901760
        %4986 = vmatpush2.xpose.msra.mxu0 %v4985
        %v4987 = vand.u32 %v681, 4294901760
        %4988 = vmatprep.mubr.f32.mxu0 %v4987
        %v4989 = vand.u32 %v680, 4294901760
        %4990 = vmatmul.mubr.f32.gmra.mxu0 %v4989
        %v4991 = vpop.f32.mrf.mxu0
        %v4992 = vadd.f32 %v4847, %v4991
        %v4993 = vpop.f32.mrf.mxu0
        %v4994 = vadd.f32 %v4849, %v4993
        %v4995 = vand.u32 %v685, 4294901760
        %4996 = vmatprep.mubr.f32.mxu0 %v4995
        %v4997 = vand.u32 %v684, 4294901760
        %4998 = vmatmul.mubr.f32.gmra.mxu0 %v4997
        %v4999 = vpop.f32.mrf.mxu0
        %v5000 = vadd.f32 %v4855, %v4999
        %v5001 = vpop.f32.mrf.mxu0
        %v5002 = vadd.f32 %v4857, %v5001
        %5003 = vdwg.mxu0
        %v5004 = vand.u32 %v879, 4294901760
        %5005 = vmatprep.subr.mxu0 %v5004
        %v5006 = vand.u32 %v878, 4294901760
        %5007 = vmatpush1.xpose.msra.mxu0 %v5006
        %v5008 = vand.u32 %v875, 4294901760
        %5009 = vmatprep.subr.mxu0 %v5008
        %v5010 = vand.u32 %v874, 4294901760
        %5011 = vmatpush1.xpose.msra.mxu0 %v5010
        %v5012 = vand.u32 %v871, 4294901760
        %5013 = vmatprep.subr.mxu0 %v5012
        %v5014 = vand.u32 %v870, 4294901760
        %5015 = vmatpush1.xpose.msra.mxu0 %v5014
        %v5016 = vand.u32 %v867, 4294901760
        %5017 = vmatprep.subr.mxu0 %v5016
        %v5018 = vand.u32 %v866, 4294901760
        %5019 = vmatpush1.xpose.msra.mxu0 %v5018
        %v5020 = vand.u32 %v863, 4294901760
        %5021 = vmatprep.subr.mxu0 %v5020
        %v5022 = vand.u32 %v862, 4294901760
        %5023 = vmatpush1.xpose.msra.mxu0 %v5022
        %v5024 = vand.u32 %v859, 4294901760
        %5025 = vmatprep.subr.mxu0 %v5024
        %v5026 = vand.u32 %v858, 4294901760
        %5027 = vmatpush1.xpose.msra.mxu0 %v5026
        %v5028 = vand.u32 %v855, 4294901760
        %5029 = vmatprep.subr.mxu0 %v5028
        %v5030 = vand.u32 %v854, 4294901760
        %5031 = vmatpush1.xpose.msra.mxu0 %v5030
        %v5032 = vand.u32 %v851, 4294901760
        %5033 = vmatprep.subr.mxu0 %v5032
        %v5034 = vand.u32 %v850, 4294901760
        %5035 = vmatpush1.xpose.msra.mxu0 %v5034
        %v5036 = vand.u32 %v847, 4294901760
        %5037 = vmatprep.subr.mxu0 %v5036
        %v5038 = vand.u32 %v846, 4294901760
        %5039 = vmatpush1.xpose.msra.mxu0 %v5038
        %v5040 = vand.u32 %v843, 4294901760
        %5041 = vmatprep.subr.mxu0 %v5040
        %v5042 = vand.u32 %v842, 4294901760
        %5043 = vmatpush1.xpose.msra.mxu0 %v5042
        %v5044 = vand.u32 %v839, 4294901760
        %5045 = vmatprep.subr.mxu0 %v5044
        %v5046 = vand.u32 %v838, 4294901760
        %5047 = vmatpush1.xpose.msra.mxu0 %v5046
        %v5048 = vand.u32 %v835, 4294901760
        %5049 = vmatprep.subr.mxu0 %v5048
        %v5050 = vand.u32 %v834, 4294901760
        %5051 = vmatpush1.xpose.msra.mxu0 %v5050
        %v5052 = vand.u32 %v831, 4294901760
        %5053 = vmatprep.subr.mxu0 %v5052
        %v5054 = vand.u32 %v830, 4294901760
        %5055 = vmatpush1.xpose.msra.mxu0 %v5054
        %v5056 = vand.u32 %v827, 4294901760
        %5057 = vmatprep.subr.mxu0 %v5056
        %v5058 = vand.u32 %v826, 4294901760
        %5059 = vmatpush1.xpose.msra.mxu0 %v5058
        %v5060 = vand.u32 %v823, 4294901760
        %5061 = vmatprep.subr.mxu0 %v5060
        %v5062 = vand.u32 %v822, 4294901760
        %5063 = vmatpush1.xpose.msra.mxu0 %v5062
        %v5064 = vand.u32 %v819, 4294901760
        %5065 = vmatprep.subr.mxu0 %v5064
        %v5066 = vand.u32 %v818, 4294901760
        %5067 = vmatpush1.xpose.msra.mxu0 %v5066
        %v5068 = vand.u32 %v943, 4294901760
        %5069 = vmatprep.subr.mxu0 %v5068
        %v5070 = vand.u32 %v942, 4294901760
        %5071 = vmatpush2.xpose.msra.mxu0 %v5070
        %v5072 = vand.u32 %v939, 4294901760
        %5073 = vmatprep.subr.mxu0 %v5072
        %v5074 = vand.u32 %v938, 4294901760
        %5075 = vmatpush2.xpose.msra.mxu0 %v5074
        %v5076 = vand.u32 %v935, 4294901760
        %5077 = vmatprep.subr.mxu0 %v5076
        %v5078 = vand.u32 %v934, 4294901760
        %5079 = vmatpush2.xpose.msra.mxu0 %v5078
        %v5080 = vand.u32 %v931, 4294901760
        %5081 = vmatprep.subr.mxu0 %v5080
        %v5082 = vand.u32 %v930, 4294901760
        %5083 = vmatpush2.xpose.msra.mxu0 %v5082
        %v5084 = vand.u32 %v927, 4294901760
        %5085 = vmatprep.subr.mxu0 %v5084
        %v5086 = vand.u32 %v926, 4294901760
        %5087 = vmatpush2.xpose.msra.mxu0 %v5086
        %v5088 = vand.u32 %v923, 4294901760
        %5089 = vmatprep.subr.mxu0 %v5088
        %v5090 = vand.u32 %v922, 4294901760
        %5091 = vmatpush2.xpose.msra.mxu0 %v5090
        %v5092 = vand.u32 %v919, 4294901760
        %5093 = vmatprep.subr.mxu0 %v5092
        %v5094 = vand.u32 %v918, 4294901760
        %5095 = vmatpush2.xpose.msra.mxu0 %v5094
        %v5096 = vand.u32 %v915, 4294901760
        %5097 = vmatprep.subr.mxu0 %v5096
        %v5098 = vand.u32 %v914, 4294901760
        %5099 = vmatpush2.xpose.msra.mxu0 %v5098
        %v5100 = vand.u32 %v911, 4294901760
        %5101 = vmatprep.subr.mxu0 %v5100
        %v5102 = vand.u32 %v910, 4294901760
        %5103 = vmatpush2.xpose.msra.mxu0 %v5102
        %v5104 = vand.u32 %v907, 4294901760
        %5105 = vmatprep.subr.mxu0 %v5104
        %v5106 = vand.u32 %v906, 4294901760
        %5107 = vmatpush2.xpose.msra.mxu0 %v5106
        %v5108 = vand.u32 %v903, 4294901760
        %5109 = vmatprep.subr.mxu0 %v5108
        %v5110 = vand.u32 %v902, 4294901760
        %5111 = vmatpush2.xpose.msra.mxu0 %v5110
        %v5112 = vand.u32 %v899, 4294901760
        %5113 = vmatprep.subr.mxu0 %v5112
        %v5114 = vand.u32 %v898, 4294901760
        %5115 = vmatpush2.xpose.msra.mxu0 %v5114
        %v5116 = vand.u32 %v895, 4294901760
        %5117 = vmatprep.subr.mxu0 %v5116
        %v5118 = vand.u32 %v894, 4294901760
        %5119 = vmatpush2.xpose.msra.mxu0 %v5118
        %v5120 = vand.u32 %v891, 4294901760
        %5121 = vmatprep.subr.mxu0 %v5120
        %v5122 = vand.u32 %v890, 4294901760
        %5123 = vmatpush2.xpose.msra.mxu0 %v5122
        %v5124 = vand.u32 %v887, 4294901760
        %5125 = vmatprep.subr.mxu0 %v5124
        %v5126 = vand.u32 %v886, 4294901760
        %5127 = vmatpush2.xpose.msra.mxu0 %v5126
        %v5128 = vand.u32 %v883, 4294901760
        %5129 = vmatprep.subr.mxu0 %v5128
        %v5130 = vand.u32 %v882, 4294901760
        %5131 = vmatpush2.xpose.msra.mxu0 %v5130
        %v5132 = vand.u32 %v683, 4294901760
        %v5133 = vsub.f32 %v683, %v5132
        %v5134 = vand.u32 %v5133, 4294901760
        %v5135 = vsub.f32 %v5133, %v5134
        %v5136 = vand.u32 %v5135, 4294901760
        %5137 = vmatprep.mubr.f32.mxu0 %v5136
        %v5138 = vand.u32 %v682, 4294901760
        %v5139 = vsub.f32 %v682, %v5138
        %v5140 = vand.u32 %v5139, 4294901760
        %v5141 = vsub.f32 %v5139, %v5140
        %v5142 = vand.u32 %v5141, 4294901760
        %5143 = vmatmul.mubr.f32.gmra.mxu0 %v5142
        %v5144 = vpop.f32.mrf.mxu0
        %v5145 = vadd.f32 %v4992, %v5144
        %v5146 = vpop.f32.mrf.mxu0
        %v5147 = vadd.f32 %v4994, %v5146
        %v5148 = vand.u32 %v687, 4294901760
        %v5149 = vsub.f32 %v687, %v5148
        %v5150 = vand.u32 %v5149, 4294901760
        %v5151 = vsub.f32 %v5149, %v5150
        %v5152 = vand.u32 %v5151, 4294901760
        %5153 = vmatprep.mubr.f32.mxu0 %v5152
        %v5154 = vand.u32 %v686, 4294901760
        %v5155 = vsub.f32 %v686, %v5154
        %v5156 = vand.u32 %v5155, 4294901760
        %v5157 = vsub.f32 %v5155, %v5156
        %v5158 = vand.u32 %v5157, 4294901760
        %5159 = vmatmul.mubr.f32.gmra.mxu0 %v5158
        %v5160 = vpop.f32.mrf.mxu0
        %v5161 = vadd.f32 %v5000, %v5160
        %v5162 = vpop.f32.mrf.mxu0
        %v5163 = vadd.f32 %v5002, %v5162
        %5164 = vdwg.mxu0
        %v5165 = vand.u32 %v879, 4294901760
        %v5166 = vsub.f32 %v879, %v5165
        %v5167 = vand.u32 %v5166, 4294901760
        %v5168 = vsub.f32 %v5166, %v5167
        %v5169 = vand.u32 %v5168, 4294901760
        %5170 = vmatprep.subr.mxu0 %v5169
        %v5171 = vand.u32 %v878, 4294901760
        %v5172 = vsub.f32 %v878, %v5171
        %v5173 = vand.u32 %v5172, 4294901760
        %v5174 = vsub.f32 %v5172, %v5173
        %v5175 = vand.u32 %v5174, 4294901760
        %5176 = vmatpush1.xpose.msra.mxu0 %v5175
        %v5177 = vand.u32 %v875, 4294901760
        %v5178 = vsub.f32 %v875, %v5177
        %v5179 = vand.u32 %v5178, 4294901760
        %v5180 = vsub.f32 %v5178, %v5179
        %v5181 = vand.u32 %v5180, 4294901760
        %5182 = vmatprep.subr.mxu0 %v5181
        %v5183 = vand.u32 %v874, 4294901760
        %v5184 = vsub.f32 %v874, %v5183
        %v5185 = vand.u32 %v5184, 4294901760
        %v5186 = vsub.f32 %v5184, %v5185
        %v5187 = vand.u32 %v5186, 4294901760
        %5188 = vmatpush1.xpose.msra.mxu0 %v5187
        %v5189 = vand.u32 %v871, 4294901760
        %v5190 = vsub.f32 %v871, %v5189
        %v5191 = vand.u32 %v5190, 4294901760
        %v5192 = vsub.f32 %v5190, %v5191
        %v5193 = vand.u32 %v5192, 4294901760
        %5194 = vmatprep.subr.mxu0 %v5193
        %v5195 = vand.u32 %v870, 4294901760
        %v5196 = vsub.f32 %v870, %v5195
        %v5197 = vand.u32 %v5196, 4294901760
        %v5198 = vsub.f32 %v5196, %v5197
        %v5199 = vand.u32 %v5198, 4294901760
        %5200 = vmatpush1.xpose.msra.mxu0 %v5199
        %v5201 = vand.u32 %v867, 4294901760
        %v5202 = vsub.f32 %v867, %v5201
        %v5203 = vand.u32 %v5202, 4294901760
        %v5204 = vsub.f32 %v5202, %v5203
        %v5205 = vand.u32 %v5204, 4294901760
        %5206 = vmatprep.subr.mxu0 %v5205
        %v5207 = vand.u32 %v866, 4294901760
        %v5208 = vsub.f32 %v866, %v5207
        %v5209 = vand.u32 %v5208, 4294901760
        %v5210 = vsub.f32 %v5208, %v5209
        %v5211 = vand.u32 %v5210, 4294901760
        %5212 = vmatpush1.xpose.msra.mxu0 %v5211
        %v5213 = vand.u32 %v863, 4294901760
        %v5214 = vsub.f32 %v863, %v5213
        %v5215 = vand.u32 %v5214, 4294901760
        %v5216 = vsub.f32 %v5214, %v5215
        %v5217 = vand.u32 %v5216, 4294901760
        %5218 = vmatprep.subr.mxu0 %v5217
        %v5219 = vand.u32 %v862, 4294901760
        %v5220 = vsub.f32 %v862, %v5219
        %v5221 = vand.u32 %v5220, 4294901760
        %v5222 = vsub.f32 %v5220, %v5221
        %v5223 = vand.u32 %v5222, 4294901760
        %5224 = vmatpush1.xpose.msra.mxu0 %v5223
        %v5225 = vand.u32 %v859, 4294901760
        %v5226 = vsub.f32 %v859, %v5225
        %v5227 = vand.u32 %v5226, 4294901760
        %v5228 = vsub.f32 %v5226, %v5227
        %v5229 = vand.u32 %v5228, 4294901760
        %5230 = vmatprep.subr.mxu0 %v5229
        %v5231 = vand.u32 %v858, 4294901760
        %v5232 = vsub.f32 %v858, %v5231
        %v5233 = vand.u32 %v5232, 4294901760
        %v5234 = vsub.f32 %v5232, %v5233
        %v5235 = vand.u32 %v5234, 4294901760
        %5236 = vmatpush1.xpose.msra.mxu0 %v5235
        %v5237 = vand.u32 %v855, 4294901760
        %v5238 = vsub.f32 %v855, %v5237
        %v5239 = vand.u32 %v5238, 4294901760
        %v5240 = vsub.f32 %v5238, %v5239
        %v5241 = vand.u32 %v5240, 4294901760
        %5242 = vmatprep.subr.mxu0 %v5241
        %v5243 = vand.u32 %v854, 4294901760
        %v5244 = vsub.f32 %v854, %v5243
        %v5245 = vand.u32 %v5244, 4294901760
        %v5246 = vsub.f32 %v5244, %v5245
        %v5247 = vand.u32 %v5246, 4294901760
        %5248 = vmatpush1.xpose.msra.mxu0 %v5247
        %v5249 = vand.u32 %v851, 4294901760
        %v5250 = vsub.f32 %v851, %v5249
        %v5251 = vand.u32 %v5250, 4294901760
        %v5252 = vsub.f32 %v5250, %v5251
        %v5253 = vand.u32 %v5252, 4294901760
        %5254 = vmatprep.subr.mxu0 %v5253
        %v5255 = vand.u32 %v850, 4294901760
        %v5256 = vsub.f32 %v850, %v5255
        %v5257 = vand.u32 %v5256, 4294901760
        %v5258 = vsub.f32 %v5256, %v5257
        %v5259 = vand.u32 %v5258, 4294901760
        %5260 = vmatpush1.xpose.msra.mxu0 %v5259
        %v5261 = vand.u32 %v847, 4294901760
        %v5262 = vsub.f32 %v847, %v5261
        %v5263 = vand.u32 %v5262, 4294901760
        %v5264 = vsub.f32 %v5262, %v5263
        %v5265 = vand.u32 %v5264, 4294901760
        %5266 = vmatprep.subr.mxu0 %v5265
        %v5267 = vand.u32 %v846, 4294901760
        %v5268 = vsub.f32 %v846, %v5267
        %v5269 = vand.u32 %v5268, 4294901760
        %v5270 = vsub.f32 %v5268, %v5269
        %v5271 = vand.u32 %v5270, 4294901760
        %5272 = vmatpush1.xpose.msra.mxu0 %v5271
        %v5273 = vand.u32 %v843, 4294901760
        %v5274 = vsub.f32 %v843, %v5273
        %v5275 = vand.u32 %v5274, 4294901760
        %v5276 = vsub.f32 %v5274, %v5275
        %v5277 = vand.u32 %v5276, 4294901760
        %5278 = vmatprep.subr.mxu0 %v5277
        %v5279 = vand.u32 %v842, 4294901760
        %v5280 = vsub.f32 %v842, %v5279
        %v5281 = vand.u32 %v5280, 4294901760
        %v5282 = vsub.f32 %v5280, %v5281
        %v5283 = vand.u32 %v5282, 4294901760
        %5284 = vmatpush1.xpose.msra.mxu0 %v5283
        %v5285 = vand.u32 %v839, 4294901760
        %v5286 = vsub.f32 %v839, %v5285
        %v5287 = vand.u32 %v5286, 4294901760
        %v5288 = vsub.f32 %v5286, %v5287
        %v5289 = vand.u32 %v5288, 4294901760
        %5290 = vmatprep.subr.mxu0 %v5289
        %v5291 = vand.u32 %v838, 4294901760
        %v5292 = vsub.f32 %v838, %v5291
        %v5293 = vand.u32 %v5292, 4294901760
        %v5294 = vsub.f32 %v5292, %v5293
        %v5295 = vand.u32 %v5294, 4294901760
        %5296 = vmatpush1.xpose.msra.mxu0 %v5295
        %v5297 = vand.u32 %v835, 4294901760
        %v5298 = vsub.f32 %v835, %v5297
        %v5299 = vand.u32 %v5298, 4294901760
        %v5300 = vsub.f32 %v5298, %v5299
        %v5301 = vand.u32 %v5300, 4294901760
        %5302 = vmatprep.subr.mxu0 %v5301
        %v5303 = vand.u32 %v834, 4294901760
        %v5304 = vsub.f32 %v834, %v5303
        %v5305 = vand.u32 %v5304, 4294901760
        %v5306 = vsub.f32 %v5304, %v5305
        %v5307 = vand.u32 %v5306, 4294901760
        %5308 = vmatpush1.xpose.msra.mxu0 %v5307
        %v5309 = vand.u32 %v831, 4294901760
        %v5310 = vsub.f32 %v831, %v5309
        %v5311 = vand.u32 %v5310, 4294901760
        %v5312 = vsub.f32 %v5310, %v5311
        %v5313 = vand.u32 %v5312, 4294901760
        %5314 = vmatprep.subr.mxu0 %v5313
        %v5315 = vand.u32 %v830, 4294901760
        %v5316 = vsub.f32 %v830, %v5315
        %v5317 = vand.u32 %v5316, 4294901760
        %v5318 = vsub.f32 %v5316, %v5317
        %v5319 = vand.u32 %v5318, 4294901760
        %5320 = vmatpush1.xpose.msra.mxu0 %v5319
        %v5321 = vand.u32 %v827, 4294901760
        %v5322 = vsub.f32 %v827, %v5321
        %v5323 = vand.u32 %v5322, 4294901760
        %v5324 = vsub.f32 %v5322, %v5323
        %v5325 = vand.u32 %v5324, 4294901760
        %5326 = vmatprep.subr.mxu0 %v5325
        %v5327 = vand.u32 %v826, 4294901760
        %v5328 = vsub.f32 %v826, %v5327
        %v5329 = vand.u32 %v5328, 4294901760
        %v5330 = vsub.f32 %v5328, %v5329
        %v5331 = vand.u32 %v5330, 4294901760
        %5332 = vmatpush1.xpose.msra.mxu0 %v5331
        %v5333 = vand.u32 %v823, 4294901760
        %v5334 = vsub.f32 %v823, %v5333
        %v5335 = vand.u32 %v5334, 4294901760
        %v5336 = vsub.f32 %v5334, %v5335
        %v5337 = vand.u32 %v5336, 4294901760
        %5338 = vmatprep.subr.mxu0 %v5337
        %v5339 = vand.u32 %v822, 4294901760
        %v5340 = vsub.f32 %v822, %v5339
        %v5341 = vand.u32 %v5340, 4294901760
        %v5342 = vsub.f32 %v5340, %v5341
        %v5343 = vand.u32 %v5342, 4294901760
        %5344 = vmatpush1.xpose.msra.mxu0 %v5343
        %v5345 = vand.u32 %v819, 4294901760
        %v5346 = vsub.f32 %v819, %v5345
        %v5347 = vand.u32 %v5346, 4294901760
        %v5348 = vsub.f32 %v5346, %v5347
        %v5349 = vand.u32 %v5348, 4294901760
        %5350 = vmatprep.subr.mxu0 %v5349
        %v5351 = vand.u32 %v818, 4294901760
        %v5352 = vsub.f32 %v818, %v5351
        %v5353 = vand.u32 %v5352, 4294901760
        %v5354 = vsub.f32 %v5352, %v5353
        %v5355 = vand.u32 %v5354, 4294901760
        %5356 = vmatpush1.xpose.msra.mxu0 %v5355
        %v5357 = vand.u32 %v943, 4294901760
        %v5358 = vsub.f32 %v943, %v5357
        %v5359 = vand.u32 %v5358, 4294901760
        %v5360 = vsub.f32 %v5358, %v5359
        %v5361 = vand.u32 %v5360, 4294901760
        %5362 = vmatprep.subr.mxu0 %v5361
        %v5363 = vand.u32 %v942, 4294901760
        %v5364 = vsub.f32 %v942, %v5363
        %v5365 = vand.u32 %v5364, 4294901760
        %v5366 = vsub.f32 %v5364, %v5365
        %v5367 = vand.u32 %v5366, 4294901760
        %5368 = vmatpush2.xpose.msra.mxu0 %v5367
        %v5369 = vand.u32 %v939, 4294901760
        %v5370 = vsub.f32 %v939, %v5369
        %v5371 = vand.u32 %v5370, 4294901760
        %v5372 = vsub.f32 %v5370, %v5371
        %v5373 = vand.u32 %v5372, 4294901760
        %5374 = vmatprep.subr.mxu0 %v5373
        %v5375 = vand.u32 %v938, 4294901760
        %v5376 = vsub.f32 %v938, %v5375
        %v5377 = vand.u32 %v5376, 4294901760
        %v5378 = vsub.f32 %v5376, %v5377
        %v5379 = vand.u32 %v5378, 4294901760
        %5380 = vmatpush2.xpose.msra.mxu0 %v5379
        %v5381 = vand.u32 %v935, 4294901760
        %v5382 = vsub.f32 %v935, %v5381
        %v5383 = vand.u32 %v5382, 4294901760
        %v5384 = vsub.f32 %v5382, %v5383
        %v5385 = vand.u32 %v5384, 4294901760
        %5386 = vmatprep.subr.mxu0 %v5385
        %v5387 = vand.u32 %v934, 4294901760
        %v5388 = vsub.f32 %v934, %v5387
        %v5389 = vand.u32 %v5388, 4294901760
        %v5390 = vsub.f32 %v5388, %v5389
        %v5391 = vand.u32 %v5390, 4294901760
        %5392 = vmatpush2.xpose.msra.mxu0 %v5391
        %v5393 = vand.u32 %v931, 4294901760
        %v5394 = vsub.f32 %v931, %v5393
        %v5395 = vand.u32 %v5394, 4294901760
        %v5396 = vsub.f32 %v5394, %v5395
        %v5397 = vand.u32 %v5396, 4294901760
        %5398 = vmatprep.subr.mxu0 %v5397
        %v5399 = vand.u32 %v930, 4294901760
        %v5400 = vsub.f32 %v930, %v5399
        %v5401 = vand.u32 %v5400, 4294901760
        %v5402 = vsub.f32 %v5400, %v5401
        %v5403 = vand.u32 %v5402, 4294901760
        %5404 = vmatpush2.xpose.msra.mxu0 %v5403
        %v5405 = vand.u32 %v927, 4294901760
        %v5406 = vsub.f32 %v927, %v5405
        %v5407 = vand.u32 %v5406, 4294901760
        %v5408 = vsub.f32 %v5406, %v5407
        %v5409 = vand.u32 %v5408, 4294901760
        %5410 = vmatprep.subr.mxu0 %v5409
        %v5411 = vand.u32 %v926, 4294901760
        %v5412 = vsub.f32 %v926, %v5411
        %v5413 = vand.u32 %v5412, 4294901760
        %v5414 = vsub.f32 %v5412, %v5413
        %v5415 = vand.u32 %v5414, 4294901760
        %5416 = vmatpush2.xpose.msra.mxu0 %v5415
        %v5417 = vand.u32 %v923, 4294901760
        %v5418 = vsub.f32 %v923, %v5417
        %v5419 = vand.u32 %v5418, 4294901760
        %v5420 = vsub.f32 %v5418, %v5419
        %v5421 = vand.u32 %v5420, 4294901760
        %5422 = vmatprep.subr.mxu0 %v5421
        %v5423 = vand.u32 %v922, 4294901760
        %v5424 = vsub.f32 %v922, %v5423
        %v5425 = vand.u32 %v5424, 4294901760
        %v5426 = vsub.f32 %v5424, %v5425
        %v5427 = vand.u32 %v5426, 4294901760
        %5428 = vmatpush2.xpose.msra.mxu0 %v5427
        %v5429 = vand.u32 %v919, 4294901760
        %v5430 = vsub.f32 %v919, %v5429
        %v5431 = vand.u32 %v5430, 4294901760
        %v5432 = vsub.f32 %v5430, %v5431
        %v5433 = vand.u32 %v5432, 4294901760
        %5434 = vmatprep.subr.mxu0 %v5433
        %v5435 = vand.u32 %v918, 4294901760
        %v5436 = vsub.f32 %v918, %v5435
        %v5437 = vand.u32 %v5436, 4294901760
        %v5438 = vsub.f32 %v5436, %v5437
        %v5439 = vand.u32 %v5438, 4294901760
        %5440 = vmatpush2.xpose.msra.mxu0 %v5439
        %v5441 = vand.u32 %v915, 4294901760
        %v5442 = vsub.f32 %v915, %v5441
        %v5443 = vand.u32 %v5442, 4294901760
        %v5444 = vsub.f32 %v5442, %v5443
        %v5445 = vand.u32 %v5444, 4294901760
        %5446 = vmatprep.subr.mxu0 %v5445
        %v5447 = vand.u32 %v914, 4294901760
        %v5448 = vsub.f32 %v914, %v5447
        %v5449 = vand.u32 %v5448, 4294901760
        %v5450 = vsub.f32 %v5448, %v5449
        %v5451 = vand.u32 %v5450, 4294901760
        %5452 = vmatpush2.xpose.msra.mxu0 %v5451
        %v5453 = vand.u32 %v911, 4294901760
        %v5454 = vsub.f32 %v911, %v5453
        %v5455 = vand.u32 %v5454, 4294901760
        %v5456 = vsub.f32 %v5454, %v5455
        %v5457 = vand.u32 %v5456, 4294901760
        %5458 = vmatprep.subr.mxu0 %v5457
        %v5459 = vand.u32 %v910, 4294901760
        %v5460 = vsub.f32 %v910, %v5459
        %v5461 = vand.u32 %v5460, 4294901760
        %v5462 = vsub.f32 %v5460, %v5461
        %v5463 = vand.u32 %v5462, 4294901760
        %5464 = vmatpush2.xpose.msra.mxu0 %v5463
        %v5465 = vand.u32 %v907, 4294901760
        %v5466 = vsub.f32 %v907, %v5465
        %v5467 = vand.u32 %v5466, 4294901760
        %v5468 = vsub.f32 %v5466, %v5467
        %v5469 = vand.u32 %v5468, 4294901760
        %5470 = vmatprep.subr.mxu0 %v5469
        %v5471 = vand.u32 %v906, 4294901760
        %v5472 = vsub.f32 %v906, %v5471
        %v5473 = vand.u32 %v5472, 4294901760
        %v5474 = vsub.f32 %v5472, %v5473
        %v5475 = vand.u32 %v5474, 4294901760
        %5476 = vmatpush2.xpose.msra.mxu0 %v5475
        %v5477 = vand.u32 %v903, 4294901760
        %v5478 = vsub.f32 %v903, %v5477
        %v5479 = vand.u32 %v5478, 4294901760
        %v5480 = vsub.f32 %v5478, %v5479
        %v5481 = vand.u32 %v5480, 4294901760
        %5482 = vmatprep.subr.mxu0 %v5481
        %v5483 = vand.u32 %v902, 4294901760
        %v5484 = vsub.f32 %v902, %v5483
        %v5485 = vand.u32 %v5484, 4294901760
        %v5486 = vsub.f32 %v5484, %v5485
        %v5487 = vand.u32 %v5486, 4294901760
        %5488 = vmatpush2.xpose.msra.mxu0 %v5487
        %v5489 = vand.u32 %v899, 4294901760
        %v5490 = vsub.f32 %v899, %v5489
        %v5491 = vand.u32 %v5490, 4294901760
        %v5492 = vsub.f32 %v5490, %v5491
        %v5493 = vand.u32 %v5492, 4294901760
        %5494 = vmatprep.subr.mxu0 %v5493
        %v5495 = vand.u32 %v898, 4294901760
        %v5496 = vsub.f32 %v898, %v5495
        %v5497 = vand.u32 %v5496, 4294901760
        %v5498 = vsub.f32 %v5496, %v5497
        %v5499 = vand.u32 %v5498, 4294901760
        %5500 = vmatpush2.xpose.msra.mxu0 %v5499
        %v5501 = vand.u32 %v895, 4294901760
        %v5502 = vsub.f32 %v895, %v5501
        %v5503 = vand.u32 %v5502, 4294901760
        %v5504 = vsub.f32 %v5502, %v5503
        %v5505 = vand.u32 %v5504, 4294901760
        %5506 = vmatprep.subr.mxu0 %v5505
        %v5507 = vand.u32 %v894, 4294901760
        %v5508 = vsub.f32 %v894, %v5507
        %v5509 = vand.u32 %v5508, 4294901760
        %v5510 = vsub.f32 %v5508, %v5509
        %v5511 = vand.u32 %v5510, 4294901760
        %5512 = vmatpush2.xpose.msra.mxu0 %v5511
        %v5513 = vand.u32 %v891, 4294901760
        %v5514 = vsub.f32 %v891, %v5513
        %v5515 = vand.u32 %v5514, 4294901760
        %v5516 = vsub.f32 %v5514, %v5515
        %v5517 = vand.u32 %v5516, 4294901760
        %5518 = vmatprep.subr.mxu0 %v5517
        %v5519 = vand.u32 %v890, 4294901760
        %v5520 = vsub.f32 %v890, %v5519
        %v5521 = vand.u32 %v5520, 4294901760
        %v5522 = vsub.f32 %v5520, %v5521
        %v5523 = vand.u32 %v5522, 4294901760
        %5524 = vmatpush2.xpose.msra.mxu0 %v5523
        %v5525 = vand.u32 %v887, 4294901760
        %v5526 = vsub.f32 %v887, %v5525
        %v5527 = vand.u32 %v5526, 4294901760
        %v5528 = vsub.f32 %v5526, %v5527
        %v5529 = vand.u32 %v5528, 4294901760
        %5530 = vmatprep.subr.mxu0 %v5529
        %v5531 = vand.u32 %v886, 4294901760
        %v5532 = vsub.f32 %v886, %v5531
        %v5533 = vand.u32 %v5532, 4294901760
        %v5534 = vsub.f32 %v5532, %v5533
        %v5535 = vand.u32 %v5534, 4294901760
        %5536 = vmatpush2.xpose.msra.mxu0 %v5535
        %v5537 = vand.u32 %v883, 4294901760
        %v5538 = vsub.f32 %v883, %v5537
        %v5539 = vand.u32 %v5538, 4294901760
        %v5540 = vsub.f32 %v5538, %v5539
        %v5541 = vand.u32 %v5540, 4294901760
        %5542 = vmatprep.subr.mxu0 %v5541
        %v5543 = vand.u32 %v882, 4294901760
        %v5544 = vsub.f32 %v882, %v5543
        %v5545 = vand.u32 %v5544, 4294901760
        %v5546 = vsub.f32 %v5544, %v5545
        %v5547 = vand.u32 %v5546, 4294901760
        %5548 = vmatpush2.xpose.msra.mxu0 %v5547
        %v5549 = vand.u32 %v683, 4294901760
        %5550 = vmatprep.mubr.f32.mxu0 %v5549
        %v5551 = vand.u32 %v682, 4294901760
        %5552 = vmatmul.mubr.f32.gmra.mxu0 %v5551
        %v5553 = vpop.f32.mrf.mxu0
        %v5554 = vadd.f32 %v5145, %v5553
        %v5555 = vpop.f32.mrf.mxu0
        %v5556 = vadd.f32 %v5147, %v5555
        %v5557 = vand.u32 %v687, 4294901760
        %5558 = vmatprep.mubr.f32.mxu0 %v5557
        %v5559 = vand.u32 %v686, 4294901760
        %5560 = vmatmul.mubr.f32.gmra.mxu0 %v5559
        %v5561 = vpop.f32.mrf.mxu0
        %v5562 = vadd.f32 %v5161, %v5561
        %v5563 = vpop.f32.mrf.mxu0
        %v5564 = vadd.f32 %v5163, %v5563
        %5565 = vdwg.mxu0
        %v5566 = vand.u32 %v879, 4294901760
        %v5567 = vsub.f32 %v879, %v5566
        %5568 = vmatprep.subr.mxu0 %v5567
        %v5569 = vand.u32 %v878, 4294901760
        %v5570 = vsub.f32 %v878, %v5569
        %5571 = vmatpush1.xpose.msra.mxu0 %v5570
        %v5572 = vand.u32 %v875, 4294901760
        %v5573 = vsub.f32 %v875, %v5572
        %5574 = vmatprep.subr.mxu0 %v5573
        %v5575 = vand.u32 %v874, 4294901760
        %v5576 = vsub.f32 %v874, %v5575
        %5577 = vmatpush1.xpose.msra.mxu0 %v5576
        %v5578 = vand.u32 %v871, 4294901760
        %v5579 = vsub.f32 %v871, %v5578
        %5580 = vmatprep.subr.mxu0 %v5579
        %v5581 = vand.u32 %v870, 4294901760
        %v5582 = vsub.f32 %v870, %v5581
        %5583 = vmatpush1.xpose.msra.mxu0 %v5582
        %v5584 = vand.u32 %v867, 4294901760
        %v5585 = vsub.f32 %v867, %v5584
        %5586 = vmatprep.subr.mxu0 %v5585
        %v5587 = vand.u32 %v866, 4294901760
        %v5588 = vsub.f32 %v866, %v5587
        %5589 = vmatpush1.xpose.msra.mxu0 %v5588
        %v5590 = vand.u32 %v863, 4294901760
        %v5591 = vsub.f32 %v863, %v5590
        %5592 = vmatprep.subr.mxu0 %v5591
        %v5593 = vand.u32 %v862, 4294901760
        %v5594 = vsub.f32 %v862, %v5593
        %5595 = vmatpush1.xpose.msra.mxu0 %v5594
        %v5596 = vand.u32 %v859, 4294901760
        %v5597 = vsub.f32 %v859, %v5596
        %5598 = vmatprep.subr.mxu0 %v5597
        %v5599 = vand.u32 %v858, 4294901760
        %v5600 = vsub.f32 %v858, %v5599
        %5601 = vmatpush1.xpose.msra.mxu0 %v5600
        %v5602 = vand.u32 %v855, 4294901760
        %v5603 = vsub.f32 %v855, %v5602
        %5604 = vmatprep.subr.mxu0 %v5603
        %v5605 = vand.u32 %v854, 4294901760
        %v5606 = vsub.f32 %v854, %v5605
        %5607 = vmatpush1.xpose.msra.mxu0 %v5606
        %v5608 = vand.u32 %v851, 4294901760
        %v5609 = vsub.f32 %v851, %v5608
        %5610 = vmatprep.subr.mxu0 %v5609
        %v5611 = vand.u32 %v850, 4294901760
        %v5612 = vsub.f32 %v850, %v5611
        %5613 = vmatpush1.xpose.msra.mxu0 %v5612
        %v5614 = vand.u32 %v847, 4294901760
        %v5615 = vsub.f32 %v847, %v5614
        %5616 = vmatprep.subr.mxu0 %v5615
        %v5617 = vand.u32 %v846, 4294901760
        %v5618 = vsub.f32 %v846, %v5617
        %5619 = vmatpush1.xpose.msra.mxu0 %v5618
        %v5620 = vand.u32 %v843, 4294901760
        %v5621 = vsub.f32 %v843, %v5620
        %5622 = vmatprep.subr.mxu0 %v5621
        %v5623 = vand.u32 %v842, 4294901760
        %v5624 = vsub.f32 %v842, %v5623
        %5625 = vmatpush1.xpose.msra.mxu0 %v5624
        %v5626 = vand.u32 %v839, 4294901760
        %v5627 = vsub.f32 %v839, %v5626
        %5628 = vmatprep.subr.mxu0 %v5627
        %v5629 = vand.u32 %v838, 4294901760
        %v5630 = vsub.f32 %v838, %v5629
        %5631 = vmatpush1.xpose.msra.mxu0 %v5630
        %v5632 = vand.u32 %v835, 4294901760
        %v5633 = vsub.f32 %v835, %v5632
        %5634 = vmatprep.subr.mxu0 %v5633
        %v5635 = vand.u32 %v834, 4294901760
        %v5636 = vsub.f32 %v834, %v5635
        %5637 = vmatpush1.xpose.msra.mxu0 %v5636
        %v5638 = vand.u32 %v831, 4294901760
        %v5639 = vsub.f32 %v831, %v5638
        %5640 = vmatprep.subr.mxu0 %v5639
        %v5641 = vand.u32 %v830, 4294901760
        %v5642 = vsub.f32 %v830, %v5641
        %5643 = vmatpush1.xpose.msra.mxu0 %v5642
        %v5644 = vand.u32 %v827, 4294901760
        %v5645 = vsub.f32 %v827, %v5644
        %5646 = vmatprep.subr.mxu0 %v5645
        %v5647 = vand.u32 %v826, 4294901760
        %v5648 = vsub.f32 %v826, %v5647
        %5649 = vmatpush1.xpose.msra.mxu0 %v5648
        %v5650 = vand.u32 %v823, 4294901760
        %v5651 = vsub.f32 %v823, %v5650
        %5652 = vmatprep.subr.mxu0 %v5651
        %v5653 = vand.u32 %v822, 4294901760
        %v5654 = vsub.f32 %v822, %v5653
        %5655 = vmatpush1.xpose.msra.mxu0 %v5654
        %v5656 = vand.u32 %v819, 4294901760
        %v5657 = vsub.f32 %v819, %v5656
        %5658 = vmatprep.subr.mxu0 %v5657
        %v5659 = vand.u32 %v818, 4294901760
        %v5660 = vsub.f32 %v818, %v5659
        %5661 = vmatpush1.xpose.msra.mxu0 %v5660
        %v5662 = vand.u32 %v943, 4294901760
        %v5663 = vsub.f32 %v943, %v5662
        %5664 = vmatprep.subr.mxu0 %v5663
        %v5665 = vand.u32 %v942, 4294901760
        %v5666 = vsub.f32 %v942, %v5665
        %5667 = vmatpush2.xpose.msra.mxu0 %v5666
        %v5668 = vand.u32 %v939, 4294901760
        %v5669 = vsub.f32 %v939, %v5668
        %5670 = vmatprep.subr.mxu0 %v5669
        %v5671 = vand.u32 %v938, 4294901760
        %v5672 = vsub.f32 %v938, %v5671
        %5673 = vmatpush2.xpose.msra.mxu0 %v5672
        %v5674 = vand.u32 %v935, 4294901760
        %v5675 = vsub.f32 %v935, %v5674
        %5676 = vmatprep.subr.mxu0 %v5675
        %v5677 = vand.u32 %v934, 4294901760
        %v5678 = vsub.f32 %v934, %v5677
        %5679 = vmatpush2.xpose.msra.mxu0 %v5678
        %v5680 = vand.u32 %v931, 4294901760
        %v5681 = vsub.f32 %v931, %v5680
        %5682 = vmatprep.subr.mxu0 %v5681
        %v5683 = vand.u32 %v930, 4294901760
        %v5684 = vsub.f32 %v930, %v5683
        %5685 = vmatpush2.xpose.msra.mxu0 %v5684
        %v5686 = vand.u32 %v927, 4294901760
        %v5687 = vsub.f32 %v927, %v5686
        %5688 = vmatprep.subr.mxu0 %v5687
        %v5689 = vand.u32 %v926, 4294901760
        %v5690 = vsub.f32 %v926, %v5689
        %5691 = vmatpush2.xpose.msra.mxu0 %v5690
        %v5692 = vand.u32 %v923, 4294901760
        %v5693 = vsub.f32 %v923, %v5692
        %5694 = vmatprep.subr.mxu0 %v5693
        %v5695 = vand.u32 %v922, 4294901760
        %v5696 = vsub.f32 %v922, %v5695
        %5697 = vmatpush2.xpose.msra.mxu0 %v5696
        %v5698 = vand.u32 %v919, 4294901760
        %v5699 = vsub.f32 %v919, %v5698
        %5700 = vmatprep.subr.mxu0 %v5699
        %v5701 = vand.u32 %v918, 4294901760
        %v5702 = vsub.f32 %v918, %v5701
        %5703 = vmatpush2.xpose.msra.mxu0 %v5702
        %v5704 = vand.u32 %v915, 4294901760
        %v5705 = vsub.f32 %v915, %v5704
        %5706 = vmatprep.subr.mxu0 %v5705
        %v5707 = vand.u32 %v914, 4294901760
        %v5708 = vsub.f32 %v914, %v5707
        %5709 = vmatpush2.xpose.msra.mxu0 %v5708
        %v5710 = vand.u32 %v911, 4294901760
        %v5711 = vsub.f32 %v911, %v5710
        %5712 = vmatprep.subr.mxu0 %v5711
        %v5713 = vand.u32 %v910, 4294901760
        %v5714 = vsub.f32 %v910, %v5713
        %5715 = vmatpush2.xpose.msra.mxu0 %v5714
        %v5716 = vand.u32 %v907, 4294901760
        %v5717 = vsub.f32 %v907, %v5716
        %5718 = vmatprep.subr.mxu0 %v5717
        %v5719 = vand.u32 %v906, 4294901760
        %v5720 = vsub.f32 %v906, %v5719
        %5721 = vmatpush2.xpose.msra.mxu0 %v5720
        %v5722 = vand.u32 %v903, 4294901760
        %v5723 = vsub.f32 %v903, %v5722
        %5724 = vmatprep.subr.mxu0 %v5723
        %v5725 = vand.u32 %v902, 4294901760
        %v5726 = vsub.f32 %v902, %v5725
        %5727 = vmatpush2.xpose.msra.mxu0 %v5726
        %v5728 = vand.u32 %v899, 4294901760
        %v5729 = vsub.f32 %v899, %v5728
        %5730 = vmatprep.subr.mxu0 %v5729
        %v5731 = vand.u32 %v898, 4294901760
        %v5732 = vsub.f32 %v898, %v5731
        %5733 = vmatpush2.xpose.msra.mxu0 %v5732
        %v5734 = vand.u32 %v895, 4294901760
        %v5735 = vsub.f32 %v895, %v5734
        %5736 = vmatprep.subr.mxu0 %v5735
        %v5737 = vand.u32 %v894, 4294901760
        %v5738 = vsub.f32 %v894, %v5737
        %5739 = vmatpush2.xpose.msra.mxu0 %v5738
        %v5740 = vand.u32 %v891, 4294901760
        %v5741 = vsub.f32 %v891, %v5740
        %5742 = vmatprep.subr.mxu0 %v5741
        %v5743 = vand.u32 %v890, 4294901760
        %v5744 = vsub.f32 %v890, %v5743
        %5745 = vmatpush2.xpose.msra.mxu0 %v5744
        %v5746 = vand.u32 %v887, 4294901760
        %v5747 = vsub.f32 %v887, %v5746
        %5748 = vmatprep.subr.mxu0 %v5747
        %v5749 = vand.u32 %v886, 4294901760
        %v5750 = vsub.f32 %v886, %v5749
        %5751 = vmatpush2.xpose.msra.mxu0 %v5750
        %v5752 = vand.u32 %v883, 4294901760
        %v5753 = vsub.f32 %v883, %v5752
        %5754 = vmatprep.subr.mxu0 %v5753
        %v5755 = vand.u32 %v882, 4294901760
        %v5756 = vsub.f32 %v882, %v5755
        %5757 = vmatpush2.xpose.msra.mxu0 %v5756
        %v5758 = vand.u32 %v683, 4294901760
        %v5759 = vsub.f32 %v683, %v5758
        %5760 = vmatprep.mubr.f32.mxu0 %v5759
        %v5761 = vand.u32 %v682, 4294901760
        %v5762 = vsub.f32 %v682, %v5761
        %5763 = vmatmul.mubr.f32.gmra.mxu0 %v5762
        %v5764 = vpop.f32.mrf.mxu0
        %v5765 = vadd.f32 %v5554, %v5764
        %v5766 = vpop.f32.mrf.mxu0
        %v5767 = vadd.f32 %v5556, %v5766
        %v5768 = vand.u32 %v687, 4294901760
        %v5769 = vsub.f32 %v687, %v5768
        %5770 = vmatprep.mubr.f32.mxu0 %v5769
        %v5771 = vand.u32 %v686, 4294901760
        %v5772 = vsub.f32 %v686, %v5771
        %5773 = vmatmul.mubr.f32.gmra.mxu0 %v5772
        %v5774 = vpop.f32.mrf.mxu0
        %v5775 = vadd.f32 %v5562, %v5774
        %v5776 = vpop.f32.mrf.mxu0
        %v5777 = vadd.f32 %v5564, %v5776
        %5778 = vdwg.mxu0
        %v5779 = vand.u32 %v879, 4294901760
        %5780 = vmatprep.subr.mxu0 %v5779
        %v5781 = vand.u32 %v878, 4294901760
        %5782 = vmatpush1.xpose.msra.mxu0 %v5781
        %v5783 = vand.u32 %v875, 4294901760
        %5784 = vmatprep.subr.mxu0 %v5783
        %v5785 = vand.u32 %v874, 4294901760
        %5786 = vmatpush1.xpose.msra.mxu0 %v5785
        %v5787 = vand.u32 %v871, 4294901760
        %5788 = vmatprep.subr.mxu0 %v5787
        %v5789 = vand.u32 %v870, 4294901760
        %5790 = vmatpush1.xpose.msra.mxu0 %v5789
        %v5791 = vand.u32 %v867, 4294901760
        %5792 = vmatprep.subr.mxu0 %v5791
        %v5793 = vand.u32 %v866, 4294901760
        %5794 = vmatpush1.xpose.msra.mxu0 %v5793
        %v5795 = vand.u32 %v863, 4294901760
        %5796 = vmatprep.subr.mxu0 %v5795
        %v5797 = vand.u32 %v862, 4294901760
        %5798 = vmatpush1.xpose.msra.mxu0 %v5797
        %v5799 = vand.u32 %v859, 4294901760
        %5800 = vmatprep.subr.mxu0 %v5799
        %v5801 = vand.u32 %v858, 4294901760
        %5802 = vmatpush1.xpose.msra.mxu0 %v5801
        %v5803 = vand.u32 %v855, 4294901760
        %5804 = vmatprep.subr.mxu0 %v5803
        %v5805 = vand.u32 %v854, 4294901760
        %5806 = vmatpush1.xpose.msra.mxu0 %v5805
        %v5807 = vand.u32 %v851, 4294901760
        %5808 = vmatprep.subr.mxu0 %v5807
        %v5809 = vand.u32 %v850, 4294901760
        %5810 = vmatpush1.xpose.msra.mxu0 %v5809
        %v5811 = vand.u32 %v847, 4294901760
        %5812 = vmatprep.subr.mxu0 %v5811
        %v5813 = vand.u32 %v846, 4294901760
        %5814 = vmatpush1.xpose.msra.mxu0 %v5813
        %v5815 = vand.u32 %v843, 4294901760
        %5816 = vmatprep.subr.mxu0 %v5815
        %v5817 = vand.u32 %v842, 4294901760
        %5818 = vmatpush1.xpose.msra.mxu0 %v5817
        %v5819 = vand.u32 %v839, 4294901760
        %5820 = vmatprep.subr.mxu0 %v5819
        %v5821 = vand.u32 %v838, 4294901760
        %5822 = vmatpush1.xpose.msra.mxu0 %v5821
        %v5823 = vand.u32 %v835, 4294901760
        %5824 = vmatprep.subr.mxu0 %v5823
        %v5825 = vand.u32 %v834, 4294901760
        %5826 = vmatpush1.xpose.msra.mxu0 %v5825
        %v5827 = vand.u32 %v831, 4294901760
        %5828 = vmatprep.subr.mxu0 %v5827
        %v5829 = vand.u32 %v830, 4294901760
        %5830 = vmatpush1.xpose.msra.mxu0 %v5829
        %v5831 = vand.u32 %v827, 4294901760
        %5832 = vmatprep.subr.mxu0 %v5831
        %v5833 = vand.u32 %v826, 4294901760
        %5834 = vmatpush1.xpose.msra.mxu0 %v5833
        %v5835 = vand.u32 %v823, 4294901760
        %5836 = vmatprep.subr.mxu0 %v5835
        %v5837 = vand.u32 %v822, 4294901760
        %5838 = vmatpush1.xpose.msra.mxu0 %v5837
        %v5839 = vand.u32 %v819, 4294901760
        %5840 = vmatprep.subr.mxu0 %v5839
        %v5841 = vand.u32 %v818, 4294901760
        %5842 = vmatpush1.xpose.msra.mxu0 %v5841
        %v5843 = vand.u32 %v943, 4294901760
        %5844 = vmatprep.subr.mxu0 %v5843
        %v5845 = vand.u32 %v942, 4294901760
        %5846 = vmatpush2.xpose.msra.mxu0 %v5845
        %v5847 = vand.u32 %v939, 4294901760
        %5848 = vmatprep.subr.mxu0 %v5847
        %v5849 = vand.u32 %v938, 4294901760
        %5850 = vmatpush2.xpose.msra.mxu0 %v5849
        %v5851 = vand.u32 %v935, 4294901760
        %5852 = vmatprep.subr.mxu0 %v5851
        %v5853 = vand.u32 %v934, 4294901760
        %5854 = vmatpush2.xpose.msra.mxu0 %v5853
        %v5855 = vand.u32 %v931, 4294901760
        %5856 = vmatprep.subr.mxu0 %v5855
        %v5857 = vand.u32 %v930, 4294901760
        %5858 = vmatpush2.xpose.msra.mxu0 %v5857
        %v5859 = vand.u32 %v927, 4294901760
        %5860 = vmatprep.subr.mxu0 %v5859
        %v5861 = vand.u32 %v926, 4294901760
        %5862 = vmatpush2.xpose.msra.mxu0 %v5861
        %v5863 = vand.u32 %v923, 4294901760
        %5864 = vmatprep.subr.mxu0 %v5863
        %v5865 = vand.u32 %v922, 4294901760
        %5866 = vmatpush2.xpose.msra.mxu0 %v5865
        %v5867 = vand.u32 %v919, 4294901760
        %5868 = vmatprep.subr.mxu0 %v5867
        %v5869 = vand.u32 %v918, 4294901760
        %5870 = vmatpush2.xpose.msra.mxu0 %v5869
        %v5871 = vand.u32 %v915, 4294901760
        %5872 = vmatprep.subr.mxu0 %v5871
        %v5873 = vand.u32 %v914, 4294901760
        %5874 = vmatpush2.xpose.msra.mxu0 %v5873
        %v5875 = vand.u32 %v911, 4294901760
        %5876 = vmatprep.subr.mxu0 %v5875
        %v5877 = vand.u32 %v910, 4294901760
        %5878 = vmatpush2.xpose.msra.mxu0 %v5877
        %v5879 = vand.u32 %v907, 4294901760
        %5880 = vmatprep.subr.mxu0 %v5879
        %v5881 = vand.u32 %v906, 4294901760
        %5882 = vmatpush2.xpose.msra.mxu0 %v5881
        %v5883 = vand.u32 %v903, 4294901760
        %5884 = vmatprep.subr.mxu0 %v5883
        %v5885 = vand.u32 %v902, 4294901760
        %5886 = vmatpush2.xpose.msra.mxu0 %v5885
        %v5887 = vand.u32 %v899, 4294901760
        %5888 = vmatprep.subr.mxu0 %v5887
        %v5889 = vand.u32 %v898, 4294901760
        %5890 = vmatpush2.xpose.msra.mxu0 %v5889
        %v5891 = vand.u32 %v895, 4294901760
        %5892 = vmatprep.subr.mxu0 %v5891
        %v5893 = vand.u32 %v894, 4294901760
        %5894 = vmatpush2.xpose.msra.mxu0 %v5893
        %v5895 = vand.u32 %v891, 4294901760
        %5896 = vmatprep.subr.mxu0 %v5895
        %v5897 = vand.u32 %v890, 4294901760
        %5898 = vmatpush2.xpose.msra.mxu0 %v5897
        %v5899 = vand.u32 %v887, 4294901760
        %5900 = vmatprep.subr.mxu0 %v5899
        %v5901 = vand.u32 %v886, 4294901760
        %5902 = vmatpush2.xpose.msra.mxu0 %v5901
        %v5903 = vand.u32 %v883, 4294901760
        %5904 = vmatprep.subr.mxu0 %v5903
        %v5905 = vand.u32 %v882, 4294901760
        %5906 = vmatpush2.xpose.msra.mxu0 %v5905
        %v5907 = vand.u32 %v683, 4294901760
        %v5908 = vsub.f32 %v683, %v5907
        %v5909 = vand.u32 %v5908, 4294901760
        %5910 = vmatprep.mubr.f32.mxu0 %v5909
        %v5911 = vand.u32 %v682, 4294901760
        %v5912 = vsub.f32 %v682, %v5911
        %v5913 = vand.u32 %v5912, 4294901760
        %5914 = vmatmul.mubr.f32.gmra.mxu0 %v5913
        %v5915 = vpop.f32.mrf.mxu0
        %v5916 = vadd.f32 %v5765, %v5915
        %v5917 = vpop.f32.mrf.mxu0
        %v5918 = vadd.f32 %v5767, %v5917
        %v5919 = vand.u32 %v687, 4294901760
        %v5920 = vsub.f32 %v687, %v5919
        %v5921 = vand.u32 %v5920, 4294901760
        %5922 = vmatprep.mubr.f32.mxu0 %v5921
        %v5923 = vand.u32 %v686, 4294901760
        %v5924 = vsub.f32 %v686, %v5923
        %v5925 = vand.u32 %v5924, 4294901760
        %5926 = vmatmul.mubr.f32.gmra.mxu0 %v5925
        %v5927 = vpop.f32.mrf.mxu0
        %v5928 = vadd.f32 %v5775, %v5927
        %v5929 = vpop.f32.mrf.mxu0
        %v5930 = vadd.f32 %v5777, %v5929
        %5931 = vdwg.mxu0
        %v5932 = vand.u32 %v879, 4294901760
        %v5933 = vsub.f32 %v879, %v5932
        %v5934 = vand.u32 %v5933, 4294901760
        %5935 = vmatprep.subr.mxu0 %v5934
        %v5936 = vand.u32 %v878, 4294901760
        %v5937 = vsub.f32 %v878, %v5936
        %v5938 = vand.u32 %v5937, 4294901760
        %5939 = vmatpush1.xpose.msra.mxu0 %v5938
        %v5940 = vand.u32 %v875, 4294901760
        %v5941 = vsub.f32 %v875, %v5940
        %v5942 = vand.u32 %v5941, 4294901760
        %5943 = vmatprep.subr.mxu0 %v5942
        %v5944 = vand.u32 %v874, 4294901760
        %v5945 = vsub.f32 %v874, %v5944
        %v5946 = vand.u32 %v5945, 4294901760
        %5947 = vmatpush1.xpose.msra.mxu0 %v5946
        %v5948 = vand.u32 %v871, 4294901760
        %v5949 = vsub.f32 %v871, %v5948
        %v5950 = vand.u32 %v5949, 4294901760
        %5951 = vmatprep.subr.mxu0 %v5950
        %v5952 = vand.u32 %v870, 4294901760
        %v5953 = vsub.f32 %v870, %v5952
        %v5954 = vand.u32 %v5953, 4294901760
        %5955 = vmatpush1.xpose.msra.mxu0 %v5954
        %v5956 = vand.u32 %v867, 4294901760
        %v5957 = vsub.f32 %v867, %v5956
        %v5958 = vand.u32 %v5957, 4294901760
        %5959 = vmatprep.subr.mxu0 %v5958
        %v5960 = vand.u32 %v866, 4294901760
        %v5961 = vsub.f32 %v866, %v5960
        %v5962 = vand.u32 %v5961, 4294901760
        %5963 = vmatpush1.xpose.msra.mxu0 %v5962
        %v5964 = vand.u32 %v863, 4294901760
        %v5965 = vsub.f32 %v863, %v5964
        %v5966 = vand.u32 %v5965, 4294901760
        %5967 = vmatprep.subr.mxu0 %v5966
        %v5968 = vand.u32 %v862, 4294901760
        %v5969 = vsub.f32 %v862, %v5968
        %v5970 = vand.u32 %v5969, 4294901760
        %5971 = vmatpush1.xpose.msra.mxu0 %v5970
        %v5972 = vand.u32 %v859, 4294901760
        %v5973 = vsub.f32 %v859, %v5972
        %v5974 = vand.u32 %v5973, 4294901760
        %5975 = vmatprep.subr.mxu0 %v5974
        %v5976 = vand.u32 %v858, 4294901760
        %v5977 = vsub.f32 %v858, %v5976
        %v5978 = vand.u32 %v5977, 4294901760
        %5979 = vmatpush1.xpose.msra.mxu0 %v5978
        %v5980 = vand.u32 %v855, 4294901760
        %v5981 = vsub.f32 %v855, %v5980
        %v5982 = vand.u32 %v5981, 4294901760
        %5983 = vmatprep.subr.mxu0 %v5982
        %v5984 = vand.u32 %v854, 4294901760
        %v5985 = vsub.f32 %v854, %v5984
        %v5986 = vand.u32 %v5985, 4294901760
        %5987 = vmatpush1.xpose.msra.mxu0 %v5986
        %v5988 = vand.u32 %v851, 4294901760
        %v5989 = vsub.f32 %v851, %v5988
        %v5990 = vand.u32 %v5989, 4294901760
        %5991 = vmatprep.subr.mxu0 %v5990
        %v5992 = vand.u32 %v850, 4294901760
        %v5993 = vsub.f32 %v850, %v5992
        %v5994 = vand.u32 %v5993, 4294901760
        %5995 = vmatpush1.xpose.msra.mxu0 %v5994
        %v5996 = vand.u32 %v847, 4294901760
        %v5997 = vsub.f32 %v847, %v5996
        %v5998 = vand.u32 %v5997, 4294901760
        %5999 = vmatprep.subr.mxu0 %v5998
        %v6000 = vand.u32 %v846, 4294901760
        %v6001 = vsub.f32 %v846, %v6000
        %v6002 = vand.u32 %v6001, 4294901760
        %6003 = vmatpush1.xpose.msra.mxu0 %v6002
        %v6004 = vand.u32 %v843, 4294901760
        %v6005 = vsub.f32 %v843, %v6004
        %v6006 = vand.u32 %v6005, 4294901760
        %6007 = vmatprep.subr.mxu0 %v6006
        %v6008 = vand.u32 %v842, 4294901760
        %v6009 = vsub.f32 %v842, %v6008
        %v6010 = vand.u32 %v6009, 4294901760
        %6011 = vmatpush1.xpose.msra.mxu0 %v6010
        %v6012 = vand.u32 %v839, 4294901760
        %v6013 = vsub.f32 %v839, %v6012
        %v6014 = vand.u32 %v6013, 4294901760
        %6015 = vmatprep.subr.mxu0 %v6014
        %v6016 = vand.u32 %v838, 4294901760
        %v6017 = vsub.f32 %v838, %v6016
        %v6018 = vand.u32 %v6017, 4294901760
        %6019 = vmatpush1.xpose.msra.mxu0 %v6018
        %v6020 = vand.u32 %v835, 4294901760
        %v6021 = vsub.f32 %v835, %v6020
        %v6022 = vand.u32 %v6021, 4294901760
        %6023 = vmatprep.subr.mxu0 %v6022
        %v6024 = vand.u32 %v834, 4294901760
        %v6025 = vsub.f32 %v834, %v6024
        %v6026 = vand.u32 %v6025, 4294901760
        %6027 = vmatpush1.xpose.msra.mxu0 %v6026
        %v6028 = vand.u32 %v831, 4294901760
        %v6029 = vsub.f32 %v831, %v6028
        %v6030 = vand.u32 %v6029, 4294901760
        %6031 = vmatprep.subr.mxu0 %v6030
        %v6032 = vand.u32 %v830, 4294901760
        %v6033 = vsub.f32 %v830, %v6032
        %v6034 = vand.u32 %v6033, 4294901760
        %6035 = vmatpush1.xpose.msra.mxu0 %v6034
        %v6036 = vand.u32 %v827, 4294901760
        %v6037 = vsub.f32 %v827, %v6036
        %v6038 = vand.u32 %v6037, 4294901760
        %6039 = vmatprep.subr.mxu0 %v6038
        %v6040 = vand.u32 %v826, 4294901760
        %v6041 = vsub.f32 %v826, %v6040
        %v6042 = vand.u32 %v6041, 4294901760
        %6043 = vmatpush1.xpose.msra.mxu0 %v6042
        %v6044 = vand.u32 %v823, 4294901760
        %v6045 = vsub.f32 %v823, %v6044
        %v6046 = vand.u32 %v6045, 4294901760
        %6047 = vmatprep.subr.mxu0 %v6046
        %v6048 = vand.u32 %v822, 4294901760
        %v6049 = vsub.f32 %v822, %v6048
        %v6050 = vand.u32 %v6049, 4294901760
        %6051 = vmatpush1.xpose.msra.mxu0 %v6050
        %v6052 = vand.u32 %v819, 4294901760
        %v6053 = vsub.f32 %v819, %v6052
        %v6054 = vand.u32 %v6053, 4294901760
        %6055 = vmatprep.subr.mxu0 %v6054
        %v6056 = vand.u32 %v818, 4294901760
        %v6057 = vsub.f32 %v818, %v6056
        %v6058 = vand.u32 %v6057, 4294901760
        %6059 = vmatpush1.xpose.msra.mxu0 %v6058
        %v6060 = vand.u32 %v943, 4294901760
        %v6061 = vsub.f32 %v943, %v6060
        %v6062 = vand.u32 %v6061, 4294901760
        %6063 = vmatprep.subr.mxu0 %v6062
        %v6064 = vand.u32 %v942, 4294901760
        %v6065 = vsub.f32 %v942, %v6064
        %v6066 = vand.u32 %v6065, 4294901760
        %6067 = vmatpush2.xpose.msra.mxu0 %v6066
        %v6068 = vand.u32 %v939, 4294901760
        %v6069 = vsub.f32 %v939, %v6068
        %v6070 = vand.u32 %v6069, 4294901760
        %6071 = vmatprep.subr.mxu0 %v6070
        %v6072 = vand.u32 %v938, 4294901760
        %v6073 = vsub.f32 %v938, %v6072
        %v6074 = vand.u32 %v6073, 4294901760
        %6075 = vmatpush2.xpose.msra.mxu0 %v6074
        %v6076 = vand.u32 %v935, 4294901760
        %v6077 = vsub.f32 %v935, %v6076
        %v6078 = vand.u32 %v6077, 4294901760
        %6079 = vmatprep.subr.mxu0 %v6078
        %v6080 = vand.u32 %v934, 4294901760
        %v6081 = vsub.f32 %v934, %v6080
        %v6082 = vand.u32 %v6081, 4294901760
        %6083 = vmatpush2.xpose.msra.mxu0 %v6082
        %v6084 = vand.u32 %v931, 4294901760
        %v6085 = vsub.f32 %v931, %v6084
        %v6086 = vand.u32 %v6085, 4294901760
        %6087 = vmatprep.subr.mxu0 %v6086
        %v6088 = vand.u32 %v930, 4294901760
        %v6089 = vsub.f32 %v930, %v6088
        %v6090 = vand.u32 %v6089, 4294901760
        %6091 = vmatpush2.xpose.msra.mxu0 %v6090
        %v6092 = vand.u32 %v927, 4294901760
        %v6093 = vsub.f32 %v927, %v6092
        %v6094 = vand.u32 %v6093, 4294901760
        %6095 = vmatprep.subr.mxu0 %v6094
        %v6096 = vand.u32 %v926, 4294901760
        %v6097 = vsub.f32 %v926, %v6096
        %v6098 = vand.u32 %v6097, 4294901760
        %6099 = vmatpush2.xpose.msra.mxu0 %v6098
        %v6100 = vand.u32 %v923, 4294901760
        %v6101 = vsub.f32 %v923, %v6100
        %v6102 = vand.u32 %v6101, 4294901760
        %6103 = vmatprep.subr.mxu0 %v6102
        %v6104 = vand.u32 %v922, 4294901760
        %v6105 = vsub.f32 %v922, %v6104
        %v6106 = vand.u32 %v6105, 4294901760
        %6107 = vmatpush2.xpose.msra.mxu0 %v6106
        %v6108 = vand.u32 %v919, 4294901760
        %v6109 = vsub.f32 %v919, %v6108
        %v6110 = vand.u32 %v6109, 4294901760
        %6111 = vmatprep.subr.mxu0 %v6110
        %v6112 = vand.u32 %v918, 4294901760
        %v6113 = vsub.f32 %v918, %v6112
        %v6114 = vand.u32 %v6113, 4294901760
        %6115 = vmatpush2.xpose.msra.mxu0 %v6114
        %v6116 = vand.u32 %v915, 4294901760
        %v6117 = vsub.f32 %v915, %v6116
        %v6118 = vand.u32 %v6117, 4294901760
        %6119 = vmatprep.subr.mxu0 %v6118
        %v6120 = vand.u32 %v914, 4294901760
        %v6121 = vsub.f32 %v914, %v6120
        %v6122 = vand.u32 %v6121, 4294901760
        %6123 = vmatpush2.xpose.msra.mxu0 %v6122
        %v6124 = vand.u32 %v911, 4294901760
        %v6125 = vsub.f32 %v911, %v6124
        %v6126 = vand.u32 %v6125, 4294901760
        %6127 = vmatprep.subr.mxu0 %v6126
        %v6128 = vand.u32 %v910, 4294901760
        %v6129 = vsub.f32 %v910, %v6128
        %v6130 = vand.u32 %v6129, 4294901760
        %6131 = vmatpush2.xpose.msra.mxu0 %v6130
        %v6132 = vand.u32 %v907, 4294901760
        %v6133 = vsub.f32 %v907, %v6132
        %v6134 = vand.u32 %v6133, 4294901760
        %6135 = vmatprep.subr.mxu0 %v6134
        %v6136 = vand.u32 %v906, 4294901760
        %v6137 = vsub.f32 %v906, %v6136
        %v6138 = vand.u32 %v6137, 4294901760
        %6139 = vmatpush2.xpose.msra.mxu0 %v6138
        %v6140 = vand.u32 %v903, 4294901760
        %v6141 = vsub.f32 %v903, %v6140
        %v6142 = vand.u32 %v6141, 4294901760
        %6143 = vmatprep.subr.mxu0 %v6142
        %v6144 = vand.u32 %v902, 4294901760
        %v6145 = vsub.f32 %v902, %v6144
        %v6146 = vand.u32 %v6145, 4294901760
        %6147 = vmatpush2.xpose.msra.mxu0 %v6146
        %v6148 = vand.u32 %v899, 4294901760
        %v6149 = vsub.f32 %v899, %v6148
        %v6150 = vand.u32 %v6149, 4294901760
        %6151 = vmatprep.subr.mxu0 %v6150
        %v6152 = vand.u32 %v898, 4294901760
        %v6153 = vsub.f32 %v898, %v6152
        %v6154 = vand.u32 %v6153, 4294901760
        %6155 = vmatpush2.xpose.msra.mxu0 %v6154
        %v6156 = vand.u32 %v895, 4294901760
        %v6157 = vsub.f32 %v895, %v6156
        %v6158 = vand.u32 %v6157, 4294901760
        %6159 = vmatprep.subr.mxu0 %v6158
        %v6160 = vand.u32 %v894, 4294901760
        %v6161 = vsub.f32 %v894, %v6160
        %v6162 = vand.u32 %v6161, 4294901760
        %6163 = vmatpush2.xpose.msra.mxu0 %v6162
        %v6164 = vand.u32 %v891, 4294901760
        %v6165 = vsub.f32 %v891, %v6164
        %v6166 = vand.u32 %v6165, 4294901760
        %6167 = vmatprep.subr.mxu0 %v6166
        %v6168 = vand.u32 %v890, 4294901760
        %v6169 = vsub.f32 %v890, %v6168
        %v6170 = vand.u32 %v6169, 4294901760
        %6171 = vmatpush2.xpose.msra.mxu0 %v6170
        %v6172 = vand.u32 %v887, 4294901760
        %v6173 = vsub.f32 %v887, %v6172
        %v6174 = vand.u32 %v6173, 4294901760
        %6175 = vmatprep.subr.mxu0 %v6174
        %v6176 = vand.u32 %v886, 4294901760
        %v6177 = vsub.f32 %v886, %v6176
        %v6178 = vand.u32 %v6177, 4294901760
        %6179 = vmatpush2.xpose.msra.mxu0 %v6178
        %v6180 = vand.u32 %v883, 4294901760
        %v6181 = vsub.f32 %v883, %v6180
        %v6182 = vand.u32 %v6181, 4294901760
        %6183 = vmatprep.subr.mxu0 %v6182
        %v6184 = vand.u32 %v882, 4294901760
        %v6185 = vsub.f32 %v882, %v6184
        %v6186 = vand.u32 %v6185, 4294901760
        %6187 = vmatpush2.xpose.msra.mxu0 %v6186
        %v6188 = vand.u32 %v683, 4294901760
        %6189 = vmatprep.mubr.f32.mxu0 %v6188
        %v6190 = vand.u32 %v682, 4294901760
        %6191 = vmatmul.mubr.f32.gmra.mxu0 %v6190
        %v6192 = vpop.f32.mrf.mxu0
        %v6193 = vadd.f32 %v5916, %v6192
        %v6194 = vpop.f32.mrf.mxu0
        %v6195 = vadd.f32 %v5918, %v6194
        %v6196 = vand.u32 %v687, 4294901760
        %6197 = vmatprep.mubr.f32.mxu0 %v6196
        %v6198 = vand.u32 %v686, 4294901760
        %6199 = vmatmul.mubr.f32.gmra.mxu0 %v6198
        %v6200 = vpop.f32.mrf.mxu0
        %v6201 = vadd.f32 %v5928, %v6200
        %v6202 = vpop.f32.mrf.mxu0
        %v6203 = vadd.f32 %v5930, %v6202
        %6204 = vdwg.mxu0
        %v6205 = vand.u32 %v879, 4294901760
        %6206 = vmatprep.subr.mxu0 %v6205
        %v6207 = vand.u32 %v878, 4294901760
        %6208 = vmatpush1.xpose.msra.mxu0 %v6207
        %v6209 = vand.u32 %v875, 4294901760
        %6210 = vmatprep.subr.mxu0 %v6209
        %v6211 = vand.u32 %v874, 4294901760
        %6212 = vmatpush1.xpose.msra.mxu0 %v6211
        %v6213 = vand.u32 %v871, 4294901760
        %6214 = vmatprep.subr.mxu0 %v6213
        %v6215 = vand.u32 %v870, 4294901760
        %6216 = vmatpush1.xpose.msra.mxu0 %v6215
        %v6217 = vand.u32 %v867, 4294901760
        %6218 = vmatprep.subr.mxu0 %v6217
        %v6219 = vand.u32 %v866, 4294901760
        %6220 = vmatpush1.xpose.msra.mxu0 %v6219
        %v6221 = vand.u32 %v863, 4294901760
        %6222 = vmatprep.subr.mxu0 %v6221
        %v6223 = vand.u32 %v862, 4294901760
        %6224 = vmatpush1.xpose.msra.mxu0 %v6223
        %v6225 = vand.u32 %v859, 4294901760
        %6226 = vmatprep.subr.mxu0 %v6225
        %v6227 = vand.u32 %v858, 4294901760
        %6228 = vmatpush1.xpose.msra.mxu0 %v6227
        %v6229 = vand.u32 %v855, 4294901760
        %6230 = vmatprep.subr.mxu0 %v6229
        %v6231 = vand.u32 %v854, 4294901760
        %6232 = vmatpush1.xpose.msra.mxu0 %v6231
        %v6233 = vand.u32 %v851, 4294901760
        %6234 = vmatprep.subr.mxu0 %v6233
        %v6235 = vand.u32 %v850, 4294901760
        %6236 = vmatpush1.xpose.msra.mxu0 %v6235
        %v6237 = vand.u32 %v847, 4294901760
        %6238 = vmatprep.subr.mxu0 %v6237
        %v6239 = vand.u32 %v846, 4294901760
        %6240 = vmatpush1.xpose.msra.mxu0 %v6239
        %v6241 = vand.u32 %v843, 4294901760
        %6242 = vmatprep.subr.mxu0 %v6241
        %v6243 = vand.u32 %v842, 4294901760
        %6244 = vmatpush1.xpose.msra.mxu0 %v6243
        %v6245 = vand.u32 %v839, 4294901760
        %6246 = vmatprep.subr.mxu0 %v6245
        %v6247 = vand.u32 %v838, 4294901760
        %6248 = vmatpush1.xpose.msra.mxu0 %v6247
        %v6249 = vand.u32 %v835, 4294901760
        %6250 = vmatprep.subr.mxu0 %v6249
        %v6251 = vand.u32 %v834, 4294901760
        %6252 = vmatpush1.xpose.msra.mxu0 %v6251
        %v6253 = vand.u32 %v831, 4294901760
        %6254 = vmatprep.subr.mxu0 %v6253
        %v6255 = vand.u32 %v830, 4294901760
        %6256 = vmatpush1.xpose.msra.mxu0 %v6255
        %v6257 = vand.u32 %v827, 4294901760
        %6258 = vmatprep.subr.mxu0 %v6257
        %v6259 = vand.u32 %v826, 4294901760
        %6260 = vmatpush1.xpose.msra.mxu0 %v6259
        %v6261 = vand.u32 %v823, 4294901760
        %6262 = vmatprep.subr.mxu0 %v6261
        %v6263 = vand.u32 %v822, 4294901760
        %6264 = vmatpush1.xpose.msra.mxu0 %v6263
        %v6265 = vand.u32 %v819, 4294901760
        %6266 = vmatprep.subr.mxu0 %v6265
        %v6267 = vand.u32 %v818, 4294901760
        %6268 = vmatpush1.xpose.msra.mxu0 %v6267
        %v6269 = vand.u32 %v943, 4294901760
        %6270 = vmatprep.subr.mxu0 %v6269
        %v6271 = vand.u32 %v942, 4294901760
        %6272 = vmatpush2.xpose.msra.mxu0 %v6271
        %v6273 = vand.u32 %v939, 4294901760
        %6274 = vmatprep.subr.mxu0 %v6273
        %v6275 = vand.u32 %v938, 4294901760
        %6276 = vmatpush2.xpose.msra.mxu0 %v6275
        %v6277 = vand.u32 %v935, 4294901760
        %6278 = vmatprep.subr.mxu0 %v6277
        %v6279 = vand.u32 %v934, 4294901760
        %6280 = vmatpush2.xpose.msra.mxu0 %v6279
        %v6281 = vand.u32 %v931, 4294901760
        %6282 = vmatprep.subr.mxu0 %v6281
        %v6283 = vand.u32 %v930, 4294901760
        %6284 = vmatpush2.xpose.msra.mxu0 %v6283
        %v6285 = vand.u32 %v927, 4294901760
        %6286 = vmatprep.subr.mxu0 %v6285
        %v6287 = vand.u32 %v926, 4294901760
        %6288 = vmatpush2.xpose.msra.mxu0 %v6287
        %v6289 = vand.u32 %v923, 4294901760
        %6290 = vmatprep.subr.mxu0 %v6289
        %v6291 = vand.u32 %v922, 4294901760
        %6292 = vmatpush2.xpose.msra.mxu0 %v6291
        %v6293 = vand.u32 %v919, 4294901760
        %6294 = vmatprep.subr.mxu0 %v6293
        %v6295 = vand.u32 %v918, 4294901760
        %6296 = vmatpush2.xpose.msra.mxu0 %v6295
        %v6297 = vand.u32 %v915, 4294901760
        %6298 = vmatprep.subr.mxu0 %v6297
        %v6299 = vand.u32 %v914, 4294901760
        %6300 = vmatpush2.xpose.msra.mxu0 %v6299
        %v6301 = vand.u32 %v911, 4294901760
        %6302 = vmatprep.subr.mxu0 %v6301
        %v6303 = vand.u32 %v910, 4294901760
        %6304 = vmatpush2.xpose.msra.mxu0 %v6303
        %v6305 = vand.u32 %v907, 4294901760
        %6306 = vmatprep.subr.mxu0 %v6305
        %v6307 = vand.u32 %v906, 4294901760
        %6308 = vmatpush2.xpose.msra.mxu0 %v6307
        %v6309 = vand.u32 %v903, 4294901760
        %6310 = vmatprep.subr.mxu0 %v6309
        %v6311 = vand.u32 %v902, 4294901760
        %6312 = vmatpush2.xpose.msra.mxu0 %v6311
        %v6313 = vand.u32 %v899, 4294901760
        %6314 = vmatprep.subr.mxu0 %v6313
        %v6315 = vand.u32 %v898, 4294901760
        %6316 = vmatpush2.xpose.msra.mxu0 %v6315
        %v6317 = vand.u32 %v895, 4294901760
        %6318 = vmatprep.subr.mxu0 %v6317
        %v6319 = vand.u32 %v894, 4294901760
        %6320 = vmatpush2.xpose.msra.mxu0 %v6319
        %v6321 = vand.u32 %v891, 4294901760
        %6322 = vmatprep.subr.mxu0 %v6321
        %v6323 = vand.u32 %v890, 4294901760
        %6324 = vmatpush2.xpose.msra.mxu0 %v6323
        %v6325 = vand.u32 %v887, 4294901760
        %6326 = vmatprep.subr.mxu0 %v6325
        %v6327 = vand.u32 %v886, 4294901760
        %6328 = vmatpush2.xpose.msra.mxu0 %v6327
        %v6329 = vand.u32 %v883, 4294901760
        %6330 = vmatprep.subr.mxu0 %v6329
        %v6331 = vand.u32 %v882, 4294901760
        %6332 = vmatpush2.xpose.msra.mxu0 %v6331
        %v6333 = vand.u32 %v683, 4294901760
        %6334 = vmatprep.mubr.f32.mxu0 %v6333
        %v6335 = vand.u32 %v682, 4294901760
        %6336 = vmatmul.mubr.f32.gmra.mxu0 %v6335
        %v6337 = vpop.f32.mrf.mxu0
        %v6338 = vadd.f32 %v6193, %v6337
        %v6339 = vpop.f32.mrf.mxu0
        %v6340 = vadd.f32 %v6195, %v6339
        %v6341 = vand.u32 %v687, 4294901760
        %6342 = vmatprep.mubr.f32.mxu0 %v6341
        %v6343 = vand.u32 %v686, 4294901760
        %6344 = vmatmul.mubr.f32.gmra.mxu0 %v6343
        %v6345 = vpop.f32.mrf.mxu0
        %v6346 = vadd.f32 %v6201, %v6345
        %v6347 = vpop.f32.mrf.mxu0
        %v6348 = vadd.f32 %v6203, %v6347
        %6349 = vdwg.mxu0
        %v6350 = vadd.f32 %v3646, %v339
        %v6351 = vadd.f32 %v3648, %v340
        %v6352 = vadd.f32 %v6338, %v341
        %v6353 = vadd.f32 %v6340, %v342
        %v6354 = vadd.f32 %v3654, %v343
        %v6355 = vadd.f32 %v3656, %v344
        %v6356 = vadd.f32 %v6346, %v345
        %v6357 = vadd.f32 %v6348, %v346
        %6358 = vst [vmem:[%s338] sm:$0xff] %v6350
        %6359 = vst [vmem:[%s338 + $0x8] sm:$0xff] %v6351
        %6360 = vst [vmem:[%s338 + $0x10] sm:$0xff] %v6352
        %6361 = vst [vmem:[%s338 + $0x18] sm:$0xff] %v6353
        %6362 = vst [vmem:[%s338 + $0x20] sm:$0xff] %v6354
        %6363 = vst [vmem:[%s338 + $0x28] sm:$0xff] %v6355
        %6364 = vst [vmem:[%s338 + $0x30] sm:$0xff] %v6356
        %6365 = vst [vmem:[%s338 + $0x38] sm:$0xff] %v6357
        %s6366 = sand.u32 %s188, 1
        %s6367 = scalar_lea.sflag [#allocation5], %s6366
        %s6368 = sand.u32 %s188, 1
        %s6369 = smul.addr %s6368, 64
        %s6370 = scalar_lea.vmem [#allocation11], %s6369
        // Predicated region
        $region65: #{tpu_custom_call.1} parent=47 // pred_check
          %p6371 = pneg %p198
        $region66: #{tpu_custom_call.1} parent=47 // pred_check_branch
          %6373 = sbr.rel (%p6371) target = $region68
        $region67: #{tpu_custom_call.1} parent=47 // pred_region
          %s6375 = ssub.s32 1024, 1024
          %6376 = vsyncadd %s6367, %s6375
          %s6377 = smul.addr %s28, 8
          %s6378 = smul.addr %s6377, 128
          %s6379 = scalar_lea.hbm %s7, %s6378
          %s6380 = sshll.u32 %s6370, 4
          %s6381 = int_to_ptr.vmem [resolvable:$true] %s6380
          %6386 = dma.vmem_to_hbm [thread:$0]  %s6381, 1024, %s6379, %s6367, 512, 512, 32
        $region68: #{tpu_custom_call.1} parent=47 // pred_fallthru
          _
      $region48: #{tpu_custom_call.1} parent=5 // pred_fallthru
        _
      %p6387 = scmp.le.s32.totalorder 2, %s23
      // Predicated region
      $region69: #{tpu_custom_call.1} parent=5 // pred_check
        %p6388 = pneg %p6387
      $region70: #{tpu_custom_call.1} parent=5 // pred_check_branch
        %6390 = sbr.rel (%p6388) target = $region72
      $region71: #{tpu_custom_call.1} parent=5 // pred_region
        %s6391 = ssub.s32 %s23, 2
        // Predicated region
        $region73: #{tpu_custom_call.1} parent=71 // pred_check
          %p6392 = pneg %p204
        $region74: #{tpu_custom_call.1} parent=71 // pred_check_branch
          %6394 = sbr.rel (%p6392) target = $region76
        $region75: #{tpu_custom_call.1} parent=71 // pred_region
          %s6395 = sand.u32 %s189, 1
          %s6396 = scalar_lea.sflag [#allocation5], %s6395
          %s6397 = sand.u32 %s189, 1
          %s6398 = smul.addr %s6397, 64
          %s6399 = scalar_lea.vmem [#allocation11], %s6398
          %6400 = dma.done %s6396, 1024
        $region76: #{tpu_custom_call.1} parent=71 // pred_fallthru
          _
      $region72: #{tpu_custom_call.1} parent=5 // pred_fallthru
        _
    $region6: #{tpu_custom_call.1} parent=1 // loop_footer
      %s27 = sadd.s32 1, %s23
    $region7: #{tpu_custom_call.1} parent=1 // loop_footer_branch
      %22 = sbr.rel target = $region3
    $region8: #{tpu_custom_call.1} parent=1 // loop_exit
      _
    %6401 = vsyncpa [#allocation4], 1
    %s6402 = scalar_lea.sflag [#allocation4], 1
    %6403 = vsyncpa %s6402, 1
    %6404 = vsyncpa [#allocation7], 1
    %6405 = vsyncpa [#allocation10], 1
    %6406 = vsyncpa [#allocation5], 1
    %s6407 = scalar_lea.sflag [#allocation5], 1
    %6408 = vsyncpa %s6407, 1

</llo_original>
